<compile_context>
chip_gen: v7x
topology: tpu7x:2x2x1
jax: 0.10.0
libtpu: 0.0.40
codegen_flags: <defaults>
</compile_context>

<pallas_src>
import numpy as np
import jax
import jax.numpy as jnp
from jax.experimental import pallas as pl
from jax.experimental.pallas import tpu as pltpu  # noqa: F401  (TPU backend)

# ----------------------------- configuration --------------------------------
NODE_FEAT = 16
N_LAYERS = 4
IN_CH = [16, 32, 32, 32]
OUT_CH = [32, 32, 32, 40]
HEADS = 2
TARGETS = 24
RES_LAYERS = 4            # Residual_block(in_channels[0], 4, activation='relu')
N_NODES = 12
N_GRAPHS = 2
N_PAD = 16                # node count padded to a multiple of 8 (sublane tiling)
LSTM_HIDDEN = OUT_CH[-2]  # 32
SEQ_LEN = N_LAYERS - 1    # 3 jumping-knowledge steps fed to the LSTM
NEG_BIG = 1e9             # additive softmax mask magnitude

PARAM_COLS = 4 * LSTM_HIDDEN          # 128: lane width of the packed param buffer
POOL_ROWS = 8                          # graph rows in the (padded) pooling matrix
DATA_COLS = 16                         # lane width of the packed data buffer
DATA_ROWS = 2 * N_PAD + POOL_ROWS      # [x rows | adj rows | seg rows]


# ----------------------- packed parameter buffer layout ----------------------


def _align8(n):
    return ((n + 7) // 8) * 8


def _param_specs():
    """(name, rows, cols) for every tensor in the packed parameter buffer."""
    specs = [("pre_w", NODE_FEAT, IN_CH[0]), ("pre_b", 1, IN_CH[0])]
    for l in range(RES_LAYERS):
        specs += [(f"res_w{l}", IN_CH[0], IN_CH[0]), (f"res_b{l}", 1, IN_CH[0])]
    for i in range(N_LAYERS):
        heads = HEADS if i < N_LAYERS - 1 else 1
        d_in = IN_CH[0] if i == 0 else IN_CH[i] * HEADS
        # fused [W | W @ A_pack]: node transform + attention projection
        specs += [(f"gat_w{i}", d_in, heads * OUT_CH[i] + 2 * heads),
                  (f"gat_b{i}", 1, heads * OUT_CH[i])]
    for l in range(3):
        d_in = OUT_CH[-2] * HEADS if l == 0 else 2 * LSTM_HIDDEN
        for d in ("f", "b"):
            specs += [(f"lstm_wih{l}{d}", d_in, 4 * LSTM_HIDDEN),
                      (f"lstm_whh{l}{d}", LSTM_HIDDEN, 4 * LSTM_HIDDEN),
                      (f"lstm_b{l}{d}", 1, 4 * LSTM_HIDDEN)]
    specs += [("attn_w", 2 * LSTM_HIDDEN, 1), ("attn_b", 1, 1),
              ("out_w", OUT_CH[-1], TARGETS), ("out_b", 1, TARGETS)]
    return specs


def _make_layout(specs):
    layout, off = {}, 0
    for name, r, c in specs:
        assert c <= PARAM_COLS
        layout[name] = (off, r, c)
        off += _align8(r)          # every tensor starts on an 8-sublane boundary
    return layout, off


_SPECS = _param_specs()
LAYOUT, TOTAL_ROWS = _make_layout(_SPECS)      # -> 1104 rows x 128 lanes (~552 KiB)


# ------------------------------ fused kernel ---------------------------------


def _xasnet_kernel(data_ref, p_ref, o_ref):
    N = N_PAD
    d_h = LSTM_HIDDEN

    def load(name):
        r0, r, c = LAYOUT[name]
        return p_ref[r0:r0 + r, 0:c]          # static slice of the packed buffer

    x_in = data_ref[0:N, 0:NODE_FEAT]
    adj = data_ref[N:2 * N, 0:N]
    seg = data_ref[2 * N:2 * N + POOL_ROWS, 0:N]

    # Additive softmax mask: 0 on edges/self-loops, -1e9 elsewhere; the 2-head
    # layers use the [2N, N] slab version (heads stacked along sublanes).
    mask1 = (adj - 1.0) * NEG_BIG
    mask2 = jnp.concatenate([mask1, mask1], axis=0)

    # ---- pre_layer: Linear + ReLU
    x = jnp.dot(x_in, load("pre_w"), preferred_element_type=jnp.float32)
    x = jnp.maximum(x + load("pre_b"), 0.0)

    # ---- residual block: 4x (Linear + ReLU) with one additive skip
    h = x
    for l in range(RES_LAYERS):
        h = jnp.dot(h, load(f"res_w{l}"),
                    preferred_element_type=jnp.float32) + load(f"res_b{l}")
        h = jnp.maximum(h, 0.0)
    x = x + h

    # ---- 2-head GAT layer: both heads processed in one [2N, N] slab
    def gat2(xin, i):
        c_out = OUT_CH[i]
        xe = jnp.dot(xin, load(f"gat_w{i}"), preferred_element_type=jnp.float32)
        xl = xe[:, :2 * c_out]                       # [N, 2*c_out]
        al = xe[:, 2 * c_out:2 * c_out + 4]          # [N, 4] = src0|src1|dst0|dst1
        src_full = jnp.concatenate(
            [jnp.broadcast_to(al[:, 0][None, :], (N, N)),
             jnp.broadcast_to(al[:, 1][None, :], (N, N))], axis=0)
        dst_full = jnp.concatenate([al[:, 2:3], al[:, 3:4]], axis=0)
        e = dst_full + src_full                      # [2N, N]
        e = jnp.maximum(e, 0.2 * e) + mask2          # LeakyReLU(0.2) + edge mask
        e = e - jnp.max(e, axis=-1, keepdims=True)   # stabilized softmax over src
        p = jnp.exp(e)                               # masked entries -> exactly 0
        alpha = p / jnp.sum(p, axis=-1, keepdims=True)
        y = jnp.concatenate(
            [jnp.dot(alpha[:N], xl[:, :c_out], preferred_element_type=jnp.float32),
             jnp.dot(alpha[N:], xl[:, c_out:], preferred_element_type=jnp.float32)],
            axis=1) + load(f"gat_b{i}")
        return jnp.maximum(y, 0.0)                   # ReLU; Dropout = identity

    xs = []
    for i in range(N_LAYERS - 1):
        x = gat2(x, i)
        xs.append(x)

    # ---- 3-layer bidirectional LSTM over the jumping-knowledge sequence.
    # Timesteps are stacked along sublanes ([3N, .]); input projections are
    # hoisted out of the recurrence; fwd/bwd run in the same step with the cell
    # state and gate activations kept as single [2N, .] slabs (gates i|f|o|g).
    seq_all = jnp.concatenate(xs, axis=0)            # [3N, 64]
    outf_all = outb_all = None
    for l in range(3):
        gx_f = jnp.dot(seq_all, load(f"lstm_wih{l}f"),
                       preferred_element_type=jnp.float32) + load(f"lstm_b{l}f")
        gx_b = jnp.dot(seq_all, load(f"lstm_wih{l}b"),
                       preferred_element_type=jnp.float32) + load(f"lstm_b{l}b")
        whh_f = load(f"lstm_whh{l}f")
        whh_b = load(f"lstm_whh{l}b")
        h_f = jnp.zeros((N, d_h), jnp.float32)
        h_b = jnp.zeros((N, d_h), jnp.float32)
        c_fb = jnp.zeros((2 * N, d_h), jnp.float32)
        out_f = [None] * SEQ_LEN
        out_b = [None] * SEQ_LEN
        for s in range(SEQ_LEN):
            t_f, t_b = s, SEQ_LEN - 1 - s
            g = jnp.concatenate(
                [gx_f[t_f * N:(t_f + 1) * N]
                 + jnp.dot(h_f, whh_f, preferred_element_type=jnp.float32),
                 gx_b[t_b * N:(t_b + 1) * N]
                 + jnp.dot(h_b, whh_b, preferred_element_type=jnp.float32)],
                axis=0)                              # [2N, 4*d_h]
            sig = jax.nn.sigmoid(g[:, :3 * d_h])     # i | f | o, both directions
            gg = jnp.tanh(g[:, 3 * d_h:])
            c_fb = sig[:, d_h:2 * d_h] * c_fb + sig[:, :d_h] * gg
            h_fb = sig[:, 2 * d_h:] * jnp.tanh(c_fb)
            h_f, h_b = h_fb[:N], h_fb[N:]
            out_f[t_f] = h_f
            out_b[t_b] = h_b
        outf_all = jnp.concatenate(out_f, axis=0)    # [3N, d_h]
        outb_all = jnp.concatenate(out_b, axis=0)
        if l < 2:
            seq_all = jnp.concatenate([outf_all, outb_all], axis=1)

    # ---- attention pooling over the 3 jumping-knowledge steps (one batched
    # score pass over all timesteps, per-node softmax over the time axis)
    aw = load("attn_w")
    scores = (jnp.dot(outf_all, aw[:d_h, :], preferred_element_type=jnp.float32)
              + jnp.dot(outb_all, aw[d_h:, :], preferred_element_type=jnp.float32)
              + load("attn_b"))                      # [3N, 1]
    s0, s1, s2 = scores[0:N], scores[N:2 * N], scores[2 * N:3 * N]
    m = jnp.maximum(jnp.maximum(s0, s1), s2)
    e0, e1, e2 = jnp.exp(s0 - m), jnp.exp(s1 - m), jnp.exp(s2 - m)
    pooled = (e0 * xs[0] + e1 * xs[1] + e2 * xs[2]) / (e0 + e1 + e2)   # [N, 64]

    # ---- final GAT layer (heads=1, no activation)
    c_out = OUT_CH[-1]
    xe = jnp.dot(pooled, load("gat_w3"), preferred_element_type=jnp.float32)
    xl = xe[:, :c_out]
    al = xe[:, c_out:c_out + 2]                      # [N, 2] = src | dst
    e = al[:, 1:2] + jnp.broadcast_to(al[:, 0][None, :], (N, N))
    e = jnp.maximum(e, 0.2 * e) + mask1
    e = e - jnp.max(e, axis=-1, keepdims=True)
    p = jnp.exp(e)
    alpha = p / jnp.sum(p, axis=-1, keepdims=True)
    xf = jnp.dot(alpha, xl, preferred_element_type=jnp.float32) + load("gat_b3")

    # ---- global mean pool (normalized segment matrix) + output projection.
    # out_w/out_b are loaded with their zero padding up to 128 lanes so the
    # final store is one full, unmasked [8, 128] tile (lane-dense output).
    g = jnp.dot(seg, xf, preferred_element_type=jnp.float32)          # [8, 40]
    r_w = LAYOUT["out_w"][0]
    r_b = LAYOUT["out_b"][0]
    ow = p_ref[r_w:r_w + OUT_CH[-1], :]              # [40, 128], zero past TARGETS
    ob = p_ref[r_b:r_b + 1, :]                       # [1, 128]
    o_ref[...] = jnp.dot(g, ow, preferred_element_type=jnp.float32) + ob


# ------------------------------ model glue -----------------------------------


def init_params(key):
    keys = iter(jax.random.split(key, 64))

    def nk():
        return next(keys)

    def glorot(shape):
        fan_in, fan_out = shape
        s = jnp.sqrt(2.0 / (fan_in + fan_out))
        return (s * jax.random.normal(nk(), shape, jnp.float32)).astype(jnp.float32)

    def zeros(shape):
        return jnp.zeros(shape, jnp.float32)

    p = {}
    # TODO(synk): LinearLayer / Residual_block sources were not provided; implemented
    # as Linear(+ReLU) and a 4x Linear+ReLU stack with a single additive skip.
    p["pre_w"] = glorot((NODE_FEAT, IN_CH[0]))
    p["pre_b"] = zeros((1, IN_CH[0]))
    p["res"] = [(glorot((IN_CH[0], IN_CH[0])), zeros((1, IN_CH[0])))
                for _ in range(RES_LAYERS)]

    gats = []
    for i in range(N_LAYERS - 1):
        d_in = IN_CH[0] if i == 0 else IN_CH[i] * HEADS
        gats.append(dict(
            w=glorot((d_in, HEADS * OUT_CH[i])),
            asrc=0.1 * jax.random.normal(nk(), (HEADS, OUT_CH[i]), jnp.float32),
            adst=0.1 * jax.random.normal(nk(), (HEADS, OUT_CH[i]), jnp.float32),
            b=zeros((1, HEADS * OUT_CH[i])),
        ))
    gats.append(dict(          # last GAT layer: default heads=1
        w=glorot((IN_CH[-1] * HEADS, OUT_CH[-1])),
        asrc=0.1 * jax.random.normal(nk(), (1, OUT_CH[-1]), jnp.float32),
        adst=0.1 * jax.random.normal(nk(), (1, OUT_CH[-1]), jnp.float32),
        b=zeros((1, OUT_CH[-1])),
    ))
    p["gat"] = gats

    d_h = LSTM_HIDDEN
    lstm = []
    for layer in range(3):
        d_in = OUT_CH[-2] * HEADS if layer == 0 else 2 * d_h
        lstm.append({
            d: dict(wih=glorot((d_in, 4 * d_h)),
                    whh=glorot((d_h, 4 * d_h)),
                    # single bias per direction == PyTorch b_ih + b_hh
                    b=zeros((1, 4 * d_h)))
            for d in ("fwd", "bwd")
        })
    p["lstm"] = lstm

    p["attn_w"] = glorot((2 * d_h, 1))
    p["attn_b"] = zeros((1, 1))
    p["out_w"] = glorot((OUT_CH[-1], TARGETS))
    p["out_b"] = zeros((1, TARGETS))
    return p


def pack_params(p):
    """Pack natural (PyTorch-like) parameters into ONE [TOTAL_ROWS, 128] buffer."""
    buf = np.zeros((TOTAL_ROWS, PARAM_COLS), np.float32)
    d_h = LSTM_HIDDEN

    def put(name, arr):
        arr = np.asarray(arr, np.float32)
        r0, r, c = LAYOUT[name]
        assert arr.shape == (r, c), (name, arr.shape, (r, c))
        buf[r0:r0 + r, :c] = arr

    put("pre_w", p["pre_w"])
    put("pre_b", p["pre_b"])
    for l, (w, b) in enumerate(p["res"]):
        put(f"res_w{l}", w)
        put(f"res_b{l}", b)

    for i, gp in enumerate(p["gat"]):
        heads = HEADS if i < N_LAYERS - 1 else 1
        c_out = OUT_CH[i]
        w = np.asarray(gp["w"], np.float32)
        asrc = np.asarray(gp["asrc"], np.float32)
        adst = np.asarray(gp["adst"], np.float32)
        # attention projection: cols [src_0..src_{H-1} | dst_0..dst_{H-1}]
        a_pack = np.zeros((heads * c_out, 2 * heads), np.float32)
        for h in range(heads):
            a_pack[h * c_out:(h + 1) * c_out, h] = asrc[h]
            a_pack[h * c_out:(h + 1) * c_out, heads + h] = adst[h]
        put(f"gat_w{i}", np.concatenate([w, w @ a_pack], axis=1))   # fused W_ext
        put(f"gat_b{i}", gp["b"])

    def reord(m):
        # reorder gate column blocks [i,f,g,o] -> [i,f,o,g] (sigmoids contiguous)
        m = np.asarray(m, np.float32)
        return np.concatenate(
            [m[..., :2 * d_h], m[..., 3 * d_h:], m[..., 2 * d_h:3 * d_h]], axis=-1)

    for l, lp in enumerate(p["lstm"]):
        for tag, d in (("f", "fwd"), ("b", "bwd")):
            put(f"lstm_wih{l}{tag}", reord(lp[d]["wih"]))
            put(f"lstm_whh{l}{tag}", reord(lp[d]["whh"]))
            put(f"lstm_b{l}{tag}", reord(lp[d]["b"]))

    put("attn_w", p["attn_w"])
    put("attn_b", p["attn_b"])
    put("out_w", p["out_w"])
    put("out_b", p["out_b"])
    return jnp.asarray(buf)


def xasnet_gat_forward(packed_params, x, adj, seg_norm):
    n = x.shape[0]
    ng = seg_norm.shape[0]
    assert n <= N_PAD and ng <= POOL_ROWS and x.shape[1] == NODE_FEAT
    # Pad the node axis 12 -> 16. Padded nodes only self-attend (finite softmax
    # rows) and are zeroed by the pooling matrix, so real-node results match
    # the unpadded computation.
    adj_p = jnp.zeros((N_PAD, N_PAD), jnp.float32).at[:n, :n].set(adj)
    adj_p = adj_p.at[jnp.arange(N_PAD), jnp.arange(N_PAD)].set(1.0)
    data = jnp.zeros((DATA_ROWS, DATA_COLS), jnp.float32)
    data = data.at[:n, :NODE_FEAT].set(x)
    data = data.at[N_PAD:2 * N_PAD, :N_PAD].set(adj_p)
    data = data.at[2 * N_PAD:2 * N_PAD + ng, :n].set(seg_norm)

    out_pad = pl.pallas_call(
        _xasnet_kernel,
        out_shape=jax.ShapeDtypeStruct((POOL_ROWS, PARAM_COLS), jnp.float32),
    )(data, packed_params)
    return out_pad[:ng, :TARGETS]


def build_graph(n_nodes, n_graphs):
    # Deterministic graphs: a bidirectional ring inside each graph.
    per = n_nodes // n_graphs
    src, dst = [], []
    for g in range(n_graphs):
        base = g * per
        for i in range(per):
            a, b = base + i, base + (i + 1) % per
            src += [a, b]
            dst += [b, a]
    edge_index = jnp.array([src, dst], dtype=jnp.int32)              # [2, E]
    adj = jnp.zeros((n_nodes, n_nodes), jnp.float32)
    adj = adj.at[edge_index[1], edge_index[0]].set(1.0)              # adj[dst, src]
    adj = adj.at[jnp.arange(n_nodes), jnp.arange(n_nodes)].set(1.0)  # self-loops
    batch_seg = jnp.repeat(jnp.arange(n_graphs, dtype=jnp.int32), per)
    one_hot = (batch_seg[None, :] == jnp.arange(n_graphs)[:, None]).astype(jnp.float32)
    seg_norm = one_hot / jnp.sum(one_hot, axis=1, keepdims=True)     # [B, N]
    return edge_index, adj, batch_seg, seg_norm


if __name__ == "__main__":
    key = jax.random.PRNGKey(0)
    k_param, k_x = jax.random.split(key)
    params = init_params(k_param)
    packed = pack_params(params)

    x = jax.random.normal(k_x, (N_NODES, NODE_FEAT), jnp.float32)
    edge_index, adj, batch_seg, seg_norm = build_graph(N_NODES, N_GRAPHS)

    fwd = jax.jit(xasnet_gat_forward)
    out = fwd(packed, x, adj, seg_norm)
    out = jax.block_until_ready(out)

    assert out.shape == (N_GRAPHS, TARGETS), out.shape
    assert bool(jnp.all(jnp.isfinite(out)))
    print("KERNEL_OK")
</pallas_src>

<mosaic_0001>
module attributes {stable_mosaic.version = 11 : i64} {
  func.func @_xasnet_kernel(%arg0: memref<40x16xf32, #tpu.memory_space<vmem>>, %arg1: memref<1104x128xf32, #tpu.memory_space<vmem>>, %arg2: memref<8x128xf32, #tpu.memory_space<vmem>>) attributes {dimension_semantics = [], scalar_prefetch = 0 : i64, scratch_operands = 0 : i64, tpu.core_type = #tpu.core_type<tc>} {
    %c0 = arith.constant 0 : index
    %c0_0 = arith.constant 0 : index
    %0 = vector.load %arg0[%c0, %c0_0] : memref<40x16xf32, #tpu.memory_space<vmem>>, vector<16x16xf32>
    %c16 = arith.constant 16 : index
    %c0_1 = arith.constant 0 : index
    %1 = vector.load %arg0[%c16, %c0_1] : memref<40x16xf32, #tpu.memory_space<vmem>>, vector<16x16xf32>
    %c32 = arith.constant 32 : index
    %c0_2 = arith.constant 0 : index
    %2 = vector.load %arg0[%c32, %c0_2] : memref<40x16xf32, #tpu.memory_space<vmem>>, vector<8x16xf32>
    %cst = arith.constant 1.000000e+00 : f32
    %3 = vector.broadcast %cst : f32 to vector<16x16xf32>
    %4 = arith.subf %1, %3 : vector<16x16xf32>
    %cst_3 = arith.constant 1.000000e+09 : f32
    %5 = vector.broadcast %cst_3 : f32 to vector<16x16xf32>
    %6 = arith.mulf %4, %5 : vector<16x16xf32>
    %7 = tpu.concatenate %6, %6 in 0 : vector<16x16xf32>, vector<16x16xf32> -> vector<32x16xf32>
    %c0_4 = arith.constant 0 : index
    %c0_5 = arith.constant 0 : index
    %8 = vector.load %arg1[%c0_4, %c0_5] : memref<1104x128xf32, #tpu.memory_space<vmem>>, vector<16x16xf32>
    %cst_6 = arith.constant dense<0.000000e+00> : vector<16x16xf32>
    %9 = tpu.matmul %0, %8, %cst_6 {dimension_numbers = #tpu.dot_dimension_numbers<[1], [0], [0], [1], [0, 0, 1, 1], [], []>} : vector<16x16xf32>, vector<16x16xf32>, vector<16x16xf32> -> vector<16x16xf32>
    %c16_7 = arith.constant 16 : index
    %c0_8 = arith.constant 0 : index
    %10 = vector.load %arg1[%c16_7, %c0_8] : memref<1104x128xf32, #tpu.memory_space<vmem>>, vector<1x16xf32>
    %11 = vector.broadcast %10 : vector<1x16xf32> to vector<16x16xf32>
    %12 = arith.addf %9, %11 : vector<16x16xf32>
    %cst_9 = arith.constant 0.000000e+00 : f32
    %13 = vector.broadcast %cst_9 : f32 to vector<16x16xf32>
    %14 = arith.maximumf %12, %13 : vector<16x16xf32>
    %c24 = arith.constant 24 : index
    %c0_10 = arith.constant 0 : index
    %15 = vector.load %arg1[%c24, %c0_10] : memref<1104x128xf32, #tpu.memory_space<vmem>>, vector<16x16xf32>
    %cst_11 = arith.constant dense<0.000000e+00> : vector<16x16xf32>
    %16 = tpu.matmul %14, %15, %cst_11 {dimension_numbers = #tpu.dot_dimension_numbers<[1], [0], [0], [1], [0, 0, 1, 1], [], []>} : vector<16x16xf32>, vector<16x16xf32>, vector<16x16xf32> -> vector<16x16xf32>
    %c40 = arith.constant 40 : index
    %c0_12 = arith.constant 0 : index
    %17 = vector.load %arg1[%c40, %c0_12] : memref<1104x128xf32, #tpu.memory_space<vmem>>, vector<1x16xf32>
    %18 = vector.broadcast %17 : vector<1x16xf32> to vector<16x16xf32>
    %19 = arith.addf %16, %18 : vector<16x16xf32>
    %cst_13 = arith.constant 0.000000e+00 : f32
    %20 = vector.broadcast %cst_13 : f32 to vector<16x16xf32>
    %21 = arith.maximumf %19, %20 : vector<16x16xf32>
    %c48 = arith.constant 48 : index
    %c0_14 = arith.constant 0 : index
    %22 = vector.load %arg1[%c48, %c0_14] : memref<1104x128xf32, #tpu.memory_space<vmem>>, vector<16x16xf32>
    %cst_15 = arith.constant dense<0.000000e+00> : vector<16x16xf32>
    %23 = tpu.matmul %21, %22, %cst_15 {dimension_numbers = #tpu.dot_dimension_numbers<[1], [0], [0], [1], [0, 0, 1, 1], [], []>} : vector<16x16xf32>, vector<16x16xf32>, vector<16x16xf32> -> vector<16x16xf32>
    %c64 = arith.constant 64 : index
    %c0_16 = arith.constant 0 : index
    %24 = vector.load %arg1[%c64, %c0_16] : memref<1104x128xf32, #tpu.memory_space<vmem>>, vector<1x16xf32>
    %25 = vector.broadcast %24 : vector<1x16xf32> to vector<16x16xf32>
    %26 = arith.addf %23, %25 : vector<16x16xf32>
    %cst_17 = arith.constant 0.000000e+00 : f32
    %27 = vector.broadcast %cst_17 : f32 to vector<16x16xf32>
    %28 = arith.maximumf %26, %27 : vector<16x16xf32>
    %c72 = arith.constant 72 : index
    %c0_18 = arith.constant 0 : index
    %29 = vector.load %arg1[%c72, %c0_18] : memref<1104x128xf32, #tpu.memory_space<vmem>>, vector<16x16xf32>
    %cst_19 = arith.constant dense<0.000000e+00> : vector<16x16xf32>
    %30 = tpu.matmul %28, %29, %cst_19 {dimension_numbers = #tpu.dot_dimension_numbers<[1], [0], [0], [1], [0, 0, 1, 1], [], []>} : vector<16x16xf32>, vector<16x16xf32>, vector<16x16xf32> -> vector<16x16xf32>
    %c88 = arith.constant 88 : index
    %c0_20 = arith.constant 0 : index
    %31 = vector.load %arg1[%c88, %c0_20] : memref<1104x128xf32, #tpu.memory_space<vmem>>, vector<1x16xf32>
    %32 = vector.broadcast %31 : vector<1x16xf32> to vector<16x16xf32>
    %33 = arith.addf %30, %32 : vector<16x16xf32>
    %cst_21 = arith.constant 0.000000e+00 : f32
    %34 = vector.broadcast %cst_21 : f32 to vector<16x16xf32>
    %35 = arith.maximumf %33, %34 : vector<16x16xf32>
    %c96 = arith.constant 96 : index
    %c0_22 = arith.constant 0 : index
    %36 = vector.load %arg1[%c96, %c0_22] : memref<1104x128xf32, #tpu.memory_space<vmem>>, vector<16x16xf32>
    %cst_23 = arith.constant dense<0.000000e+00> : vector<16x16xf32>
    %37 = tpu.matmul %35, %36, %cst_23 {dimension_numbers = #tpu.dot_dimension_numbers<[1], [0], [0], [1], [0, 0, 1, 1], [], []>} : vector<16x16xf32>, vector<16x16xf32>, vector<16x16xf32> -> vector<16x16xf32>
    %c112 = arith.constant 112 : index
    %c0_24 = arith.constant 0 : index
    %38 = vector.load %arg1[%c112, %c0_24] : memref<1104x128xf32, #tpu.memory_space<vmem>>, vector<1x16xf32>
    %39 = vector.broadcast %38 : vector<1x16xf32> to vector<16x16xf32>
    %40 = arith.addf %37, %39 : vector<16x16xf32>
    %cst_25 = arith.constant 0.000000e+00 : f32
    %41 = vector.broadcast %cst_25 : f32 to vector<16x16xf32>
    %42 = arith.maximumf %40, %41 : vector<16x16xf32>
    %43 = arith.addf %14, %42 : vector<16x16xf32>
    %c120 = arith.constant 120 : index
    %c0_26 = arith.constant 0 : index
    %44 = vector.load %arg1[%c120, %c0_26] : memref<1104x128xf32, #tpu.memory_space<vmem>>, vector<16x68xf32>
    %cst_27 = arith.constant dense<0.000000e+00> : vector<16x68xf32>
    %45 = tpu.matmul %43, %44, %cst_27 {dimension_numbers = #tpu.dot_dimension_numbers<[1], [0], [0], [1], [0, 0, 1, 1], [], []>} : vector<16x16xf32>, vector<16x68xf32>, vector<16x68xf32> -> vector<16x68xf32>
    %46 = vector.extract_strided_slice %45 {offsets = [0, 0], sizes = [16, 64], strides = [1, 1]} : vector<16x68xf32> to vector<16x64xf32>
    %47 = vector.extract_strided_slice %45 {offsets = [0, 64], sizes = [16, 4], strides = [1, 1]} : vector<16x68xf32> to vector<16x4xf32>
    %48 = vector.extract_strided_slice %47 {offsets = [0, 0], sizes = [16, 1], strides = [1, 1]} : vector<16x4xf32> to vector<16x1xf32>
    %49 = vector.shape_cast %48 : vector<16x1xf32> to vector<16xf32>
    %50 = vector.shape_cast %49 : vector<16xf32> to vector<1x16xf32>
    %51 = vector.shape_cast %50 : vector<1x16xf32> to vector<1x16xf32>
    %52 = vector.broadcast %51 : vector<1x16xf32> to vector<16x16xf32>
    %53 = vector.extract_strided_slice %47 {offsets = [0, 1], sizes = [16, 1], strides = [1, 1]} : vector<16x4xf32> to vector<16x1xf32>
    %54 = vector.shape_cast %53 : vector<16x1xf32> to vector<16xf32>
    %55 = vector.shape_cast %54 : vector<16xf32> to vector<1x16xf32>
    %56 = vector.shape_cast %55 : vector<1x16xf32> to vector<1x16xf32>
    %57 = vector.broadcast %56 : vector<1x16xf32> to vector<16x16xf32>
    %58 = tpu.concatenate %52, %57 in 0 : vector<16x16xf32>, vector<16x16xf32> -> vector<32x16xf32>
    %59 = vector.extract_strided_slice %47 {offsets = [0, 2], sizes = [16, 1], strides = [1, 1]} : vector<16x4xf32> to vector<16x1xf32>
    %60 = vector.extract_strided_slice %47 {offsets = [0, 3], sizes = [16, 1], strides = [1, 1]} : vector<16x4xf32> to vector<16x1xf32>
    %61 = tpu.concatenate %59, %60 in 0 : vector<16x1xf32>, vector<16x1xf32> -> vector<32x1xf32>
    %62 = vector.broadcast %61 : vector<32x1xf32> to vector<32x16xf32>
    %63 = arith.addf %62, %58 : vector<32x16xf32>
    %cst_28 = arith.constant 2.000000e-01 : f32
    %64 = vector.broadcast %cst_28 : f32 to vector<32x16xf32>
    %65 = arith.mulf %64, %63 : vector<32x16xf32>
    %66 = arith.maximumf %63, %65 : vector<32x16xf32>
    %67 = arith.addf %66, %7 : vector<32x16xf32>
    %cst_29 = arith.constant dense<0xFF800000> : vector<32xf32>
    %68 = vector.multi_reduction <maximumf>, %67, %cst_29 [1] : vector<32x16xf32> to vector<32xf32>
    %69 = vector.shape_cast %68 : vector<32xf32> to vector<32x1xf32>
    %70 = vector.broadcast %69 : vector<32x1xf32> to vector<32x16xf32>
    %71 = arith.subf %67, %70 : vector<32x16xf32>
    %72 = math.exp %71 : vector<32x16xf32>
    %cst_30 = arith.constant dense<0.000000e+00> : vector<32xf32>
    %73 = vector.multi_reduction <add>, %72, %cst_30 [1] : vector<32x16xf32> to vector<32xf32>
    %74 = vector.shape_cast %73 : vector<32xf32> to vector<32x1xf32>
    %75 = vector.broadcast %74 : vector<32x1xf32> to vector<32x16xf32>
    %76 = arith.divf %72, %75 : vector<32x16xf32>
    %77 = vector.extract_strided_slice %76 {offsets = [0, 0], sizes = [16, 16], strides = [1, 1]} : vector<32x16xf32> to vector<16x16xf32>
    %78 = vector.extract_strided_slice %46 {offsets = [0, 0], sizes = [16, 32], strides = [1, 1]} : vector<16x64xf32> to vector<16x32xf32>
    %cst_31 = arith.constant dense<0.000000e+00> : vector<16x32xf32>
    %79 = tpu.matmul %77, %78, %cst_31 {dimension_numbers = #tpu.dot_dimension_numbers<[1], [0], [0], [1], [0, 0, 1, 1], [], []>} : vector<16x16xf32>, vector<16x32xf32>, vector<16x32xf32> -> vector<16x32xf32>
    %80 = vector.extract_strided_slice %76 {offsets = [16, 0], sizes = [16, 16], strides = [1, 1]} : vector<32x16xf32> to vector<16x16xf32>
    %81 = vector.extract_strided_slice %46 {offsets = [0, 32], sizes = [16, 32], strides = [1, 1]} : vector<16x64xf32> to vector<16x32xf32>
    %cst_32 = arith.constant dense<0.000000e+00> : vector<16x32xf32>
    %82 = tpu.matmul %80, %81, %cst_32 {dimension_numbers = #tpu.dot_dimension_numbers<[1], [0], [0], [1], [0, 0, 1, 1], [], []>} : vector<16x16xf32>, vector<16x32xf32>, vector<16x32xf32> -> vector<16x32xf32>
    %83 = tpu.concatenate %79, %82 in 1 : vector<16x32xf32>, vector<16x32xf32> -> vector<16x64xf32>
    %c136 = arith.constant 136 : index
    %c0_33 = arith.constant 0 : index
    %84 = vector.load %arg1[%c136, %c0_33] : memref<1104x128xf32, #tpu.memory_space<vmem>>, vector<1x64xf32>
    %85 = vector.broadcast %84 : vector<1x64xf32> to vector<16x64xf32>
    %86 = arith.addf %83, %85 : vector<16x64xf32>
    %cst_34 = arith.constant 0.000000e+00 : f32
    %87 = vector.broadcast %cst_34 : f32 to vector<16x64xf32>
    %88 = arith.maximumf %86, %87 : vector<16x64xf32>
    %c144 = arith.constant 144 : index
    %c0_35 = arith.constant 0 : index
    %89 = vector.load %arg1[%c144, %c0_35] : memref<1104x128xf32, #tpu.memory_space<vmem>>, vector<64x68xf32>
    %cst_36 = arith.constant dense<0.000000e+00> : vector<16x68xf32>
    %90 = tpu.matmul %88, %89, %cst_36 {dimension_numbers = #tpu.dot_dimension_numbers<[1], [0], [0], [1], [0, 0, 1, 1], [], []>} : vector<16x64xf32>, vector<64x68xf32>, vector<16x68xf32> -> vector<16x68xf32>
    %91 = vector.extract_strided_slice %90 {offsets = [0, 0], sizes = [16, 64], strides = [1, 1]} : vector<16x68xf32> to vector<16x64xf32>
    %92 = vector.extract_strided_slice %90 {offsets = [0, 64], sizes = [16, 4], strides = [1, 1]} : vector<16x68xf32> to vector<16x4xf32>
    %93 = vector.extract_strided_slice %92 {offsets = [0, 0], sizes = [16, 1], strides = [1, 1]} : vector<16x4xf32> to vector<16x1xf32>
    %94 = vector.shape_cast %93 : vector<16x1xf32> to vector<16xf32>
    %95 = vector.shape_cast %94 : vector<16xf32> to vector<1x16xf32>
    %96 = vector.shape_cast %95 : vector<1x16xf32> to vector<1x16xf32>
    %97 = vector.broadcast %96 : vector<1x16xf32> to vector<16x16xf32>
    %98 = vector.extract_strided_slice %92 {offsets = [0, 1], sizes = [16, 1], strides = [1, 1]} : vector<16x4xf32> to vector<16x1xf32>
    %99 = vector.shape_cast %98 : vector<16x1xf32> to vector<16xf32>
    %100 = vector.shape_cast %99 : vector<16xf32> to vector<1x16xf32>
    %101 = vector.shape_cast %100 : vector<1x16xf32> to vector<1x16xf32>
    %102 = vector.broadcast %101 : vector<1x16xf32> to vector<16x16xf32>
    %103 = tpu.concatenate %97, %102 in 0 : vector<16x16xf32>, vector<16x16xf32> -> vector<32x16xf32>
    %104 = vector.extract_strided_slice %92 {offsets = [0, 2], sizes = [16, 1], strides = [1, 1]} : vector<16x4xf32> to vector<16x1xf32>
    %105 = vector.extract_strided_slice %92 {offsets = [0, 3], sizes = [16, 1], strides = [1, 1]} : vector<16x4xf32> to vector<16x1xf32>
    %106 = tpu.concatenate %104, %105 in 0 : vector<16x1xf32>, vector<16x1xf32> -> vector<32x1xf32>
    %107 = vector.broadcast %106 : vector<32x1xf32> to vector<32x16xf32>
    %108 = arith.addf %107, %103 : vector<32x16xf32>
    %cst_37 = arith.constant 2.000000e-01 : f32
    %109 = vector.broadcast %cst_37 : f32 to vector<32x16xf32>
    %110 = arith.mulf %109, %108 : vector<32x16xf32>
    %111 = arith.maximumf %108, %110 : vector<32x16xf32>
    %112 = arith.addf %111, %7 : vector<32x16xf32>
    %cst_38 = arith.constant dense<0xFF800000> : vector<32xf32>
    %113 = vector.multi_reduction <maximumf>, %112, %cst_38 [1] : vector<32x16xf32> to vector<32xf32>
    %114 = vector.shape_cast %113 : vector<32xf32> to vector<32x1xf32>
    %115 = vector.broadcast %114 : vector<32x1xf32> to vector<32x16xf32>
    %116 = arith.subf %112, %115 : vector<32x16xf32>
    %117 = math.exp %116 : vector<32x16xf32>
    %cst_39 = arith.constant dense<0.000000e+00> : vector<32xf32>
    %118 = vector.multi_reduction <add>, %117, %cst_39 [1] : vector<32x16xf32> to vector<32xf32>
    %119 = vector.shape_cast %118 : vector<32xf32> to vector<32x1xf32>
    %120 = vector.broadcast %119 : vector<32x1xf32> to vector<32x16xf32>
    %121 = arith.divf %117, %120 : vector<32x16xf32>
    %122 = vector.extract_strided_slice %121 {offsets = [0, 0], sizes = [16, 16], strides = [1, 1]} : vector<32x16xf32> to vector<16x16xf32>
    %123 = vector.extract_strided_slice %91 {offsets = [0, 0], sizes = [16, 32], strides = [1, 1]} : vector<16x64xf32> to vector<16x32xf32>
    %cst_40 = arith.constant dense<0.000000e+00> : vector<16x32xf32>
    %124 = tpu.matmul %122, %123, %cst_40 {dimension_numbers = #tpu.dot_dimension_numbers<[1], [0], [0], [1], [0, 0, 1, 1], [], []>} : vector<16x16xf32>, vector<16x32xf32>, vector<16x32xf32> -> vector<16x32xf32>
    %125 = vector.extract_strided_slice %121 {offsets = [16, 0], sizes = [16, 16], strides = [1, 1]} : vector<32x16xf32> to vector<16x16xf32>
    %126 = vector.extract_strided_slice %91 {offsets = [0, 32], sizes = [16, 32], strides = [1, 1]} : vector<16x64xf32> to vector<16x32xf32>
    %cst_41 = arith.constant dense<0.000000e+00> : vector<16x32xf32>
    %127 = tpu.matmul %125, %126, %cst_41 {dimension_numbers = #tpu.dot_dimension_numbers<[1], [0], [0], [1], [0, 0, 1, 1], [], []>} : vector<16x16xf32>, vector<16x32xf32>, vector<16x32xf32> -> vector<16x32xf32>
    %128 = tpu.concatenate %124, %127 in 1 : vector<16x32xf32>, vector<16x32xf32> -> vector<16x64xf32>
    %c208 = arith.constant 208 : index
    %c0_42 = arith.constant 0 : index
    %129 = vector.load %arg1[%c208, %c0_42] : memref<1104x128xf32, #tpu.memory_space<vmem>>, vector<1x64xf32>
    %130 = vector.broadcast %129 : vector<1x64xf32> to vector<16x64xf32>
    %131 = arith.addf %128, %130 : vector<16x64xf32>
    %cst_43 = arith.constant 0.000000e+00 : f32
    %132 = vector.broadcast %cst_43 : f32 to vector<16x64xf32>
    %133 = arith.maximumf %131, %132 : vector<16x64xf32>
    %c216 = arith.constant 216 : index
    %c0_44 = arith.constant 0 : index
    %134 = vector.load %arg1[%c216, %c0_44] : memref<1104x128xf32, #tpu.memory_space<vmem>>, vector<64x68xf32>
    %cst_45 = arith.constant dense<0.000000e+00> : vector<16x68xf32>
    %135 = tpu.matmul %133, %134, %cst_45 {dimension_numbers = #tpu.dot_dimension_numbers<[1], [0], [0], [1], [0, 0, 1, 1], [], []>} : vector<16x64xf32>, vector<64x68xf32>, vector<16x68xf32> -> vector<16x68xf32>
    %136 = vector.extract_strided_slice %135 {offsets = [0, 0], sizes = [16, 64], strides = [1, 1]} : vector<16x68xf32> to vector<16x64xf32>
    %137 = vector.extract_strided_slice %135 {offsets = [0, 64], sizes = [16, 4], strides = [1, 1]} : vector<16x68xf32> to vector<16x4xf32>
    %138 = vector.extract_strided_slice %137 {offsets = [0, 0], sizes = [16, 1], strides = [1, 1]} : vector<16x4xf32> to vector<16x1xf32>
    %139 = vector.shape_cast %138 : vector<16x1xf32> to vector<16xf32>
    %140 = vector.shape_cast %139 : vector<16xf32> to vector<1x16xf32>
    %141 = vector.shape_cast %140 : vector<1x16xf32> to vector<1x16xf32>
    %142 = vector.broadcast %141 : vector<1x16xf32> to vector<16x16xf32>
    %143 = vector.extract_strided_slice %137 {offsets = [0, 1], sizes = [16, 1], strides = [1, 1]} : vector<16x4xf32> to vector<16x1xf32>
    %144 = vector.shape_cast %143 : vector<16x1xf32> to vector<16xf32>
    %145 = vector.shape_cast %144 : vector<16xf32> to vector<1x16xf32>
    %146 = vector.shape_cast %145 : vector<1x16xf32> to vector<1x16xf32>
    %147 = vector.broadcast %146 : vector<1x16xf32> to vector<16x16xf32>
    %148 = tpu.concatenate %142, %147 in 0 : vector<16x16xf32>, vector<16x16xf32> -> vector<32x16xf32>
    %149 = vector.extract_strided_slice %137 {offsets = [0, 2], sizes = [16, 1], strides = [1, 1]} : vector<16x4xf32> to vector<16x1xf32>
    %150 = vector.extract_strided_slice %137 {offsets = [0, 3], sizes = [16, 1], strides = [1, 1]} : vector<16x4xf32> to vector<16x1xf32>
    %151 = tpu.concatenate %149, %150 in 0 : vector<16x1xf32>, vector<16x1xf32> -> vector<32x1xf32>
    %152 = vector.broadcast %151 : vector<32x1xf32> to vector<32x16xf32>
    %153 = arith.addf %152, %148 : vector<32x16xf32>
    %cst_46 = arith.constant 2.000000e-01 : f32
    %154 = vector.broadcast %cst_46 : f32 to vector<32x16xf32>
    %155 = arith.mulf %154, %153 : vector<32x16xf32>
    %156 = arith.maximumf %153, %155 : vector<32x16xf32>
    %157 = arith.addf %156, %7 : vector<32x16xf32>
    %cst_47 = arith.constant dense<0xFF800000> : vector<32xf32>
    %158 = vector.multi_reduction <maximumf>, %157, %cst_47 [1] : vector<32x16xf32> to vector<32xf32>
    %159 = vector.shape_cast %158 : vector<32xf32> to vector<32x1xf32>
    %160 = vector.broadcast %159 : vector<32x1xf32> to vector<32x16xf32>
    %161 = arith.subf %157, %160 : vector<32x16xf32>
    %162 = math.exp %161 : vector<32x16xf32>
    %cst_48 = arith.constant dense<0.000000e+00> : vector<32xf32>
    %163 = vector.multi_reduction <add>, %162, %cst_48 [1] : vector<32x16xf32> to vector<32xf32>
    %164 = vector.shape_cast %163 : vector<32xf32> to vector<32x1xf32>
    %165 = vector.broadcast %164 : vector<32x1xf32> to vector<32x16xf32>
    %166 = arith.divf %162, %165 : vector<32x16xf32>
    %167 = vector.extract_strided_slice %166 {offsets = [0, 0], sizes = [16, 16], strides = [1, 1]} : vector<32x16xf32> to vector<16x16xf32>
    %168 = vector.extract_strided_slice %136 {offsets = [0, 0], sizes = [16, 32], strides = [1, 1]} : vector<16x64xf32> to vector<16x32xf32>
    %cst_49 = arith.constant dense<0.000000e+00> : vector<16x32xf32>
    %169 = tpu.matmul %167, %168, %cst_49 {dimension_numbers = #tpu.dot_dimension_numbers<[1], [0], [0], [1], [0, 0, 1, 1], [], []>} : vector<16x16xf32>, vector<16x32xf32>, vector<16x32xf32> -> vector<16x32xf32>
    %170 = vector.extract_strided_slice %166 {offsets = [16, 0], sizes = [16, 16], strides = [1, 1]} : vector<32x16xf32> to vector<16x16xf32>
    %171 = vector.extract_strided_slice %136 {offsets = [0, 32], sizes = [16, 32], strides = [1, 1]} : vector<16x64xf32> to vector<16x32xf32>
    %cst_50 = arith.constant dense<0.000000e+00> : vector<16x32xf32>
    %172 = tpu.matmul %170, %171, %cst_50 {dimension_numbers = #tpu.dot_dimension_numbers<[1], [0], [0], [1], [0, 0, 1, 1], [], []>} : vector<16x16xf32>, vector<16x32xf32>, vector<16x32xf32> -> vector<16x32xf32>
    %173 = tpu.concatenate %169, %172 in 1 : vector<16x32xf32>, vector<16x32xf32> -> vector<16x64xf32>
    %c280 = arith.constant 280 : index
    %c0_51 = arith.constant 0 : index
    %174 = vector.load %arg1[%c280, %c0_51] : memref<1104x128xf32, #tpu.memory_space<vmem>>, vector<1x64xf32>
    %175 = vector.broadcast %174 : vector<1x64xf32> to vector<16x64xf32>
    %176 = arith.addf %173, %175 : vector<16x64xf32>
    %cst_52 = arith.constant 0.000000e+00 : f32
    %177 = vector.broadcast %cst_52 : f32 to vector<16x64xf32>
    %178 = arith.maximumf %176, %177 : vector<16x64xf32>
    %179 = tpu.concatenate %88, %133, %178 in 0 : vector<16x64xf32>, vector<16x64xf32>, vector<16x64xf32> -> vector<48x64xf32>
    %c360 = arith.constant 360 : index
    %c0_53 = arith.constant 0 : index
    %180 = vector.load %arg1[%c360, %c0_53] : memref<1104x128xf32, #tpu.memory_space<vmem>>, vector<64x128xf32>
    %cst_54 = arith.constant dense<0.000000e+00> : vector<48x128xf32>
    %181 = tpu.matmul %179, %180, %cst_54 {dimension_numbers = #tpu.dot_dimension_numbers<[1], [0], [0], [1], [0, 0, 1, 1], [], []>} : vector<48x64xf32>, vector<64x128xf32>, vector<48x128xf32> -> vector<48x128xf32>
    %c456 = arith.constant 456 : index
    %c0_55 = arith.constant 0 : index
    %182 = vector.load %arg1[%c456, %c0_55] : memref<1104x128xf32, #tpu.memory_space<vmem>>, vector<1x128xf32>
    %183 = vector.broadcast %182 : vector<1x128xf32> to vector<48x128xf32>
    %184 = arith.addf %181, %183 : vector<48x128xf32>
    %c464 = arith.constant 464 : index
    %c0_56 = arith.constant 0 : index
    %185 = vector.load %arg1[%c464, %c0_56] : memref<1104x128xf32, #tpu.memory_space<vmem>>, vector<64x128xf32>
    %cst_57 = arith.constant dense<0.000000e+00> : vector<48x128xf32>
    %186 = tpu.matmul %179, %185, %cst_57 {dimension_numbers = #tpu.dot_dimension_numbers<[1], [0], [0], [1], [0, 0, 1, 1], [], []>} : vector<48x64xf32>, vector<64x128xf32>, vector<48x128xf32> -> vector<48x128xf32>
    %c560 = arith.constant 560 : index
    %c0_58 = arith.constant 0 : index
    %187 = vector.load %arg1[%c560, %c0_58] : memref<1104x128xf32, #tpu.memory_space<vmem>>, vector<1x128xf32>
    %188 = vector.broadcast %187 : vector<1x128xf32> to vector<48x128xf32>
    %189 = arith.addf %186, %188 : vector<48x128xf32>
    %c424 = arith.constant 424 : index
    %c0_59 = arith.constant 0 : index
    %190 = vector.load %arg1[%c424, %c0_59] : memref<1104x128xf32, #tpu.memory_space<vmem>>, vector<32x128xf32>
    %c528 = arith.constant 528 : index
    %c0_60 = arith.constant 0 : index
    %191 = vector.load %arg1[%c528, %c0_60] : memref<1104x128xf32, #tpu.memory_space<vmem>>, vector<32x128xf32>
    %cst_61 = arith.constant 0.000000e+00 : f32
    %192 = vector.broadcast %cst_61 : f32 to vector<16x32xf32>
    %cst_62 = arith.constant 0.000000e+00 : f32
    %193 = vector.broadcast %cst_62 : f32 to vector<16x32xf32>
    %cst_63 = arith.constant 0.000000e+00 : f32
    %194 = vector.broadcast %cst_63 : f32 to vector<32x32xf32>
    %195 = vector.extract_strided_slice %184 {offsets = [0, 0], sizes = [16, 128], strides = [1, 1]} : vector<48x128xf32> to vector<16x128xf32>
    %cst_64 = arith.constant dense<0.000000e+00> : vector<16x128xf32>
    %196 = tpu.matmul %192, %190, %cst_64 {dimension_numbers = #tpu.dot_dimension_numbers<[1], [0], [0], [1], [0, 0, 1, 1], [], []>} : vector<16x32xf32>, vector<32x128xf32>, vector<16x128xf32> -> vector<16x128xf32>
    %197 = arith.addf %195, %196 : vector<16x128xf32>
    %198 = vector.extract_strided_slice %189 {offsets = [32, 0], sizes = [16, 128], strides = [1, 1]} : vector<48x128xf32> to vector<16x128xf32>
    %cst_65 = arith.constant dense<0.000000e+00> : vector<16x128xf32>
    %199 = tpu.matmul %193, %191, %cst_65 {dimension_numbers = #tpu.dot_dimension_numbers<[1], [0], [0], [1], [0, 0, 1, 1], [], []>} : vector<16x32xf32>, vector<32x128xf32>, vector<16x128xf32> -> vector<16x128xf32>
    %200 = arith.addf %198, %199 : vector<16x128xf32>
    %201 = tpu.concatenate %197, %200 in 0 : vector<16x128xf32>, vector<16x128xf32> -> vector<32x128xf32>
    %202 = vector.extract_strided_slice %201 {offsets = [0, 0], sizes = [32, 96], strides = [1, 1]} : vector<32x128xf32> to vector<32x96xf32>
    %203 = arith.negf %202 : vector<32x96xf32>
    %204 = math.exp %203 : vector<32x96xf32>
    %cst_66 = arith.constant 1.000000e+00 : f32
    %205 = vector.broadcast %cst_66 : f32 to vector<32x96xf32>
    %206 = arith.addf %205, %204 : vector<32x96xf32>
    %207 = arith.divf %205, %206 : vector<32x96xf32>
    %208 = vector.extract_strided_slice %201 {offsets = [0, 96], sizes = [32, 32], strides = [1, 1]} : vector<32x128xf32> to vector<32x32xf32>
    %209 = math.tanh %208 : vector<32x32xf32>
    %210 = vector.extract_strided_slice %207 {offsets = [0, 32], sizes = [32, 32], strides = [1, 1]} : vector<32x96xf32> to vector<32x32xf32>
    %211 = arith.mulf %210, %194 : vector<32x32xf32>
    %212 = vector.extract_strided_slice %207 {offsets = [0, 0], sizes = [32, 32], strides = [1, 1]} : vector<32x96xf32> to vector<32x32xf32>
    %213 = arith.mulf %212, %209 : vector<32x32xf32>
    %214 = arith.addf %211, %213 : vector<32x32xf32>
    %215 = vector.extract_strided_slice %207 {offsets = [0, 64], sizes = [32, 32], strides = [1, 1]} : vector<32x96xf32> to vector<32x32xf32>
    %216 = math.tanh %214 : vector<32x32xf32>
    %217 = arith.mulf %215, %216 : vector<32x32xf32>
    %218 = vector.extract_strided_slice %217 {offsets = [0, 0], sizes = [16, 32], strides = [1, 1]} : vector<32x32xf32> to vector<16x32xf32>
    %219 = vector.extract_strided_slice %217 {offsets = [16, 0], sizes = [16, 32], strides = [1, 1]} : vector<32x32xf32> to vector<16x32xf32>
    %220 = vector.extract_strided_slice %184 {offsets = [16, 0], sizes = [16, 128], strides = [1, 1]} : vector<48x128xf32> to vector<16x128xf32>
    %cst_67 = arith.constant dense<0.000000e+00> : vector<16x128xf32>
    %221 = tpu.matmul %218, %190, %cst_67 {dimension_numbers = #tpu.dot_dimension_numbers<[1], [0], [0], [1], [0, 0, 1, 1], [], []>} : vector<16x32xf32>, vector<32x128xf32>, vector<16x128xf32> -> vector<16x128xf32>
    %222 = arith.addf %220, %221 : vector<16x128xf32>
    %223 = vector.extract_strided_slice %189 {offsets = [16, 0], sizes = [16, 128], strides = [1, 1]} : vector<48x128xf32> to vector<16x128xf32>
    %cst_68 = arith.constant dense<0.000000e+00> : vector<16x128xf32>
    %224 = tpu.matmul %219, %191, %cst_68 {dimension_numbers = #tpu.dot_dimension_numbers<[1], [0], [0], [1], [0, 0, 1, 1], [], []>} : vector<16x32xf32>, vector<32x128xf32>, vector<16x128xf32> -> vector<16x128xf32>
    %225 = arith.addf %223, %224 : vector<16x128xf32>
    %226 = tpu.concatenate %222, %225 in 0 : vector<16x128xf32>, vector<16x128xf32> -> vector<32x128xf32>
    %227 = vector.extract_strided_slice %226 {offsets = [0, 0], sizes = [32, 96], strides = [1, 1]} : vector<32x128xf32> to vector<32x96xf32>
    %228 = arith.negf %227 : vector<32x96xf32>
    %229 = math.exp %228 : vector<32x96xf32>
    %cst_69 = arith.constant 1.000000e+00 : f32
    %230 = vector.broadcast %cst_69 : f32 to vector<32x96xf32>
    %231 = arith.addf %230, %229 : vector<32x96xf32>
    %232 = arith.divf %230, %231 : vector<32x96xf32>
    %233 = vector.extract_strided_slice %226 {offsets = [0, 96], sizes = [32, 32], strides = [1, 1]} : vector<32x128xf32> to vector<32x32xf32>
    %234 = math.tanh %233 : vector<32x32xf32>
    %235 = vector.extract_strided_slice %232 {offsets = [0, 32], sizes = [32, 32], strides = [1, 1]} : vector<32x96xf32> to vector<32x32xf32>
    %236 = arith.mulf %235, %214 : vector<32x32xf32>
    %237 = vector.extract_strided_slice %232 {offsets = [0, 0], sizes = [32, 32], strides = [1, 1]} : vector<32x96xf32> to vector<32x32xf32>
    %238 = arith.mulf %237, %234 : vector<32x32xf32>
    %239 = arith.addf %236, %238 : vector<32x32xf32>
    %240 = vector.extract_strided_slice %232 {offsets = [0, 64], sizes = [32, 32], strides = [1, 1]} : vector<32x96xf32> to vector<32x32xf32>
    %241 = math.tanh %239 : vector<32x32xf32>
    %242 = arith.mulf %240, %241 : vector<32x32xf32>
    %243 = vector.extract_strided_slice %242 {offsets = [0, 0], sizes = [16, 32], strides = [1, 1]} : vector<32x32xf32> to vector<16x32xf32>
    %244 = vector.extract_strided_slice %242 {offsets = [16, 0], sizes = [16, 32], strides = [1, 1]} : vector<32x32xf32> to vector<16x32xf32>
    %245 = vector.extract_strided_slice %184 {offsets = [32, 0], sizes = [16, 128], strides = [1, 1]} : vector<48x128xf32> to vector<16x128xf32>
    %cst_70 = arith.constant dense<0.000000e+00> : vector<16x128xf32>
    %246 = tpu.matmul %243, %190, %cst_70 {dimension_numbers = #tpu.dot_dimension_numbers<[1], [0], [0], [1], [0, 0, 1, 1], [], []>} : vector<16x32xf32>, vector<32x128xf32>, vector<16x128xf32> -> vector<16x128xf32>
    %247 = arith.addf %245, %246 : vector<16x128xf32>
    %248 = vector.extract_strided_slice %189 {offsets = [0, 0], sizes = [16, 128], strides = [1, 1]} : vector<48x128xf32> to vector<16x128xf32>
    %cst_71 = arith.constant dense<0.000000e+00> : vector<16x128xf32>
    %249 = tpu.matmul %244, %191, %cst_71 {dimension_numbers = #tpu.dot_dimension_numbers<[1], [0], [0], [1], [0, 0, 1, 1], [], []>} : vector<16x32xf32>, vector<32x128xf32>, vector<16x128xf32> -> vector<16x128xf32>
    %250 = arith.addf %248, %249 : vector<16x128xf32>
    %251 = tpu.concatenate %247, %250 in 0 : vector<16x128xf32>, vector<16x128xf32> -> vector<32x128xf32>
    %252 = vector.extract_strided_slice %251 {offsets = [0, 0], sizes = [32, 96], strides = [1, 1]} : vector<32x128xf32> to vector<32x96xf32>
    %253 = arith.negf %252 : vector<32x96xf32>
    %254 = math.exp %253 : vector<32x96xf32>
    %cst_72 = arith.constant 1.000000e+00 : f32
    %255 = vector.broadcast %cst_72 : f32 to vector<32x96xf32>
    %256 = arith.addf %255, %254 : vector<32x96xf32>
    %257 = arith.divf %255, %256 : vector<32x96xf32>
    %258 = vector.extract_strided_slice %251 {offsets = [0, 96], sizes = [32, 32], strides = [1, 1]} : vector<32x128xf32> to vector<32x32xf32>
    %259 = math.tanh %258 : vector<32x32xf32>
    %260 = vector.extract_strided_slice %257 {offsets = [0, 32], sizes = [32, 32], strides = [1, 1]} : vector<32x96xf32> to vector<32x32xf32>
    %261 = arith.mulf %260, %239 : vector<32x32xf32>
    %262 = vector.extract_strided_slice %257 {offsets = [0, 0], sizes = [32, 32], strides = [1, 1]} : vector<32x96xf32> to vector<32x32xf32>
    %263 = arith.mulf %262, %259 : vector<32x32xf32>
    %264 = arith.addf %261, %263 : vector<32x32xf32>
    %265 = vector.extract_strided_slice %257 {offsets = [0, 64], sizes = [32, 32], strides = [1, 1]} : vector<32x96xf32> to vector<32x32xf32>
    %266 = math.tanh %264 : vector<32x32xf32>
    %267 = arith.mulf %265, %266 : vector<32x32xf32>
    %268 = vector.extract_strided_slice %267 {offsets = [0, 0], sizes = [16, 32], strides = [1, 1]} : vector<32x32xf32> to vector<16x32xf32>
    %269 = vector.extract_strided_slice %267 {offsets = [16, 0], sizes = [16, 32], strides = [1, 1]} : vector<32x32xf32> to vector<16x32xf32>
    %270 = tpu.concatenate %218, %243, %268 in 0 : vector<16x32xf32>, vector<16x32xf32>, vector<16x32xf32> -> vector<48x32xf32>
    %271 = tpu.concatenate %269, %244, %219 in 0 : vector<16x32xf32>, vector<16x32xf32>, vector<16x32xf32> -> vector<48x32xf32>
    %272 = tpu.concatenate %270, %271 in 1 : vector<48x32xf32>, vector<48x32xf32> -> vector<48x64xf32>
    %c568 = arith.constant 568 : index
    %c0_73 = arith.constant 0 : index
    %273 = vector.load %arg1[%c568, %c0_73] : memref<1104x128xf32, #tpu.memory_space<vmem>>, vector<64x128xf32>
    %cst_74 = arith.constant dense<0.000000e+00> : vector<48x128xf32>
    %274 = tpu.matmul %272, %273, %cst_74 {dimension_numbers = #tpu.dot_dimension_numbers<[1], [0], [0], [1], [0, 0, 1, 1], [], []>} : vector<48x64xf32>, vector<64x128xf32>, vector<48x128xf32> -> vector<48x128xf32>
    %c664 = arith.constant 664 : index
    %c0_75 = arith.constant 0 : index
    %275 = vector.load %arg1[%c664, %c0_75] : memref<1104x128xf32, #tpu.memory_space<vmem>>, vector<1x128xf32>
    %276 = vector.broadcast %275 : vector<1x128xf32> to vector<48x128xf32>
    %277 = arith.addf %274, %276 : vector<48x128xf32>
    %c672 = arith.constant 672 : index
    %c0_76 = arith.constant 0 : index
    %278 = vector.load %arg1[%c672, %c0_76] : memref<1104x128xf32, #tpu.memory_space<vmem>>, vector<64x128xf32>
    %cst_77 = arith.constant dense<0.000000e+00> : vector<48x128xf32>
    %279 = tpu.matmul %272, %278, %cst_77 {dimension_numbers = #tpu.dot_dimension_numbers<[1], [0], [0], [1], [0, 0, 1, 1], [], []>} : vector<48x64xf32>, vector<64x128xf32>, vector<48x128xf32> -> vector<48x128xf32>
    %c768 = arith.constant 768 : index
    %c0_78 = arith.constant 0 : index
    %280 = vector.load %arg1[%c768, %c0_78] : memref<1104x128xf32, #tpu.memory_space<vmem>>, vector<1x128xf32>
    %281 = vector.broadcast %280 : vector<1x128xf32> to vector<48x128xf32>
    %282 = arith.addf %279, %281 : vector<48x128xf32>
    %c632 = arith.constant 632 : index
    %c0_79 = arith.constant 0 : index
    %283 = vector.load %arg1[%c632, %c0_79] : memref<1104x128xf32, #tpu.memory_space<vmem>>, vector<32x128xf32>
    %c736 = arith.constant 736 : index
    %c0_80 = arith.constant 0 : index
    %284 = vector.load %arg1[%c736, %c0_80] : memref<1104x128xf32, #tpu.memory_space<vmem>>, vector<32x128xf32>
    %cst_81 = arith.constant 0.000000e+00 : f32
    %285 = vector.broadcast %cst_81 : f32 to vector<16x32xf32>
    %cst_82 = arith.constant 0.000000e+00 : f32
    %286 = vector.broadcast %cst_82 : f32 to vector<16x32xf32>
    %cst_83 = arith.constant 0.000000e+00 : f32
    %287 = vector.broadcast %cst_83 : f32 to vector<32x32xf32>
    %288 = vector.extract_strided_slice %277 {offsets = [0, 0], sizes = [16, 128], strides = [1, 1]} : vector<48x128xf32> to vector<16x128xf32>
    %cst_84 = arith.constant dense<0.000000e+00> : vector<16x128xf32>
    %289 = tpu.matmul %285, %283, %cst_84 {dimension_numbers = #tpu.dot_dimension_numbers<[1], [0], [0], [1], [0, 0, 1, 1], [], []>} : vector<16x32xf32>, vector<32x128xf32>, vector<16x128xf32> -> vector<16x128xf32>
    %290 = arith.addf %288, %289 : vector<16x128xf32>
    %291 = vector.extract_strided_slice %282 {offsets = [32, 0], sizes = [16, 128], strides = [1, 1]} : vector<48x128xf32> to vector<16x128xf32>
    %cst_85 = arith.constant dense<0.000000e+00> : vector<16x128xf32>
    %292 = tpu.matmul %286, %284, %cst_85 {dimension_numbers = #tpu.dot_dimension_numbers<[1], [0], [0], [1], [0, 0, 1, 1], [], []>} : vector<16x32xf32>, vector<32x128xf32>, vector<16x128xf32> -> vector<16x128xf32>
    %293 = arith.addf %291, %292 : vector<16x128xf32>
    %294 = tpu.concatenate %290, %293 in 0 : vector<16x128xf32>, vector<16x128xf32> -> vector<32x128xf32>
    %295 = vector.extract_strided_slice %294 {offsets = [0, 0], sizes = [32, 96], strides = [1, 1]} : vector<32x128xf32> to vector<32x96xf32>
    %296 = arith.negf %295 : vector<32x96xf32>
    %297 = math.exp %296 : vector<32x96xf32>
    %cst_86 = arith.constant 1.000000e+00 : f32
    %298 = vector.broadcast %cst_86 : f32 to vector<32x96xf32>
    %299 = arith.addf %298, %297 : vector<32x96xf32>
    %300 = arith.divf %298, %299 : vector<32x96xf32>
    %301 = vector.extract_strided_slice %294 {offsets = [0, 96], sizes = [32, 32], strides = [1, 1]} : vector<32x128xf32> to vector<32x32xf32>
    %302 = math.tanh %301 : vector<32x32xf32>
    %303 = vector.extract_strided_slice %300 {offsets = [0, 32], sizes = [32, 32], strides = [1, 1]} : vector<32x96xf32> to vector<32x32xf32>
    %304 = arith.mulf %303, %287 : vector<32x32xf32>
    %305 = vector.extract_strided_slice %300 {offsets = [0, 0], sizes = [32, 32], strides = [1, 1]} : vector<32x96xf32> to vector<32x32xf32>
    %306 = arith.mulf %305, %302 : vector<32x32xf32>
    %307 = arith.addf %304, %306 : vector<32x32xf32>
    %308 = vector.extract_strided_slice %300 {offsets = [0, 64], sizes = [32, 32], strides = [1, 1]} : vector<32x96xf32> to vector<32x32xf32>
    %309 = math.tanh %307 : vector<32x32xf32>
    %310 = arith.mulf %308, %309 : vector<32x32xf32>
    %311 = vector.extract_strided_slice %310 {offsets = [0, 0], sizes = [16, 32], strides = [1, 1]} : vector<32x32xf32> to vector<16x32xf32>
    %312 = vector.extract_strided_slice %310 {offsets = [16, 0], sizes = [16, 32], strides = [1, 1]} : vector<32x32xf32> to vector<16x32xf32>
    %313 = vector.extract_strided_slice %277 {offsets = [16, 0], sizes = [16, 128], strides = [1, 1]} : vector<48x128xf32> to vector<16x128xf32>
    %cst_87 = arith.constant dense<0.000000e+00> : vector<16x128xf32>
    %314 = tpu.matmul %311, %283, %cst_87 {dimension_numbers = #tpu.dot_dimension_numbers<[1], [0], [0], [1], [0, 0, 1, 1], [], []>} : vector<16x32xf32>, vector<32x128xf32>, vector<16x128xf32> -> vector<16x128xf32>
    %315 = arith.addf %313, %314 : vector<16x128xf32>
    %316 = vector.extract_strided_slice %282 {offsets = [16, 0], sizes = [16, 128], strides = [1, 1]} : vector<48x128xf32> to vector<16x128xf32>
    %cst_88 = arith.constant dense<0.000000e+00> : vector<16x128xf32>
    %317 = tpu.matmul %312, %284, %cst_88 {dimension_numbers = #tpu.dot_dimension_numbers<[1], [0], [0], [1], [0, 0, 1, 1], [], []>} : vector<16x32xf32>, vector<32x128xf32>, vector<16x128xf32> -> vector<16x128xf32>
    %318 = arith.addf %316, %317 : vector<16x128xf32>
    %319 = tpu.concatenate %315, %318 in 0 : vector<16x128xf32>, vector<16x128xf32> -> vector<32x128xf32>
    %320 = vector.extract_strided_slice %319 {offsets = [0, 0], sizes = [32, 96], strides = [1, 1]} : vector<32x128xf32> to vector<32x96xf32>
    %321 = arith.negf %320 : vector<32x96xf32>
    %322 = math.exp %321 : vector<32x96xf32>
    %cst_89 = arith.constant 1.000000e+00 : f32
    %323 = vector.broadcast %cst_89 : f32 to vector<32x96xf32>
    %324 = arith.addf %323, %322 : vector<32x96xf32>
    %325 = arith.divf %323, %324 : vector<32x96xf32>
    %326 = vector.extract_strided_slice %319 {offsets = [0, 96], sizes = [32, 32], strides = [1, 1]} : vector<32x128xf32> to vector<32x32xf32>
    %327 = math.tanh %326 : vector<32x32xf32>
    %328 = vector.extract_strided_slice %325 {offsets = [0, 32], sizes = [32, 32], strides = [1, 1]} : vector<32x96xf32> to vector<32x32xf32>
    %329 = arith.mulf %328, %307 : vector<32x32xf32>
    %330 = vector.extract_strided_slice %325 {offsets = [0, 0], sizes = [32, 32], strides = [1, 1]} : vector<32x96xf32> to vector<32x32xf32>
    %331 = arith.mulf %330, %327 : vector<32x32xf32>
    %332 = arith.addf %329, %331 : vector<32x32xf32>
    %333 = vector.extract_strided_slice %325 {offsets = [0, 64], sizes = [32, 32], strides = [1, 1]} : vector<32x96xf32> to vector<32x32xf32>
    %334 = math.tanh %332 : vector<32x32xf32>
    %335 = arith.mulf %333, %334 : vector<32x32xf32>
    %336 = vector.extract_strided_slice %335 {offsets = [0, 0], sizes = [16, 32], strides = [1, 1]} : vector<32x32xf32> to vector<16x32xf32>
    %337 = vector.extract_strided_slice %335 {offsets = [16, 0], sizes = [16, 32], strides = [1, 1]} : vector<32x32xf32> to vector<16x32xf32>
    %338 = vector.extract_strided_slice %277 {offsets = [32, 0], sizes = [16, 128], strides = [1, 1]} : vector<48x128xf32> to vector<16x128xf32>
    %cst_90 = arith.constant dense<0.000000e+00> : vector<16x128xf32>
    %339 = tpu.matmul %336, %283, %cst_90 {dimension_numbers = #tpu.dot_dimension_numbers<[1], [0], [0], [1], [0, 0, 1, 1], [], []>} : vector<16x32xf32>, vector<32x128xf32>, vector<16x128xf32> -> vector<16x128xf32>
    %340 = arith.addf %338, %339 : vector<16x128xf32>
    %341 = vector.extract_strided_slice %282 {offsets = [0, 0], sizes = [16, 128], strides = [1, 1]} : vector<48x128xf32> to vector<16x128xf32>
    %cst_91 = arith.constant dense<0.000000e+00> : vector<16x128xf32>
    %342 = tpu.matmul %337, %284, %cst_91 {dimension_numbers = #tpu.dot_dimension_numbers<[1], [0], [0], [1], [0, 0, 1, 1], [], []>} : vector<16x32xf32>, vector<32x128xf32>, vector<16x128xf32> -> vector<16x128xf32>
    %343 = arith.addf %341, %342 : vector<16x128xf32>
    %344 = tpu.concatenate %340, %343 in 0 : vector<16x128xf32>, vector<16x128xf32> -> vector<32x128xf32>
    %345 = vector.extract_strided_slice %344 {offsets = [0, 0], sizes = [32, 96], strides = [1, 1]} : vector<32x128xf32> to vector<32x96xf32>
    %346 = arith.negf %345 : vector<32x96xf32>
    %347 = math.exp %346 : vector<32x96xf32>
    %cst_92 = arith.constant 1.000000e+00 : f32
    %348 = vector.broadcast %cst_92 : f32 to vector<32x96xf32>
    %349 = arith.addf %348, %347 : vector<32x96xf32>
    %350 = arith.divf %348, %349 : vector<32x96xf32>
    %351 = vector.extract_strided_slice %344 {offsets = [0, 96], sizes = [32, 32], strides = [1, 1]} : vector<32x128xf32> to vector<32x32xf32>
    %352 = math.tanh %351 : vector<32x32xf32>
    %353 = vector.extract_strided_slice %350 {offsets = [0, 32], sizes = [32, 32], strides = [1, 1]} : vector<32x96xf32> to vector<32x32xf32>
    %354 = arith.mulf %353, %332 : vector<32x32xf32>
    %355 = vector.extract_strided_slice %350 {offsets = [0, 0], sizes = [32, 32], strides = [1, 1]} : vector<32x96xf32> to vector<32x32xf32>
    %356 = arith.mulf %355, %352 : vector<32x32xf32>
    %357 = arith.addf %354, %356 : vector<32x32xf32>
    %358 = vector.extract_strided_slice %350 {offsets = [0, 64], sizes = [32, 32], strides = [1, 1]} : vector<32x96xf32> to vector<32x32xf32>
    %359 = math.tanh %357 : vector<32x32xf32>
    %360 = arith.mulf %358, %359 : vector<32x32xf32>
    %361 = vector.extract_strided_slice %360 {offsets = [0, 0], sizes = [16, 32], strides = [1, 1]} : vector<32x32xf32> to vector<16x32xf32>
    %362 = vector.extract_strided_slice %360 {offsets = [16, 0], sizes = [16, 32], strides = [1, 1]} : vector<32x32xf32> to vector<16x32xf32>
    %363 = tpu.concatenate %311, %336, %361 in 0 : vector<16x32xf32>, vector<16x32xf32>, vector<16x32xf32> -> vector<48x32xf32>
    %364 = tpu.concatenate %362, %337, %312 in 0 : vector<16x32xf32>, vector<16x32xf32>, vector<16x32xf32> -> vector<48x32xf32>
    %365 = tpu.concatenate %363, %364 in 1 : vector<48x32xf32>, vector<48x32xf32> -> vector<48x64xf32>
    %c776 = arith.constant 776 : index
    %c0_93 = arith.constant 0 : index
    %366 = vector.load %arg1[%c776, %c0_93] : memref<1104x128xf32, #tpu.memory_space<vmem>>, vector<64x128xf32>
    %cst_94 = arith.constant dense<0.000000e+00> : vector<48x128xf32>
    %367 = tpu.matmul %365, %366, %cst_94 {dimension_numbers = #tpu.dot_dimension_numbers<[1], [0], [0], [1], [0, 0, 1, 1], [], []>} : vector<48x64xf32>, vector<64x128xf32>, vector<48x128xf32> -> vector<48x128xf32>
    %c872 = arith.constant 872 : index
    %c0_95 = arith.constant 0 : index
    %368 = vector.load %arg1[%c872, %c0_95] : memref<1104x128xf32, #tpu.memory_space<vmem>>, vector<1x128xf32>
    %369 = vector.broadcast %368 : vector<1x128xf32> to vector<48x128xf32>
    %370 = arith.addf %367, %369 : vector<48x128xf32>
    %c880 = arith.constant 880 : index
    %c0_96 = arith.constant 0 : index
    %371 = vector.load %arg1[%c880, %c0_96] : memref<1104x128xf32, #tpu.memory_space<vmem>>, vector<64x128xf32>
    %cst_97 = arith.constant dense<0.000000e+00> : vector<48x128xf32>
    %372 = tpu.matmul %365, %371, %cst_97 {dimension_numbers = #tpu.dot_dimension_numbers<[1], [0], [0], [1], [0, 0, 1, 1], [], []>} : vector<48x64xf32>, vector<64x128xf32>, vector<48x128xf32> -> vector<48x128xf32>
    %c976 = arith.constant 976 : index
    %c0_98 = arith.constant 0 : index
    %373 = vector.load %arg1[%c976, %c0_98] : memref<1104x128xf32, #tpu.memory_space<vmem>>, vector<1x128xf32>
    %374 = vector.broadcast %373 : vector<1x128xf32> to vector<48x128xf32>
    %375 = arith.addf %372, %374 : vector<48x128xf32>
    %c840 = arith.constant 840 : index
    %c0_99 = arith.constant 0 : index
    %376 = vector.load %arg1[%c840, %c0_99] : memref<1104x128xf32, #tpu.memory_space<vmem>>, vector<32x128xf32>
    %c944 = arith.constant 944 : index
    %c0_100 = arith.constant 0 : index
    %377 = vector.load %arg1[%c944, %c0_100] : memref<1104x128xf32, #tpu.memory_space<vmem>>, vector<32x128xf32>
    %cst_101 = arith.constant 0.000000e+00 : f32
    %378 = vector.broadcast %cst_101 : f32 to vector<16x32xf32>
    %cst_102 = arith.constant 0.000000e+00 : f32
    %379 = vector.broadcast %cst_102 : f32 to vector<16x32xf32>
    %cst_103 = arith.constant 0.000000e+00 : f32
    %380 = vector.broadcast %cst_103 : f32 to vector<32x32xf32>
    %381 = vector.extract_strided_slice %370 {offsets = [0, 0], sizes = [16, 128], strides = [1, 1]} : vector<48x128xf32> to vector<16x128xf32>
    %cst_104 = arith.constant dense<0.000000e+00> : vector<16x128xf32>
    %382 = tpu.matmul %378, %376, %cst_104 {dimension_numbers = #tpu.dot_dimension_numbers<[1], [0], [0], [1], [0, 0, 1, 1], [], []>} : vector<16x32xf32>, vector<32x128xf32>, vector<16x128xf32> -> vector<16x128xf32>
    %383 = arith.addf %381, %382 : vector<16x128xf32>
    %384 = vector.extract_strided_slice %375 {offsets = [32, 0], sizes = [16, 128], strides = [1, 1]} : vector<48x128xf32> to vector<16x128xf32>
    %cst_105 = arith.constant dense<0.000000e+00> : vector<16x128xf32>
    %385 = tpu.matmul %379, %377, %cst_105 {dimension_numbers = #tpu.dot_dimension_numbers<[1], [0], [0], [1], [0, 0, 1, 1], [], []>} : vector<16x32xf32>, vector<32x128xf32>, vector<16x128xf32> -> vector<16x128xf32>
    %386 = arith.addf %384, %385 : vector<16x128xf32>
    %387 = tpu.concatenate %383, %386 in 0 : vector<16x128xf32>, vector<16x128xf32> -> vector<32x128xf32>
    %388 = vector.extract_strided_slice %387 {offsets = [0, 0], sizes = [32, 96], strides = [1, 1]} : vector<32x128xf32> to vector<32x96xf32>
    %389 = arith.negf %388 : vector<32x96xf32>
    %390 = math.exp %389 : vector<32x96xf32>
    %cst_106 = arith.constant 1.000000e+00 : f32
    %391 = vector.broadcast %cst_106 : f32 to vector<32x96xf32>
    %392 = arith.addf %391, %390 : vector<32x96xf32>
    %393 = arith.divf %391, %392 : vector<32x96xf32>
    %394 = vector.extract_strided_slice %387 {offsets = [0, 96], sizes = [32, 32], strides = [1, 1]} : vector<32x128xf32> to vector<32x32xf32>
    %395 = math.tanh %394 : vector<32x32xf32>
    %396 = vector.extract_strided_slice %393 {offsets = [0, 32], sizes = [32, 32], strides = [1, 1]} : vector<32x96xf32> to vector<32x32xf32>
    %397 = arith.mulf %396, %380 : vector<32x32xf32>
    %398 = vector.extract_strided_slice %393 {offsets = [0, 0], sizes = [32, 32], strides = [1, 1]} : vector<32x96xf32> to vector<32x32xf32>
    %399 = arith.mulf %398, %395 : vector<32x32xf32>
    %400 = arith.addf %397, %399 : vector<32x32xf32>
    %401 = vector.extract_strided_slice %393 {offsets = [0, 64], sizes = [32, 32], strides = [1, 1]} : vector<32x96xf32> to vector<32x32xf32>
    %402 = math.tanh %400 : vector<32x32xf32>
    %403 = arith.mulf %401, %402 : vector<32x32xf32>
    %404 = vector.extract_strided_slice %403 {offsets = [0, 0], sizes = [16, 32], strides = [1, 1]} : vector<32x32xf32> to vector<16x32xf32>
    %405 = vector.extract_strided_slice %403 {offsets = [16, 0], sizes = [16, 32], strides = [1, 1]} : vector<32x32xf32> to vector<16x32xf32>
    %406 = vector.extract_strided_slice %370 {offsets = [16, 0], sizes = [16, 128], strides = [1, 1]} : vector<48x128xf32> to vector<16x128xf32>
    %cst_107 = arith.constant dense<0.000000e+00> : vector<16x128xf32>
    %407 = tpu.matmul %404, %376, %cst_107 {dimension_numbers = #tpu.dot_dimension_numbers<[1], [0], [0], [1], [0, 0, 1, 1], [], []>} : vector<16x32xf32>, vector<32x128xf32>, vector<16x128xf32> -> vector<16x128xf32>
    %408 = arith.addf %406, %407 : vector<16x128xf32>
    %409 = vector.extract_strided_slice %375 {offsets = [16, 0], sizes = [16, 128], strides = [1, 1]} : vector<48x128xf32> to vector<16x128xf32>
    %cst_108 = arith.constant dense<0.000000e+00> : vector<16x128xf32>
    %410 = tpu.matmul %405, %377, %cst_108 {dimension_numbers = #tpu.dot_dimension_numbers<[1], [0], [0], [1], [0, 0, 1, 1], [], []>} : vector<16x32xf32>, vector<32x128xf32>, vector<16x128xf32> -> vector<16x128xf32>
    %411 = arith.addf %409, %410 : vector<16x128xf32>
    %412 = tpu.concatenate %408, %411 in 0 : vector<16x128xf32>, vector<16x128xf32> -> vector<32x128xf32>
    %413 = vector.extract_strided_slice %412 {offsets = [0, 0], sizes = [32, 96], strides = [1, 1]} : vector<32x128xf32> to vector<32x96xf32>
    %414 = arith.negf %413 : vector<32x96xf32>
    %415 = math.exp %414 : vector<32x96xf32>
    %cst_109 = arith.constant 1.000000e+00 : f32
    %416 = vector.broadcast %cst_109 : f32 to vector<32x96xf32>
    %417 = arith.addf %416, %415 : vector<32x96xf32>
    %418 = arith.divf %416, %417 : vector<32x96xf32>
    %419 = vector.extract_strided_slice %412 {offsets = [0, 96], sizes = [32, 32], strides = [1, 1]} : vector<32x128xf32> to vector<32x32xf32>
    %420 = math.tanh %419 : vector<32x32xf32>
    %421 = vector.extract_strided_slice %418 {offsets = [0, 32], sizes = [32, 32], strides = [1, 1]} : vector<32x96xf32> to vector<32x32xf32>
    %422 = arith.mulf %421, %400 : vector<32x32xf32>
    %423 = vector.extract_strided_slice %418 {offsets = [0, 0], sizes = [32, 32], strides = [1, 1]} : vector<32x96xf32> to vector<32x32xf32>
    %424 = arith.mulf %423, %420 : vector<32x32xf32>
    %425 = arith.addf %422, %424 : vector<32x32xf32>
    %426 = vector.extract_strided_slice %418 {offsets = [0, 64], sizes = [32, 32], strides = [1, 1]} : vector<32x96xf32> to vector<32x32xf32>
    %427 = math.tanh %425 : vector<32x32xf32>
    %428 = arith.mulf %426, %427 : vector<32x32xf32>
    %429 = vector.extract_strided_slice %428 {offsets = [0, 0], sizes = [16, 32], strides = [1, 1]} : vector<32x32xf32> to vector<16x32xf32>
    %430 = vector.extract_strided_slice %428 {offsets = [16, 0], sizes = [16, 32], strides = [1, 1]} : vector<32x32xf32> to vector<16x32xf32>
    %431 = vector.extract_strided_slice %370 {offsets = [32, 0], sizes = [16, 128], strides = [1, 1]} : vector<48x128xf32> to vector<16x128xf32>
    %cst_110 = arith.constant dense<0.000000e+00> : vector<16x128xf32>
    %432 = tpu.matmul %429, %376, %cst_110 {dimension_numbers = #tpu.dot_dimension_numbers<[1], [0], [0], [1], [0, 0, 1, 1], [], []>} : vector<16x32xf32>, vector<32x128xf32>, vector<16x128xf32> -> vector<16x128xf32>
    %433 = arith.addf %431, %432 : vector<16x128xf32>
    %434 = vector.extract_strided_slice %375 {offsets = [0, 0], sizes = [16, 128], strides = [1, 1]} : vector<48x128xf32> to vector<16x128xf32>
    %cst_111 = arith.constant dense<0.000000e+00> : vector<16x128xf32>
    %435 = tpu.matmul %430, %377, %cst_111 {dimension_numbers = #tpu.dot_dimension_numbers<[1], [0], [0], [1], [0, 0, 1, 1], [], []>} : vector<16x32xf32>, vector<32x128xf32>, vector<16x128xf32> -> vector<16x128xf32>
    %436 = arith.addf %434, %435 : vector<16x128xf32>
    %437 = tpu.concatenate %433, %436 in 0 : vector<16x128xf32>, vector<16x128xf32> -> vector<32x128xf32>
    %438 = vector.extract_strided_slice %437 {offsets = [0, 0], sizes = [32, 96], strides = [1, 1]} : vector<32x128xf32> to vector<32x96xf32>
    %439 = arith.negf %438 : vector<32x96xf32>
    %440 = math.exp %439 : vector<32x96xf32>
    %cst_112 = arith.constant 1.000000e+00 : f32
    %441 = vector.broadcast %cst_112 : f32 to vector<32x96xf32>
    %442 = arith.addf %441, %440 : vector<32x96xf32>
    %443 = arith.divf %441, %442 : vector<32x96xf32>
    %444 = vector.extract_strided_slice %437 {offsets = [0, 96], sizes = [32, 32], strides = [1, 1]} : vector<32x128xf32> to vector<32x32xf32>
    %445 = math.tanh %444 : vector<32x32xf32>
    %446 = vector.extract_strided_slice %443 {offsets = [0, 32], sizes = [32, 32], strides = [1, 1]} : vector<32x96xf32> to vector<32x32xf32>
    %447 = arith.mulf %446, %425 : vector<32x32xf32>
    %448 = vector.extract_strided_slice %443 {offsets = [0, 0], sizes = [32, 32], strides = [1, 1]} : vector<32x96xf32> to vector<32x32xf32>
    %449 = arith.mulf %448, %445 : vector<32x32xf32>
    %450 = arith.addf %447, %449 : vector<32x32xf32>
    %451 = vector.extract_strided_slice %443 {offsets = [0, 64], sizes = [32, 32], strides = [1, 1]} : vector<32x96xf32> to vector<32x32xf32>
    %452 = math.tanh %450 : vector<32x32xf32>
    %453 = arith.mulf %451, %452 : vector<32x32xf32>
    %454 = vector.extract_strided_slice %453 {offsets = [0, 0], sizes = [16, 32], strides = [1, 1]} : vector<32x32xf32> to vector<16x32xf32>
    %455 = vector.extract_strided_slice %453 {offsets = [16, 0], sizes = [16, 32], strides = [1, 1]} : vector<32x32xf32> to vector<16x32xf32>
    %456 = tpu.concatenate %404, %429, %454 in 0 : vector<16x32xf32>, vector<16x32xf32>, vector<16x32xf32> -> vector<48x32xf32>
    %457 = tpu.concatenate %455, %430, %405 in 0 : vector<16x32xf32>, vector<16x32xf32>, vector<16x32xf32> -> vector<48x32xf32>
    %c984 = arith.constant 984 : index
    %c0_113 = arith.constant 0 : index
    %458 = vector.load %arg1[%c984, %c0_113] : memref<1104x128xf32, #tpu.memory_space<vmem>>, vector<64x1xf32>
    %459 = vector.extract_strided_slice %458 {offsets = [0, 0], sizes = [32, 1], strides = [1, 1]} : vector<64x1xf32> to vector<32x1xf32>
    %cst_114 = arith.constant dense<0.000000e+00> : vector<48x1xf32>
    %460 = tpu.matmul %456, %459, %cst_114 {dimension_numbers = #tpu.dot_dimension_numbers<[1], [0], [0], [1], [0, 0, 1, 1], [], []>} : vector<48x32xf32>, vector<32x1xf32>, vector<48x1xf32> -> vector<48x1xf32>
    %461 = vector.extract_strided_slice %458 {offsets = [32, 0], sizes = [32, 1], strides = [1, 1]} : vector<64x1xf32> to vector<32x1xf32>
    %cst_115 = arith.constant dense<0.000000e+00> : vector<48x1xf32>
    %462 = tpu.matmul %457, %461, %cst_115 {dimension_numbers = #tpu.dot_dimension_numbers<[1], [0], [0], [1], [0, 0, 1, 1], [], []>} : vector<48x32xf32>, vector<32x1xf32>, vector<48x1xf32> -> vector<48x1xf32>
    %463 = arith.addf %460, %462 : vector<48x1xf32>
    %c1048 = arith.constant 1048 : index
    %c0_116 = arith.constant 0 : index
    %464 = vector.load %arg1[%c1048, %c0_116] : memref<1104x128xf32, #tpu.memory_space<vmem>>, vector<1x1xf32>
    %465 = vector.broadcast %464 : vector<1x1xf32> to vector<48x1xf32>
    %466 = arith.addf %463, %465 : vector<48x1xf32>
    %467 = vector.extract_strided_slice %466 {offsets = [0, 0], sizes = [16, 1], strides = [1, 1]} : vector<48x1xf32> to vector<16x1xf32>
    %468 = vector.extract_strided_slice %466 {offsets = [16, 0], sizes = [16, 1], strides = [1, 1]} : vector<48x1xf32> to vector<16x1xf32>
    %469 = vector.extract_strided_slice %466 {offsets = [32, 0], sizes = [16, 1], strides = [1, 1]} : vector<48x1xf32> to vector<16x1xf32>
    %470 = arith.maximumf %467, %468 : vector<16x1xf32>
    %471 = arith.maximumf %470, %469 : vector<16x1xf32>
    %472 = arith.subf %467, %471 : vector<16x1xf32>
    %473 = math.exp %472 : vector<16x1xf32>
    %474 = arith.subf %468, %471 : vector<16x1xf32>
    %475 = math.exp %474 : vector<16x1xf32>
    %476 = arith.subf %469, %471 : vector<16x1xf32>
    %477 = math.exp %476 : vector<16x1xf32>
    %478 = vector.broadcast %473 : vector<16x1xf32> to vector<16x64xf32>
    %479 = arith.mulf %478, %88 : vector<16x64xf32>
    %480 = vector.broadcast %475 : vector<16x1xf32> to vector<16x64xf32>
    %481 = arith.mulf %480, %133 : vector<16x64xf32>
    %482 = arith.addf %479, %481 : vector<16x64xf32>
    %483 = vector.broadcast %477 : vector<16x1xf32> to vector<16x64xf32>
    %484 = arith.mulf %483, %178 : vector<16x64xf32>
    %485 = arith.addf %482, %484 : vector<16x64xf32>
    %486 = arith.addf %473, %475 : vector<16x1xf32>
    %487 = arith.addf %486, %477 : vector<16x1xf32>
    %488 = vector.broadcast %487 : vector<16x1xf32> to vector<16x64xf32>
    %489 = arith.divf %485, %488 : vector<16x64xf32>
    %c288 = arith.constant 288 : index
    %c0_117 = arith.constant 0 : index
    %490 = vector.load %arg1[%c288, %c0_117] : memref<1104x128xf32, #tpu.memory_space<vmem>>, vector<64x42xf32>
    %cst_118 = arith.constant dense<0.000000e+00> : vector<16x42xf32>
    %491 = tpu.matmul %489, %490, %cst_118 {dimension_numbers = #tpu.dot_dimension_numbers<[1], [0], [0], [1], [0, 0, 1, 1], [], []>} : vector<16x64xf32>, vector<64x42xf32>, vector<16x42xf32> -> vector<16x42xf32>
    %492 = vector.extract_strided_slice %491 {offsets = [0, 0], sizes = [16, 40], strides = [1, 1]} : vector<16x42xf32> to vector<16x40xf32>
    %493 = vector.extract_strided_slice %491 {offsets = [0, 40], sizes = [16, 2], strides = [1, 1]} : vector<16x42xf32> to vector<16x2xf32>
    %494 = vector.extract_strided_slice %493 {offsets = [0, 1], sizes = [16, 1], strides = [1, 1]} : vector<16x2xf32> to vector<16x1xf32>
    %495 = vector.extract_strided_slice %493 {offsets = [0, 0], sizes = [16, 1], strides = [1, 1]} : vector<16x2xf32> to vector<16x1xf32>
    %496 = vector.shape_cast %495 : vector<16x1xf32> to vector<16xf32>
    %497 = vector.shape_cast %496 : vector<16xf32> to vector<1x16xf32>
    %498 = vector.shape_cast %497 : vector<1x16xf32> to vector<1x16xf32>
    %499 = vector.broadcast %498 : vector<1x16xf32> to vector<16x16xf32>
    %500 = vector.broadcast %494 : vector<16x1xf32> to vector<16x16xf32>
    %501 = arith.addf %500, %499 : vector<16x16xf32>
    %cst_119 = arith.constant 2.000000e-01 : f32
    %502 = vector.broadcast %cst_119 : f32 to vector<16x16xf32>
    %503 = arith.mulf %502, %501 : vector<16x16xf32>
    %504 = arith.maximumf %501, %503 : vector<16x16xf32>
    %505 = arith.addf %504, %6 : vector<16x16xf32>
    %cst_120 = arith.constant dense<0xFF800000> : vector<16xf32>
    %506 = vector.multi_reduction <maximumf>, %505, %cst_120 [1] : vector<16x16xf32> to vector<16xf32>
    %507 = vector.shape_cast %506 : vector<16xf32> to vector<16x1xf32>
    %508 = vector.broadcast %507 : vector<16x1xf32> to vector<16x16xf32>
    %509 = arith.subf %505, %508 : vector<16x16xf32>
    %510 = math.exp %509 : vector<16x16xf32>
    %cst_121 = arith.constant dense<0.000000e+00> : vector<16xf32>
    %511 = vector.multi_reduction <add>, %510, %cst_121 [1] : vector<16x16xf32> to vector<16xf32>
    %512 = vector.shape_cast %511 : vector<16xf32> to vector<16x1xf32>
    %513 = vector.broadcast %512 : vector<16x1xf32> to vector<16x16xf32>
    %514 = arith.divf %510, %513 : vector<16x16xf32>
    %cst_122 = arith.constant dense<0.000000e+00> : vector<16x40xf32>
    %515 = tpu.matmul %514, %492, %cst_122 {dimension_numbers = #tpu.dot_dimension_numbers<[1], [0], [0], [1], [0, 0, 1, 1], [], []>} : vector<16x16xf32>, vector<16x40xf32>, vector<16x40xf32> -> vector<16x40xf32>
    %c352 = arith.constant 352 : index
    %c0_123 = arith.constant 0 : index
    %516 = vector.load %arg1[%c352, %c0_123] : memref<1104x128xf32, #tpu.memory_space<vmem>>, vector<1x40xf32>
    %517 = vector.broadcast %516 : vector<1x40xf32> to vector<16x40xf32>
    %518 = arith.addf %515, %517 : vector<16x40xf32>
    %cst_124 = arith.constant dense<0.000000e+00> : vector<8x40xf32>
    %519 = tpu.matmul %2, %518, %cst_124 {dimension_numbers = #tpu.dot_dimension_numbers<[1], [0], [0], [1], [0, 0, 1, 1], [], []>} : vector<8x16xf32>, vector<16x40xf32>, vector<8x40xf32> -> vector<8x40xf32>
    %c1056 = arith.constant 1056 : index
    %c0_125 = arith.constant 0 : index
    %520 = vector.load %arg1[%c1056, %c0_125] : memref<1104x128xf32, #tpu.memory_space<vmem>>, vector<40x128xf32>
    %c1096 = arith.constant 1096 : index
    %c0_126 = arith.constant 0 : index
    %521 = vector.load %arg1[%c1096, %c0_126] : memref<1104x128xf32, #tpu.memory_space<vmem>>, vector<1x128xf32>
    %cst_127 = arith.constant dense<0.000000e+00> : vector<8x128xf32>
    %522 = tpu.matmul %519, %520, %cst_127 {dimension_numbers = #tpu.dot_dimension_numbers<[1], [0], [0], [1], [0, 0, 1, 1], [], []>} : vector<8x40xf32>, vector<40x128xf32>, vector<8x128xf32> -> vector<8x128xf32>
    %523 = vector.broadcast %521 : vector<1x128xf32> to vector<8x128xf32>
    %524 = arith.addf %522, %523 : vector<8x128xf32>
    %c0_128 = arith.constant 0 : index
    %c0_129 = arith.constant 0 : index
    %525 = vector.load %arg2[%c0_128, %c0_129] : memref<8x128xf32, #tpu.memory_space<vmem>>, vector<8x128xf32>
    tpu.vector_store %arg2[%c0_128, %c0_129], %524 {strides = array<i32>} : memref<8x128xf32, #tpu.memory_space<vmem>>, vector<8x128xf32>,
    return
  }
}

</mosaic_0001>

<llo_original>
// kernel: xasnet_gat_forward.1
$region0: #{xasnet_gat_forward.1}
  #allocation0 [shape = 'u32[]', space=smem, size = 0x4, offset = 0x4, fixed_abs, tag = 'smem constant byte address 0x4 - core index']
  #allocation1 [shape = 'u32[144,128]{1,0:T(1,128)}', space=vmem, size = 0x12000, scoped, tag = 'internal scratch']
  %s0 = inlined_call_operand.vmem [shape: f32[40,16], index: 0, kind: input, shape index: {}]
  %s1 = inlined_call_operand.vmem [shape: f32[1104,128], index: 1, kind: input, shape index: {}]
  %s2 = inlined_call_operand.vmem [shape: f32[8,128], index: 2, kind: output, shape index: {}]
  %s3 = sld [smem:[#allocation0]]
  $region18: #{xasnet_gat_forward.1} parent=0
    _
  %s5 = ssub.s32 1, %s3
  %s6 = scalar_select 0, %s5, %s3
  // Predicated region
  $region2: #{xasnet_gat_forward.1} parent=0 // pred_check
    _
  $region3: #{xasnet_gat_forward.1} parent=0 // pred_check_branch
    %8 = sbr.rel (0) target = $region5
  $region4: #{xasnet_gat_forward.1} parent=0 // pred_region
    _
  $region5: #{xasnet_gat_forward.1} parent=0 // pred_fallthru
    _
  // Predicated region
  $region6: #{xasnet_gat_forward.1} parent=0 // pred_check
    _
  $region7: #{xasnet_gat_forward.1} parent=0 // pred_check_branch
    %10 = sbr.rel (0) target = $region9
  $region8: #{xasnet_gat_forward.1} parent=0 // pred_region
    _
  $region9: #{xasnet_gat_forward.1} parent=0 // pred_fallthru
    _
  %v11 = vld [vmem:[%s0] sm:$0xff]
  %v12 = vld [vmem:[%s0 + $0x8] sm:$0xff]
  %v13 = vld [vmem:[%s0 + $0x10] sm:$0xff]
  %v14 = vld [vmem:[%s0 + $0x18] sm:$0xff]
  %v15 = vld [vmem:[%s0 + $0x20] sm:$0xff]
  %v16 = vsub.f32 %v13, 1.0
  %v17 = vsub.f32 %v14, 1.0
  %v18 = vmul.f32 %v16, 1e+09
  %v19 = vmul.f32 %v17, 1e+09
  %v20 = vld [vmem:[%s1] sm:$0xff]
  %v21 = vld [vmem:[%s1 + $0x8] sm:$0xff]
  %v22 = vld [vmem:[%s1 + $0x10] sm:$0x1]
  %v23 = vlaneseq
  %v24 = vshrl.u32 %v23, 7
  %v25 = vsub.s32 0, %v24
  %v26 = vrot.slane %v22, %v25
  %vm27 = vcmask 130048
  %v29 = vsel %vm27, %v11, 0
  %v32 = vsel %vm27, %v12, 0
  %34 = vmatprep.subr.mxu0 0.0
  %35 = vmatpush1.msra.mxu0 %v20
  %36 = vmatprep.subr.mxu0 0.0
  %37 = vmatpush1.msra.mxu0 %v21
  %38 = vmatprep.subr.mxu0 0.0
  %39 = vmatpush1.msra.mxu0 0.0
  %40 = vmatprep.subr.mxu0 0.0
  %41 = vmatpush1.msra.mxu0 0.0
  %42 = vmatprep.subr.mxu0 0.0
  %43 = vmatpush1.msra.mxu0 0.0
  %44 = vmatprep.subr.mxu0 0.0
  %45 = vmatpush1.msra.mxu0 0.0
  %46 = vmatprep.subr.mxu0 0.0
  %47 = vmatpush1.msra.mxu0 0.0
  %48 = vmatprep.subr.mxu0 0.0
  %49 = vmatpush1.msra.mxu0 0.0
  %50 = vmatprep.subr.mxu0 0.0
  %51 = vmatpush1.msra.mxu0 0.0
  %52 = vmatprep.subr.mxu0 0.0
  %53 = vmatpush1.msra.mxu0 0.0
  %54 = vmatprep.subr.mxu0 0.0
  %55 = vmatpush1.msra.mxu0 0.0
  %56 = vmatprep.subr.mxu0 0.0
  %57 = vmatpush1.msra.mxu0 0.0
  %58 = vmatprep.subr.mxu0 0.0
  %59 = vmatpush1.msra.mxu0 0.0
  %60 = vmatprep.subr.mxu0 0.0
  %61 = vmatpush1.msra.mxu0 0.0
  %62 = vmatprep.subr.mxu0 0.0
  %63 = vmatpush1.msra.mxu0 0.0
  %64 = vmatprep.subr.mxu0 0.0
  %65 = vmatpush1.msra.mxu0 0.0
  %66 = vmatprep.subr.mxu0 0.0
  %67 = vmatpush1.msra.mxu0 0.0
  %68 = vmatprep.subr.mxu0 0.0
  %69 = vmatpush1.msra.mxu0 0.0
  %70 = vmatprep.subr.mxu0 0.0
  %71 = vmatpush1.msra.mxu0 0.0
  %72 = vmatprep.subr.mxu0 0.0
  %73 = vmatpush1.msra.mxu0 0.0
  %74 = vmatprep.subr.mxu0 0.0
  %75 = vmatpush1.msra.mxu0 0.0
  %76 = vmatprep.subr.mxu0 0.0
  %77 = vmatpush1.msra.mxu0 0.0
  %78 = vmatprep.subr.mxu0 0.0
  %79 = vmatpush1.msra.mxu0 0.0
  %80 = vmatprep.subr.mxu0 0.0
  %81 = vmatpush1.msra.mxu0 0.0
  %82 = vmatprep.subr.mxu0 0.0
  %83 = vmatpush1.msra.mxu0 0.0
  %84 = vmatprep.subr.mxu0 0.0
  %85 = vmatpush1.msra.mxu0 0.0
  %86 = vmatprep.subr.mxu0 0.0
  %87 = vmatpush1.msra.mxu0 0.0
  %88 = vmatprep.subr.mxu0 0.0
  %89 = vmatpush1.msra.mxu0 0.0
  %90 = vmatprep.subr.mxu0 0.0
  %91 = vmatpush1.msra.mxu0 0.0
  %92 = vmatprep.subr.mxu0 0.0
  %93 = vmatpush1.msra.mxu0 0.0
  %94 = vmatprep.subr.mxu0 0.0
  %95 = vmatpush1.msra.mxu0 0.0
  %96 = vmatprep.subr.mxu0 0.0
  %97 = vmatpush1.msra.mxu0 0.0
  %98 = vmatprep.mubr.f32.mxu0 0.0
  %99 = vmatmul.mubr.f32.gmra.mrb[0].mxu0 %v29
  %v100 = vpop.f32.mrb[0].mxu0
  %v101 = vadd.f32 %v26, %v100
  %v102 = vpop.f32.mrb[0].mxu0
  %103 = vmatprep.mubr.f32.mxu0 0.0
  %104 = vmatmul.mubr.f32.gmra.mrb[0].mxu0 %v32
  %v105 = vpop.f32.mrb[0].mxu0
  %v106 = vadd.f32 %v26, %v105
  %v107 = vpop.f32.mrb[0].mxu0
  %108 = vdwg.mxu0
  %v109 = vmax.f32 %v101, 0.0
  %v110 = vmax.f32 %v106, 0.0
  %v111 = vld [vmem:[%s1 + $0x18] sm:$0xff]
  %v112 = vld [vmem:[%s1 + $0x20] sm:$0xff]
  %v113 = vld [vmem:[%s1 + $0x28] sm:$0x1]
  %v114 = vlaneseq
  %v115 = vshrl.u32 %v114, 7
  %v116 = vsub.s32 0, %v115
  %v117 = vrot.slane %v113, %v116
  %v119 = vsel %vm27, %v109, 0
  %v122 = vsel %vm27, %v110, 0
  %124 = vmatprep.subr.mxu0 0.0
  %125 = vmatpush1.msra.mxu0 %v111
  %126 = vmatprep.subr.mxu0 0.0
  %127 = vmatpush1.msra.mxu0 %v112
  %128 = vmatprep.subr.mxu0 0.0
  %129 = vmatpush1.msra.mxu0 0.0
  %130 = vmatprep.subr.mxu0 0.0
  %131 = vmatpush1.msra.mxu0 0.0
  %132 = vmatprep.subr.mxu0 0.0
  %133 = vmatpush1.msra.mxu0 0.0
  %134 = vmatprep.subr.mxu0 0.0
  %135 = vmatpush1.msra.mxu0 0.0
  %136 = vmatprep.subr.mxu0 0.0
  %137 = vmatpush1.msra.mxu0 0.0
  %138 = vmatprep.subr.mxu0 0.0
  %139 = vmatpush1.msra.mxu0 0.0
  %140 = vmatprep.subr.mxu0 0.0
  %141 = vmatpush1.msra.mxu0 0.0
  %142 = vmatprep.subr.mxu0 0.0
  %143 = vmatpush1.msra.mxu0 0.0
  %144 = vmatprep.subr.mxu0 0.0
  %145 = vmatpush1.msra.mxu0 0.0
  %146 = vmatprep.subr.mxu0 0.0
  %147 = vmatpush1.msra.mxu0 0.0
  %148 = vmatprep.subr.mxu0 0.0
  %149 = vmatpush1.msra.mxu0 0.0
  %150 = vmatprep.subr.mxu0 0.0
  %151 = vmatpush1.msra.mxu0 0.0
  %152 = vmatprep.subr.mxu0 0.0
  %153 = vmatpush1.msra.mxu0 0.0
  %154 = vmatprep.subr.mxu0 0.0
  %155 = vmatpush1.msra.mxu0 0.0
  %156 = vmatprep.subr.mxu0 0.0
  %157 = vmatpush1.msra.mxu0 0.0
  %158 = vmatprep.subr.mxu0 0.0
  %159 = vmatpush1.msra.mxu0 0.0
  %160 = vmatprep.subr.mxu0 0.0
  %161 = vmatpush1.msra.mxu0 0.0
  %162 = vmatprep.subr.mxu0 0.0
  %163 = vmatpush1.msra.mxu0 0.0
  %164 = vmatprep.subr.mxu0 0.0
  %165 = vmatpush1.msra.mxu0 0.0
  %166 = vmatprep.subr.mxu0 0.0
  %167 = vmatpush1.msra.mxu0 0.0
  %168 = vmatprep.subr.mxu0 0.0
  %169 = vmatpush1.msra.mxu0 0.0
  %170 = vmatprep.subr.mxu0 0.0
  %171 = vmatpush1.msra.mxu0 0.0
  %172 = vmatprep.subr.mxu0 0.0
  %173 = vmatpush1.msra.mxu0 0.0
  %174 = vmatprep.subr.mxu0 0.0
  %175 = vmatpush1.msra.mxu0 0.0
  %176 = vmatprep.subr.mxu0 0.0
  %177 = vmatpush1.msra.mxu0 0.0
  %178 = vmatprep.subr.mxu0 0.0
  %179 = vmatpush1.msra.mxu0 0.0
  %180 = vmatprep.subr.mxu0 0.0
  %181 = vmatpush1.msra.mxu0 0.0
  %182 = vmatprep.subr.mxu0 0.0
  %183 = vmatpush1.msra.mxu0 0.0
  %184 = vmatprep.subr.mxu0 0.0
  %185 = vmatpush1.msra.mxu0 0.0
  %186 = vmatprep.subr.mxu0 0.0
  %187 = vmatpush1.msra.mxu0 0.0
  %188 = vmatprep.mubr.f32.mxu0 0.0
  %189 = vmatmul.mubr.f32.gmra.mrb[0].mxu0 %v119
  %v190 = vpop.f32.mrb[0].mxu0
  %v191 = vadd.f32 %v117, %v190
  %v192 = vpop.f32.mrb[0].mxu0
  %193 = vmatprep.mubr.f32.mxu0 0.0
  %194 = vmatmul.mubr.f32.gmra.mrb[0].mxu0 %v122
  %v195 = vpop.f32.mrb[0].mxu0
  %v196 = vadd.f32 %v117, %v195
  %v197 = vpop.f32.mrb[0].mxu0
  %198 = vdwg.mxu0
  %v199 = vmax.f32 %v191, 0.0
  %v200 = vmax.f32 %v196, 0.0
  %v201 = vld [vmem:[%s1 + $0x30] sm:$0xff]
  %v202 = vld [vmem:[%s1 + $0x38] sm:$0xff]
  %v203 = vld [vmem:[%s1 + $0x40] sm:$0x1]
  %v204 = vlaneseq
  %v205 = vshrl.u32 %v204, 7
  %v206 = vsub.s32 0, %v205
  %v207 = vrot.slane %v203, %v206
  %v209 = vsel %vm27, %v199, 0
  %v212 = vsel %vm27, %v200, 0
  %214 = vmatprep.subr.mxu0 0.0
  %215 = vmatpush1.msra.mxu0 %v201
  %216 = vmatprep.subr.mxu0 0.0
  %217 = vmatpush1.msra.mxu0 %v202
  %218 = vmatprep.subr.mxu0 0.0
  %219 = vmatpush1.msra.mxu0 0.0
  %220 = vmatprep.subr.mxu0 0.0
  %221 = vmatpush1.msra.mxu0 0.0
  %222 = vmatprep.subr.mxu0 0.0
  %223 = vmatpush1.msra.mxu0 0.0
  %224 = vmatprep.subr.mxu0 0.0
  %225 = vmatpush1.msra.mxu0 0.0
  %226 = vmatprep.subr.mxu0 0.0
  %227 = vmatpush1.msra.mxu0 0.0
  %228 = vmatprep.subr.mxu0 0.0
  %229 = vmatpush1.msra.mxu0 0.0
  %230 = vmatprep.subr.mxu0 0.0
  %231 = vmatpush1.msra.mxu0 0.0
  %232 = vmatprep.subr.mxu0 0.0
  %233 = vmatpush1.msra.mxu0 0.0
  %234 = vmatprep.subr.mxu0 0.0
  %235 = vmatpush1.msra.mxu0 0.0
  %236 = vmatprep.subr.mxu0 0.0
  %237 = vmatpush1.msra.mxu0 0.0
  %238 = vmatprep.subr.mxu0 0.0
  %239 = vmatpush1.msra.mxu0 0.0
  %240 = vmatprep.subr.mxu0 0.0
  %241 = vmatpush1.msra.mxu0 0.0
  %242 = vmatprep.subr.mxu0 0.0
  %243 = vmatpush1.msra.mxu0 0.0
  %244 = vmatprep.subr.mxu0 0.0
  %245 = vmatpush1.msra.mxu0 0.0
  %246 = vmatprep.subr.mxu0 0.0
  %247 = vmatpush1.msra.mxu0 0.0
  %248 = vmatprep.subr.mxu0 0.0
  %249 = vmatpush1.msra.mxu0 0.0
  %250 = vmatprep.subr.mxu0 0.0
  %251 = vmatpush1.msra.mxu0 0.0
  %252 = vmatprep.subr.mxu0 0.0
  %253 = vmatpush1.msra.mxu0 0.0
  %254 = vmatprep.subr.mxu0 0.0
  %255 = vmatpush1.msra.mxu0 0.0
  %256 = vmatprep.subr.mxu0 0.0
  %257 = vmatpush1.msra.mxu0 0.0
  %258 = vmatprep.subr.mxu0 0.0
  %259 = vmatpush1.msra.mxu0 0.0
  %260 = vmatprep.subr.mxu0 0.0
  %261 = vmatpush1.msra.mxu0 0.0
  %262 = vmatprep.subr.mxu0 0.0
  %263 = vmatpush1.msra.mxu0 0.0
  %264 = vmatprep.subr.mxu0 0.0
  %265 = vmatpush1.msra.mxu0 0.0
  %266 = vmatprep.subr.mxu0 0.0
  %267 = vmatpush1.msra.mxu0 0.0
  %268 = vmatprep.subr.mxu0 0.0
  %269 = vmatpush1.msra.mxu0 0.0
  %270 = vmatprep.subr.mxu0 0.0
  %271 = vmatpush1.msra.mxu0 0.0
  %272 = vmatprep.subr.mxu0 0.0
  %273 = vmatpush1.msra.mxu0 0.0
  %274 = vmatprep.subr.mxu0 0.0
  %275 = vmatpush1.msra.mxu0 0.0
  %276 = vmatprep.subr.mxu0 0.0
  %277 = vmatpush1.msra.mxu0 0.0
  %278 = vmatprep.mubr.f32.mxu0 0.0
  %279 = vmatmul.mubr.f32.gmra.mrb[0].mxu0 %v209
  %v280 = vpop.f32.mrb[0].mxu0
  %v281 = vadd.f32 %v207, %v280
  %v282 = vpop.f32.mrb[0].mxu0
  %283 = vmatprep.mubr.f32.mxu0 0.0
  %284 = vmatmul.mubr.f32.gmra.mrb[0].mxu0 %v212
  %v285 = vpop.f32.mrb[0].mxu0
  %v286 = vadd.f32 %v207, %v285
  %v287 = vpop.f32.mrb[0].mxu0
  %288 = vdwg.mxu0
  %v289 = vmax.f32 %v281, 0.0
  %v290 = vmax.f32 %v286, 0.0
  %v291 = vld [vmem:[%s1 + $0x48] sm:$0xff]
  %v292 = vld [vmem:[%s1 + $0x50] sm:$0xff]
  %v293 = vld [vmem:[%s1 + $0x58] sm:$0x1]
  %v294 = vlaneseq
  %v295 = vshrl.u32 %v294, 7
  %v296 = vsub.s32 0, %v295
  %v297 = vrot.slane %v293, %v296
  %v299 = vsel %vm27, %v289, 0
  %v302 = vsel %vm27, %v290, 0
  %304 = vmatprep.subr.mxu0 0.0
  %305 = vmatpush1.msra.mxu0 %v291
  %306 = vmatprep.subr.mxu0 0.0
  %307 = vmatpush1.msra.mxu0 %v292
  %308 = vmatprep.subr.mxu0 0.0
  %309 = vmatpush1.msra.mxu0 0.0
  %310 = vmatprep.subr.mxu0 0.0
  %311 = vmatpush1.msra.mxu0 0.0
  %312 = vmatprep.subr.mxu0 0.0
  %313 = vmatpush1.msra.mxu0 0.0
  %314 = vmatprep.subr.mxu0 0.0
  %315 = vmatpush1.msra.mxu0 0.0
  %316 = vmatprep.subr.mxu0 0.0
  %317 = vmatpush1.msra.mxu0 0.0
  %318 = vmatprep.subr.mxu0 0.0
  %319 = vmatpush1.msra.mxu0 0.0
  %320 = vmatprep.subr.mxu0 0.0
  %321 = vmatpush1.msra.mxu0 0.0
  %322 = vmatprep.subr.mxu0 0.0
  %323 = vmatpush1.msra.mxu0 0.0
  %324 = vmatprep.subr.mxu0 0.0
  %325 = vmatpush1.msra.mxu0 0.0
  %326 = vmatprep.subr.mxu0 0.0
  %327 = vmatpush1.msra.mxu0 0.0
  %328 = vmatprep.subr.mxu0 0.0
  %329 = vmatpush1.msra.mxu0 0.0
  %330 = vmatprep.subr.mxu0 0.0
  %331 = vmatpush1.msra.mxu0 0.0
  %332 = vmatprep.subr.mxu0 0.0
  %333 = vmatpush1.msra.mxu0 0.0
  %334 = vmatprep.subr.mxu0 0.0
  %335 = vmatpush1.msra.mxu0 0.0
  %336 = vmatprep.subr.mxu0 0.0
  %337 = vmatpush1.msra.mxu0 0.0
  %338 = vmatprep.subr.mxu0 0.0
  %339 = vmatpush1.msra.mxu0 0.0
  %340 = vmatprep.subr.mxu0 0.0
  %341 = vmatpush1.msra.mxu0 0.0
  %342 = vmatprep.subr.mxu0 0.0
  %343 = vmatpush1.msra.mxu0 0.0
  %344 = vmatprep.subr.mxu0 0.0
  %345 = vmatpush1.msra.mxu0 0.0
  %346 = vmatprep.subr.mxu0 0.0
  %347 = vmatpush1.msra.mxu0 0.0
  %348 = vmatprep.subr.mxu0 0.0
  %349 = vmatpush1.msra.mxu0 0.0
  %350 = vmatprep.subr.mxu0 0.0
  %351 = vmatpush1.msra.mxu0 0.0
  %352 = vmatprep.subr.mxu0 0.0
  %353 = vmatpush1.msra.mxu0 0.0
  %354 = vmatprep.subr.mxu0 0.0
  %355 = vmatpush1.msra.mxu0 0.0
  %356 = vmatprep.subr.mxu0 0.0
  %357 = vmatpush1.msra.mxu0 0.0
  %358 = vmatprep.subr.mxu0 0.0
  %359 = vmatpush1.msra.mxu0 0.0
  %360 = vmatprep.subr.mxu0 0.0
  %361 = vmatpush1.msra.mxu0 0.0
  %362 = vmatprep.subr.mxu0 0.0
  %363 = vmatpush1.msra.mxu0 0.0
  %364 = vmatprep.subr.mxu0 0.0
  %365 = vmatpush1.msra.mxu0 0.0
  %366 = vmatprep.subr.mxu0 0.0
  %367 = vmatpush1.msra.mxu0 0.0
  %368 = vmatprep.mubr.f32.mxu0 0.0
  %369 = vmatmul.mubr.f32.gmra.mrb[0].mxu0 %v299
  %v370 = vpop.f32.mrb[0].mxu0
  %v371 = vadd.f32 %v297, %v370
  %v372 = vpop.f32.mrb[0].mxu0
  %373 = vmatprep.mubr.f32.mxu0 0.0
  %374 = vmatmul.mubr.f32.gmra.mrb[0].mxu0 %v302
  %v375 = vpop.f32.mrb[0].mxu0
  %v376 = vadd.f32 %v297, %v375
  %v377 = vpop.f32.mrb[0].mxu0
  %378 = vdwg.mxu0
  %v379 = vmax.f32 %v371, 0.0
  %v380 = vmax.f32 %v376, 0.0
  %v381 = vld [vmem:[%s1 + $0x60] sm:$0xff]
  %v382 = vld [vmem:[%s1 + $0x68] sm:$0xff]
  %v383 = vld [vmem:[%s1 + $0x70] sm:$0x1]
  %v384 = vlaneseq
  %v385 = vshrl.u32 %v384, 7
  %v386 = vsub.s32 0, %v385
  %v387 = vrot.slane %v383, %v386
  %v389 = vsel %vm27, %v379, 0
  %v392 = vsel %vm27, %v380, 0
  %394 = vmatprep.subr.mxu0 0.0
  %395 = vmatpush1.msra.mxu0 %v381
  %396 = vmatprep.subr.mxu0 0.0
  %397 = vmatpush1.msra.mxu0 %v382
  %398 = vmatprep.subr.mxu0 0.0
  %399 = vmatpush1.msra.mxu0 0.0
  %400 = vmatprep.subr.mxu0 0.0
  %401 = vmatpush1.msra.mxu0 0.0
  %402 = vmatprep.subr.mxu0 0.0
  %403 = vmatpush1.msra.mxu0 0.0
  %404 = vmatprep.subr.mxu0 0.0
  %405 = vmatpush1.msra.mxu0 0.0
  %406 = vmatprep.subr.mxu0 0.0
  %407 = vmatpush1.msra.mxu0 0.0
  %408 = vmatprep.subr.mxu0 0.0
  %409 = vmatpush1.msra.mxu0 0.0
  %410 = vmatprep.subr.mxu0 0.0
  %411 = vmatpush1.msra.mxu0 0.0
  %412 = vmatprep.subr.mxu0 0.0
  %413 = vmatpush1.msra.mxu0 0.0
  %414 = vmatprep.subr.mxu0 0.0
  %415 = vmatpush1.msra.mxu0 0.0
  %416 = vmatprep.subr.mxu0 0.0
  %417 = vmatpush1.msra.mxu0 0.0
  %418 = vmatprep.subr.mxu0 0.0
  %419 = vmatpush1.msra.mxu0 0.0
  %420 = vmatprep.subr.mxu0 0.0
  %421 = vmatpush1.msra.mxu0 0.0
  %422 = vmatprep.subr.mxu0 0.0
  %423 = vmatpush1.msra.mxu0 0.0
  %424 = vmatprep.subr.mxu0 0.0
  %425 = vmatpush1.msra.mxu0 0.0
  %426 = vmatprep.subr.mxu0 0.0
  %427 = vmatpush1.msra.mxu0 0.0
  %428 = vmatprep.subr.mxu0 0.0
  %429 = vmatpush1.msra.mxu0 0.0
  %430 = vmatprep.subr.mxu0 0.0
  %431 = vmatpush1.msra.mxu0 0.0
  %432 = vmatprep.subr.mxu0 0.0
  %433 = vmatpush1.msra.mxu0 0.0
  %434 = vmatprep.subr.mxu0 0.0
  %435 = vmatpush1.msra.mxu0 0.0
  %436 = vmatprep.subr.mxu0 0.0
  %437 = vmatpush1.msra.mxu0 0.0
  %438 = vmatprep.subr.mxu0 0.0
  %439 = vmatpush1.msra.mxu0 0.0
  %440 = vmatprep.subr.mxu0 0.0
  %441 = vmatpush1.msra.mxu0 0.0
  %442 = vmatprep.subr.mxu0 0.0
  %443 = vmatpush1.msra.mxu0 0.0
  %444 = vmatprep.subr.mxu0 0.0
  %445 = vmatpush1.msra.mxu0 0.0
  %446 = vmatprep.subr.mxu0 0.0
  %447 = vmatpush1.msra.mxu0 0.0
  %448 = vmatprep.subr.mxu0 0.0
  %449 = vmatpush1.msra.mxu0 0.0
  %450 = vmatprep.subr.mxu0 0.0
  %451 = vmatpush1.msra.mxu0 0.0
  %452 = vmatprep.subr.mxu0 0.0
  %453 = vmatpush1.msra.mxu0 0.0
  %454 = vmatprep.subr.mxu0 0.0
  %455 = vmatpush1.msra.mxu0 0.0
  %456 = vmatprep.subr.mxu0 0.0
  %457 = vmatpush1.msra.mxu0 0.0
  %458 = vmatprep.mubr.f32.mxu0 0.0
  %459 = vmatmul.mubr.f32.gmra.mrb[0].mxu0 %v389
  %v460 = vpop.f32.mrb[0].mxu0
  %v461 = vadd.f32 %v387, %v460
  %v462 = vpop.f32.mrb[0].mxu0
  %463 = vmatprep.mubr.f32.mxu0 0.0
  %464 = vmatmul.mubr.f32.gmra.mrb[0].mxu0 %v392
  %v465 = vpop.f32.mrb[0].mxu0
  %v466 = vadd.f32 %v387, %v465
  %v467 = vpop.f32.mrb[0].mxu0
  %468 = vdwg.mxu0
  %v469 = vmax.f32 %v461, 0.0
  %v470 = vmax.f32 %v466, 0.0
  %v471 = vadd.f32 %v109, %v469
  %v472 = vadd.f32 %v110, %v470
  %v473 = vld [vmem:[%s1 + $0x78] sm:$0xff]
  %v474 = vld [vmem:[%s1 + $0x80] sm:$0xff]
  %v476 = vsel %vm27, %v471, 0
  %v479 = vsel %vm27, %v472, 0
  %481 = vmatprep.subr.mxu0 0.0
  %482 = vmatpush1.msra.mxu0 %v473
  %483 = vmatprep.subr.mxu0 0.0
  %484 = vmatpush1.msra.mxu0 %v474
  %485 = vmatprep.subr.mxu0 0.0
  %486 = vmatpush1.msra.mxu0 0.0
  %487 = vmatprep.subr.mxu0 0.0
  %488 = vmatpush1.msra.mxu0 0.0
  %489 = vmatprep.subr.mxu0 0.0
  %490 = vmatpush1.msra.mxu0 0.0
  %491 = vmatprep.subr.mxu0 0.0
  %492 = vmatpush1.msra.mxu0 0.0
  %493 = vmatprep.subr.mxu0 0.0
  %494 = vmatpush1.msra.mxu0 0.0
  %495 = vmatprep.subr.mxu0 0.0
  %496 = vmatpush1.msra.mxu0 0.0
  %497 = vmatprep.subr.mxu0 0.0
  %498 = vmatpush1.msra.mxu0 0.0
  %499 = vmatprep.subr.mxu0 0.0
  %500 = vmatpush1.msra.mxu0 0.0
  %501 = vmatprep.subr.mxu0 0.0
  %502 = vmatpush1.msra.mxu0 0.0
  %503 = vmatprep.subr.mxu0 0.0
  %504 = vmatpush1.msra.mxu0 0.0
  %505 = vmatprep.subr.mxu0 0.0
  %506 = vmatpush1.msra.mxu0 0.0
  %507 = vmatprep.subr.mxu0 0.0
  %508 = vmatpush1.msra.mxu0 0.0
  %509 = vmatprep.subr.mxu0 0.0
  %510 = vmatpush1.msra.mxu0 0.0
  %511 = vmatprep.subr.mxu0 0.0
  %512 = vmatpush1.msra.mxu0 0.0
  %513 = vmatprep.subr.mxu0 0.0
  %514 = vmatpush1.msra.mxu0 0.0
  %515 = vmatprep.subr.mxu0 0.0
  %516 = vmatpush1.msra.mxu0 0.0
  %517 = vmatprep.subr.mxu0 0.0
  %518 = vmatpush1.msra.mxu0 0.0
  %519 = vmatprep.subr.mxu0 0.0
  %520 = vmatpush1.msra.mxu0 0.0
  %521 = vmatprep.subr.mxu0 0.0
  %522 = vmatpush1.msra.mxu0 0.0
  %523 = vmatprep.subr.mxu0 0.0
  %524 = vmatpush1.msra.mxu0 0.0
  %525 = vmatprep.subr.mxu0 0.0
  %526 = vmatpush1.msra.mxu0 0.0
  %527 = vmatprep.subr.mxu0 0.0
  %528 = vmatpush1.msra.mxu0 0.0
  %529 = vmatprep.subr.mxu0 0.0
  %530 = vmatpush1.msra.mxu0 0.0
  %531 = vmatprep.subr.mxu0 0.0
  %532 = vmatpush1.msra.mxu0 0.0
  %533 = vmatprep.subr.mxu0 0.0
  %534 = vmatpush1.msra.mxu0 0.0
  %535 = vmatprep.subr.mxu0 0.0
  %536 = vmatpush1.msra.mxu0 0.0
  %537 = vmatprep.subr.mxu0 0.0
  %538 = vmatpush1.msra.mxu0 0.0
  %539 = vmatprep.subr.mxu0 0.0
  %540 = vmatpush1.msra.mxu0 0.0
  %541 = vmatprep.subr.mxu0 0.0
  %542 = vmatpush1.msra.mxu0 0.0
  %543 = vmatprep.subr.mxu0 0.0
  %544 = vmatpush1.msra.mxu0 0.0
  %545 = vmatprep.mubr.f32.mxu0 0.0
  %546 = vmatmul.mubr.f32.gmra.mrb[0].mxu0 %v476
  %v547 = vpop.f32.mrb[0].mxu0
  %v548 = vadd.f32 0.0, %v547
  %v549 = vpop.f32.mrb[0].mxu0
  %550 = vmatprep.mubr.f32.mxu0 0.0
  %551 = vmatmul.mubr.f32.gmra.mrb[0].mxu0 %v479
  %v552 = vpop.f32.mrb[0].mxu0
  %v553 = vadd.f32 0.0, %v552
  %v554 = vpop.f32.mrb[0].mxu0
  %555 = vdwg.mxu0
  %558 = vset.pattern.permute.xlu0 64
  %559 = vperm.xlu0 %558, %v548
  %v560 = vpop.permute.xlu0 %559
  %561 = vset.pattern.permute.xlu0 64
  %562 = vperm.xlu0 %561, %v553
  %v563 = vpop.permute.xlu0 %562
  %v564 = vlaneseq
  %v565 = vand.u32 %v564, 127
  %v566 = vadd.s32 %v565, 4294967232
  %v567 = vlaneseq
  %v568 = vshrl.u32 %v567, 7
  %v569 = vsub.s32 %v566, %v568
  %v570 = vrot.slane %v560, %v569
  %v571 = vadd.s32 %v565, 4294967224
  %v572 = vlaneseq
  %v573 = vshrl.u32 %v572, 7
  %v574 = vsub.s32 %v571, %v573
  %v575 = vrot.slane %v563, %v574
  %vm576 = vcmask 654912
  %v577 = vsel %vm576, %v575, %v570
  %vm578 = vcmask 1042434
  %v579 = vsel %vm578, %v577, %v577
  %vm580 = vcmask 1043459
  %v581 = vsel %vm580, %v577, %v579
  %vm582 = vcmask 1044484
  %v583 = vsel %vm582, %v577, %v581
  %vm584 = vcmask 1045509
  %v585 = vsel %vm584, %v577, %v583
  %vm586 = vcmask 1046534
  %v587 = vsel %vm586, %v577, %v585
  %vm588 = vcmask 1047559
  %v589 = vsel %vm588, %v577, %v587
  %591 = vset.pattern.permute.xlu0 65
  %592 = vperm.xlu0 %591, %v548
  %v593 = vpop.permute.xlu0 %592
  %594 = vset.pattern.permute.xlu0 65
  %595 = vperm.xlu0 %594, %v553
  %v596 = vpop.permute.xlu0 %595
  %v597 = vlaneseq
  %v598 = vshrl.u32 %v597, 7
  %v599 = vsub.s32 %v566, %v598
  %v600 = vrot.slane %v593, %v599
  %v601 = vlaneseq
  %v602 = vshrl.u32 %v601, 7
  %v603 = vsub.s32 %v571, %v602
  %v604 = vrot.slane %v596, %v603
  %v605 = vsel %vm576, %v604, %v600
  %v606 = vsel %vm578, %v605, %v605
  %v607 = vsel %vm580, %v605, %v606
  %v608 = vsel %vm582, %v605, %v607
  %v609 = vsel %vm584, %v605, %v608
  %v610 = vsel %vm586, %v605, %v609
  %v611 = vsel %vm588, %v605, %v610
  %613 = vrot.lane.b32.xlu0 %v548, 127
  %v614 = vpop.permute.xlu0 %613
  %615 = vrot.lane.b32.xlu0 %v553, 127
  %v616 = vpop.permute.xlu0 %615
  %617 = vset.pattern.permute.xlu0 66
  %618 = vperm.xlu0 %617, %v548
  %v619 = vpop.permute.xlu0 %618
  %621 = vset.pattern.permute.xlu0 66
  %622 = vperm.xlu0 %621, %v553
  %v623 = vpop.permute.xlu0 %622
  %625 = vset.pattern.permute.xlu0 66
  %626 = vperm.xlu0 %625, %v614
  %v627 = vpop.permute.xlu0 %626
  %629 = vset.pattern.permute.xlu0 66
  %630 = vperm.xlu0 %629, %v616
  %v631 = vpop.permute.xlu0 %630
  %v633 = vadd.f32 %v619, %v589
  %v634 = vadd.f32 %v623, %v589
  %v635 = vadd.f32 %v627, %v611
  %v636 = vadd.f32 %v631, %v611
  %v637 = vmul.f32 %v633, 0.2
  %v638 = vmul.f32 %v634, 0.2
  %v639 = vmul.f32 %v635, 0.2
  %v640 = vmul.f32 %v636, 0.2
  %v641 = vmax.f32 %v633, %v637
  %v642 = vmax.f32 %v634, %v638
  %v643 = vmax.f32 %v635, %v639
  %v644 = vmax.f32 %v636, %v640
  %647 = vrot.lane.b32.xlu0 %v18, 64
  %v648 = vpop.permute.xlu0 %647
  %649 = vrot.lane.b32.xlu0 %v19, 64
  %v650 = vpop.permute.xlu0 %649
  %v653 = vadd.f32 %v641, %v648
  %v654 = vadd.f32 %v642, %v650
  %v655 = vadd.f32 %v643, %v648
  %v656 = vadd.f32 %v644, %v650
  %vm657 = vcmask 654848
  %v658 = vsel %vm657, %v653, -inf
  %659 = vmax.xlane.f32.xlu0 %v658
  %v660 = vpop.xlane.xlu0 %659
  %v661 = vsel %vm657, %v654, -inf
  %662 = vmax.xlane.f32.xlu0 %v661
  %v663 = vpop.xlane.xlu0 %662
  %v664 = vsel %vm657, %v655, -inf
  %665 = vmax.xlane.f32.xlu0 %v664
  %v666 = vpop.xlane.xlu0 %665
  %v667 = vsel %vm657, %v656, -inf
  %668 = vmax.xlane.f32.xlu0 %v667
  %v669 = vpop.xlane.xlu0 %668
  %v670 = vsub.f32 %v653, %v660
  %v671 = vsub.f32 %v654, %v663
  %v672 = vsub.f32 %v655, %v666
  %v673 = vsub.f32 %v656, %v669
  %v674 = vmul.f32 %v670, 1.442695
  %v675 = vpow.pop %v674
  %v676 = vmul.f32 %v671, 1.442695
  %v677 = vpow.pop %v676
  %v678 = vmul.f32 %v672, 1.442695
  %v679 = vpow.pop %v678
  %v680 = vmul.f32 %v673, 1.442695
  %v681 = vpow.pop %v680
  %686 = vrot.lane.b32.xlu0 %v675, 64
  %v687 = vpop.permute.xlu0 %686
  %688 = vrot.lane.b32.xlu0 %v677, 64
  %v689 = vpop.permute.xlu0 %688
  %690 = vrot.lane.b32.xlu0 %v679, 64
  %v691 = vpop.permute.xlu0 %690
  %692 = vrot.lane.b32.xlu0 %v681, 64
  %v693 = vpop.permute.xlu0 %692
  %v698 = vsel %vm27, %v687, 0.0
  %699 = vadd.xlane.f32.xlu0 %v698
  %v700 = vpop.xlane.xlu0 %699
  %v701 = vsel %vm27, %v689, 0.0
  %702 = vadd.xlane.f32.xlu0 %v701
  %v703 = vpop.xlane.xlu0 %702
  %v704 = vsel %vm27, %v691, 0.0
  %705 = vadd.xlane.f32.xlu0 %v704
  %v706 = vpop.xlane.xlu0 %705
  %v707 = vsel %vm27, %v693, 0.0
  %708 = vadd.xlane.f32.xlu0 %v707
  %v709 = vpop.xlane.xlu0 %708
  %v710 = vrcp.pop %v700
  %v711 = vmul.f32 %v675, %v710
  %v712 = vrcp.pop %v703
  %v713 = vmul.f32 %v677, %v712
  %v714 = vrcp.pop %v706
  %v715 = vmul.f32 %v679, %v714
  %v716 = vrcp.pop %v709
  %v717 = vmul.f32 %v681, %v716
  %720 = vrot.lane.b32.xlu0 %v711, 64
  %v721 = vpop.permute.xlu0 %720
  %722 = vrot.lane.b32.xlu0 %v713, 64
  %v723 = vpop.permute.xlu0 %722
  %v724 = vsel %vm27, %v721, 0
  %v726 = vsel %vm27, %v723, 0
  %728 = vmatprep.subr.mxu0 0.0
  %729 = vmatpush1.msra.mxu0 %v548
  %730 = vmatprep.subr.mxu0 0.0
  %731 = vmatpush1.msra.mxu0 %v553
  %732 = vmatprep.subr.mxu0 0.0
  %733 = vmatpush1.msra.mxu0 0.0
  %734 = vmatprep.subr.mxu0 0.0
  %735 = vmatpush1.msra.mxu0 0.0
  %736 = vmatprep.subr.mxu0 0.0
  %737 = vmatpush1.msra.mxu0 0.0
  %738 = vmatprep.subr.mxu0 0.0
  %739 = vmatpush1.msra.mxu0 0.0
  %740 = vmatprep.subr.mxu0 0.0
  %741 = vmatpush1.msra.mxu0 0.0
  %742 = vmatprep.subr.mxu0 0.0
  %743 = vmatpush1.msra.mxu0 0.0
  %744 = vmatprep.subr.mxu0 0.0
  %745 = vmatpush1.msra.mxu0 0.0
  %746 = vmatprep.subr.mxu0 0.0
  %747 = vmatpush1.msra.mxu0 0.0
  %748 = vmatprep.subr.mxu0 0.0
  %749 = vmatpush1.msra.mxu0 0.0
  %750 = vmatprep.subr.mxu0 0.0
  %751 = vmatpush1.msra.mxu0 0.0
  %752 = vmatprep.subr.mxu0 0.0
  %753 = vmatpush1.msra.mxu0 0.0
  %754 = vmatprep.subr.mxu0 0.0
  %755 = vmatpush1.msra.mxu0 0.0
  %756 = vmatprep.subr.mxu0 0.0
  %757 = vmatpush1.msra.mxu0 0.0
  %758 = vmatprep.subr.mxu0 0.0
  %759 = vmatpush1.msra.mxu0 0.0
  %760 = vmatprep.subr.mxu0 0.0
  %761 = vmatpush1.msra.mxu0 0.0
  %762 = vmatprep.subr.mxu0 0.0
  %763 = vmatpush1.msra.mxu0 0.0
  %764 = vmatprep.subr.mxu0 0.0
  %765 = vmatpush1.msra.mxu0 0.0
  %766 = vmatprep.subr.mxu0 0.0
  %767 = vmatpush1.msra.mxu0 0.0
  %768 = vmatprep.subr.mxu0 0.0
  %769 = vmatpush1.msra.mxu0 0.0
  %770 = vmatprep.subr.mxu0 0.0
  %771 = vmatpush1.msra.mxu0 0.0
  %772 = vmatprep.subr.mxu0 0.0
  %773 = vmatpush1.msra.mxu0 0.0
  %774 = vmatprep.subr.mxu0 0.0
  %775 = vmatpush1.msra.mxu0 0.0
  %776 = vmatprep.subr.mxu0 0.0
  %777 = vmatpush1.msra.mxu0 0.0
  %778 = vmatprep.subr.mxu0 0.0
  %779 = vmatpush1.msra.mxu0 0.0
  %780 = vmatprep.subr.mxu0 0.0
  %781 = vmatpush1.msra.mxu0 0.0
  %782 = vmatprep.subr.mxu0 0.0
  %783 = vmatpush1.msra.mxu0 0.0
  %784 = vmatprep.subr.mxu0 0.0
  %785 = vmatpush1.msra.mxu0 0.0
  %786 = vmatprep.subr.mxu0 0.0
  %787 = vmatpush1.msra.mxu0 0.0
  %788 = vmatprep.subr.mxu0 0.0
  %789 = vmatpush1.msra.mxu0 0.0
  %790 = vmatprep.subr.mxu0 0.0
  %791 = vmatpush1.msra.mxu0 0.0
  %792 = vmatprep.mubr.f32.mxu0 0.0
  %793 = vmatmul.mubr.f32.gmra.mrb[0].mxu0 %v724
  %v794 = vpop.f32.mrb[0].mxu0
  %v795 = vadd.f32 0.0, %v794
  %v796 = vpop.f32.mrb[0].mxu0
  %797 = vmatprep.mubr.f32.mxu0 0.0
  %798 = vmatmul.mubr.f32.gmra.mrb[0].mxu0 %v726
  %v799 = vpop.f32.mrb[0].mxu0
  %v800 = vadd.f32 0.0, %v799
  %v801 = vpop.f32.mrb[0].mxu0
  %802 = vdwg.mxu0
  %805 = vrot.lane.b32.xlu0 %v715, 64
  %v806 = vpop.permute.xlu0 %805
  %807 = vrot.lane.b32.xlu0 %v717, 64
  %v808 = vpop.permute.xlu0 %807
  %809 = vrot.lane.b32.xlu0 %v548, 96
  %v810 = vpop.permute.xlu0 %809
  %811 = vrot.lane.b32.xlu0 %v553, 96
  %v812 = vpop.permute.xlu0 %811
  %v815 = vsel %vm27, %v806, 0
  %v817 = vsel %vm27, %v808, 0
  %819 = vmatprep.subr.mxu0 0.0
  %820 = vmatpush1.msra.mxu0 %v810
  %821 = vmatprep.subr.mxu0 0.0
  %822 = vmatpush1.msra.mxu0 %v812
  %823 = vmatprep.subr.mxu0 0.0
  %824 = vmatpush1.msra.mxu0 0.0
  %825 = vmatprep.subr.mxu0 0.0
  %826 = vmatpush1.msra.mxu0 0.0
  %827 = vmatprep.subr.mxu0 0.0
  %828 = vmatpush1.msra.mxu0 0.0
  %829 = vmatprep.subr.mxu0 0.0
  %830 = vmatpush1.msra.mxu0 0.0
  %831 = vmatprep.subr.mxu0 0.0
  %832 = vmatpush1.msra.mxu0 0.0
  %833 = vmatprep.subr.mxu0 0.0
  %834 = vmatpush1.msra.mxu0 0.0
  %835 = vmatprep.subr.mxu0 0.0
  %836 = vmatpush1.msra.mxu0 0.0
  %837 = vmatprep.subr.mxu0 0.0
  %838 = vmatpush1.msra.mxu0 0.0
  %839 = vmatprep.subr.mxu0 0.0
  %840 = vmatpush1.msra.mxu0 0.0
  %841 = vmatprep.subr.mxu0 0.0
  %842 = vmatpush1.msra.mxu0 0.0
  %843 = vmatprep.subr.mxu0 0.0
  %844 = vmatpush1.msra.mxu0 0.0
  %845 = vmatprep.subr.mxu0 0.0
  %846 = vmatpush1.msra.mxu0 0.0
  %847 = vmatprep.subr.mxu0 0.0
  %848 = vmatpush1.msra.mxu0 0.0
  %849 = vmatprep.subr.mxu0 0.0
  %850 = vmatpush1.msra.mxu0 0.0
  %851 = vmatprep.subr.mxu0 0.0
  %852 = vmatpush1.msra.mxu0 0.0
  %853 = vmatprep.subr.mxu0 0.0
  %854 = vmatpush1.msra.mxu0 0.0
  %855 = vmatprep.subr.mxu0 0.0
  %856 = vmatpush1.msra.mxu0 0.0
  %857 = vmatprep.subr.mxu0 0.0
  %858 = vmatpush1.msra.mxu0 0.0
  %859 = vmatprep.subr.mxu0 0.0
  %860 = vmatpush1.msra.mxu0 0.0
  %861 = vmatprep.subr.mxu0 0.0
  %862 = vmatpush1.msra.mxu0 0.0
  %863 = vmatprep.subr.mxu0 0.0
  %864 = vmatpush1.msra.mxu0 0.0
  %865 = vmatprep.subr.mxu0 0.0
  %866 = vmatpush1.msra.mxu0 0.0
  %867 = vmatprep.subr.mxu0 0.0
  %868 = vmatpush1.msra.mxu0 0.0
  %869 = vmatprep.subr.mxu0 0.0
  %870 = vmatpush1.msra.mxu0 0.0
  %871 = vmatprep.subr.mxu0 0.0
  %872 = vmatpush1.msra.mxu0 0.0
  %873 = vmatprep.subr.mxu0 0.0
  %874 = vmatpush1.msra.mxu0 0.0
  %875 = vmatprep.subr.mxu0 0.0
  %876 = vmatpush1.msra.mxu0 0.0
  %877 = vmatprep.subr.mxu0 0.0
  %878 = vmatpush1.msra.mxu0 0.0
  %879 = vmatprep.subr.mxu0 0.0
  %880 = vmatpush1.msra.mxu0 0.0
  %881 = vmatprep.subr.mxu0 0.0
  %882 = vmatpush1.msra.mxu0 0.0
  %883 = vmatprep.mubr.f32.mxu0 0.0
  %884 = vmatmul.mubr.f32.gmra.mrb[0].mxu0 %v815
  %v885 = vpop.f32.mrb[0].mxu0
  %v886 = vadd.f32 0.0, %v885
  %v887 = vpop.f32.mrb[0].mxu0
  %888 = vmatprep.mubr.f32.mxu0 0.0
  %889 = vmatmul.mubr.f32.gmra.mrb[0].mxu0 %v817
  %v890 = vpop.f32.mrb[0].mxu0
  %v891 = vadd.f32 0.0, %v890
  %v892 = vpop.f32.mrb[0].mxu0
  %893 = vdwg.mxu0
  %896 = vrot.lane.b32.xlu0 %v886, 32
  %v897 = vpop.permute.xlu0 %896
  %898 = vrot.lane.b32.xlu0 %v891, 32
  %v899 = vpop.permute.xlu0 %898
  %vm902 = vcmask 261120
  %v903 = vsel %vm902, %v795, %v897
  %v904 = vsel %vm902, %v800, %v899
  %v905 = vld [vmem:[%s1 + $0x88] sm:$0x1]
  %v906 = vlaneseq
  %v907 = vshrl.u32 %v906, 7
  %v908 = vsub.s32 0, %v907
  %v909 = vrot.slane %v905, %v908
  %v910 = vadd.f32 %v903, %v909
  %v911 = vadd.f32 %v904, %v909
  %v912 = vmax.f32 %v910, 0.0
  %v913 = vmax.f32 %v911, 0.0
  %v914 = vld [vmem:[%s1 + $0x90] sm:$0xff]
  %v915 = vld [vmem:[%s1 + $0x98] sm:$0xff]
  %v916 = vld [vmem:[%s1 + $0xa0] sm:$0xff]
  %v917 = vld [vmem:[%s1 + $0xa8] sm:$0xff]
  %v918 = vld [vmem:[%s1 + $0xb0] sm:$0xff]
  %v919 = vld [vmem:[%s1 + $0xb8] sm:$0xff]
  %v920 = vld [vmem:[%s1 + $0xc0] sm:$0xff]
  %v921 = vld [vmem:[%s1 + $0xc8] sm:$0xff]
  %vm922 = vcmask 523264
  %v924 = vsel %vm922, %v912, 0
  %v927 = vsel %vm922, %v913, 0
  %929 = vmatprep.subr.mxu0 0.0
  %930 = vmatpush1.msra.mxu0 %v914
  %931 = vmatprep.subr.mxu0 0.0
  %932 = vmatpush1.msra.mxu0 %v915
  %933 = vmatprep.subr.mxu0 0.0
  %934 = vmatpush1.msra.mxu0 %v916
  %935 = vmatprep.subr.mxu0 0.0
  %936 = vmatpush1.msra.mxu0 %v917
  %937 = vmatprep.subr.mxu0 0.0
  %938 = vmatpush1.msra.mxu0 %v918
  %939 = vmatprep.subr.mxu0 0.0
  %940 = vmatpush1.msra.mxu0 %v919
  %941 = vmatprep.subr.mxu0 0.0
  %942 = vmatpush1.msra.mxu0 %v920
  %943 = vmatprep.subr.mxu0 0.0
  %944 = vmatpush1.msra.mxu0 %v921
  %945 = vmatprep.subr.mxu0 0.0
  %946 = vmatpush1.msra.mxu0 0.0
  %947 = vmatprep.subr.mxu0 0.0
  %948 = vmatpush1.msra.mxu0 0.0
  %949 = vmatprep.subr.mxu0 0.0
  %950 = vmatpush1.msra.mxu0 0.0
  %951 = vmatprep.subr.mxu0 0.0
  %952 = vmatpush1.msra.mxu0 0.0
  %953 = vmatprep.subr.mxu0 0.0
  %954 = vmatpush1.msra.mxu0 0.0
  %955 = vmatprep.subr.mxu0 0.0
  %956 = vmatpush1.msra.mxu0 0.0
  %957 = vmatprep.subr.mxu0 0.0
  %958 = vmatpush1.msra.mxu0 0.0
  %959 = vmatprep.subr.mxu0 0.0
  %960 = vmatpush1.msra.mxu0 0.0
  %961 = vmatprep.subr.mxu0 0.0
  %962 = vmatpush1.msra.mxu0 0.0
  %963 = vmatprep.subr.mxu0 0.0
  %964 = vmatpush1.msra.mxu0 0.0
  %965 = vmatprep.subr.mxu0 0.0
  %966 = vmatpush1.msra.mxu0 0.0
  %967 = vmatprep.subr.mxu0 0.0
  %968 = vmatpush1.msra.mxu0 0.0
  %969 = vmatprep.subr.mxu0 0.0
  %970 = vmatpush1.msra.mxu0 0.0
  %971 = vmatprep.subr.mxu0 0.0
  %972 = vmatpush1.msra.mxu0 0.0
  %973 = vmatprep.subr.mxu0 0.0
  %974 = vmatpush1.msra.mxu0 0.0
  %975 = vmatprep.subr.mxu0 0.0
  %976 = vmatpush1.msra.mxu0 0.0
  %977 = vmatprep.subr.mxu0 0.0
  %978 = vmatpush1.msra.mxu0 0.0
  %979 = vmatprep.subr.mxu0 0.0
  %980 = vmatpush1.msra.mxu0 0.0
  %981 = vmatprep.subr.mxu0 0.0
  %982 = vmatpush1.msra.mxu0 0.0
  %983 = vmatprep.subr.mxu0 0.0
  %984 = vmatpush1.msra.mxu0 0.0
  %985 = vmatprep.subr.mxu0 0.0
  %986 = vmatpush1.msra.mxu0 0.0
  %987 = vmatprep.subr.mxu0 0.0
  %988 = vmatpush1.msra.mxu0 0.0
  %989 = vmatprep.subr.mxu0 0.0
  %990 = vmatpush1.msra.mxu0 0.0
  %991 = vmatprep.subr.mxu0 0.0
  %992 = vmatpush1.msra.mxu0 0.0
  %993 = vmatprep.mubr.f32.mxu0 0.0
  %994 = vmatmul.mubr.f32.gmra.mrb[0].mxu0 %v924
  %v995 = vpop.f32.mrb[0].mxu0
  %v996 = vadd.f32 0.0, %v995
  %v997 = vpop.f32.mrb[0].mxu0
  %998 = vmatprep.mubr.f32.mxu0 0.0
  %999 = vmatmul.mubr.f32.gmra.mrb[0].mxu0 %v927
  %v1000 = vpop.f32.mrb[0].mxu0
  %v1001 = vadd.f32 0.0, %v1000
  %v1002 = vpop.f32.mrb[0].mxu0
  %1003 = vdwg.mxu0
  %1006 = vset.pattern.permute.xlu0 64
  %1007 = vperm.xlu0 %1006, %v996
  %v1008 = vpop.permute.xlu0 %1007
  %1009 = vset.pattern.permute.xlu0 64
  %1010 = vperm.xlu0 %1009, %v1001
  %v1011 = vpop.permute.xlu0 %1010
  %v1012 = vlaneseq
  %v1013 = vshrl.u32 %v1012, 7
  %v1014 = vsub.s32 %v566, %v1013
  %v1015 = vrot.slane %v1008, %v1014
  %v1016 = vlaneseq
  %v1017 = vshrl.u32 %v1016, 7
  %v1018 = vsub.s32 %v571, %v1017
  %v1019 = vrot.slane %v1011, %v1018
  %v1020 = vsel %vm576, %v1019, %v1015
  %v1021 = vsel %vm578, %v1020, %v1020
  %v1022 = vsel %vm580, %v1020, %v1021
  %v1023 = vsel %vm582, %v1020, %v1022
  %v1024 = vsel %vm584, %v1020, %v1023
  %v1025 = vsel %vm586, %v1020, %v1024
  %v1026 = vsel %vm588, %v1020, %v1025
  %1028 = vset.pattern.permute.xlu0 65
  %1029 = vperm.xlu0 %1028, %v996
  %v1030 = vpop.permute.xlu0 %1029
  %1031 = vset.pattern.permute.xlu0 65
  %1032 = vperm.xlu0 %1031, %v1001
  %v1033 = vpop.permute.xlu0 %1032
  %v1034 = vlaneseq
  %v1035 = vshrl.u32 %v1034, 7
  %v1036 = vsub.s32 %v566, %v1035
  %v1037 = vrot.slane %v1030, %v1036
  %v1038 = vlaneseq
  %v1039 = vshrl.u32 %v1038, 7
  %v1040 = vsub.s32 %v571, %v1039
  %v1041 = vrot.slane %v1033, %v1040
  %v1042 = vsel %vm576, %v1041, %v1037
  %v1043 = vsel %vm578, %v1042, %v1042
  %v1044 = vsel %vm580, %v1042, %v1043
  %v1045 = vsel %vm582, %v1042, %v1044
  %v1046 = vsel %vm584, %v1042, %v1045
  %v1047 = vsel %vm586, %v1042, %v1046
  %v1048 = vsel %vm588, %v1042, %v1047
  %1050 = vrot.lane.b32.xlu0 %v996, 127
  %v1051 = vpop.permute.xlu0 %1050
  %1052 = vrot.lane.b32.xlu0 %v1001, 127
  %v1053 = vpop.permute.xlu0 %1052
  %1054 = vset.pattern.permute.xlu0 66
  %1055 = vperm.xlu0 %1054, %v996
  %v1056 = vpop.permute.xlu0 %1055
  %1058 = vset.pattern.permute.xlu0 66
  %1059 = vperm.xlu0 %1058, %v1001
  %v1060 = vpop.permute.xlu0 %1059
  %1062 = vset.pattern.permute.xlu0 66
  %1063 = vperm.xlu0 %1062, %v1051
  %v1064 = vpop.permute.xlu0 %1063
  %1066 = vset.pattern.permute.xlu0 66
  %1067 = vperm.xlu0 %1066, %v1053
  %v1068 = vpop.permute.xlu0 %1067
  %v1070 = vadd.f32 %v1056, %v1026
  %v1071 = vadd.f32 %v1060, %v1026
  %v1072 = vadd.f32 %v1064, %v1048
  %v1073 = vadd.f32 %v1068, %v1048
  %v1074 = vmul.f32 %v1070, 0.2
  %v1075 = vmul.f32 %v1071, 0.2
  %v1076 = vmul.f32 %v1072, 0.2
  %v1077 = vmul.f32 %v1073, 0.2
  %v1078 = vmax.f32 %v1070, %v1074
  %v1079 = vmax.f32 %v1071, %v1075
  %v1080 = vmax.f32 %v1072, %v1076
  %v1081 = vmax.f32 %v1073, %v1077
  %v1082 = vadd.f32 %v1078, %v648
  %v1083 = vadd.f32 %v1079, %v650
  %v1084 = vadd.f32 %v1080, %v648
  %v1085 = vadd.f32 %v1081, %v650
  %v1086 = vsel %vm657, %v1082, -inf
  %1087 = vmax.xlane.f32.xlu0 %v1086
  %v1088 = vpop.xlane.xlu0 %1087
  %v1089 = vsel %vm657, %v1083, -inf
  %1090 = vmax.xlane.f32.xlu0 %v1089
  %v1091 = vpop.xlane.xlu0 %1090
  %v1092 = vsel %vm657, %v1084, -inf
  %1093 = vmax.xlane.f32.xlu0 %v1092
  %v1094 = vpop.xlane.xlu0 %1093
  %v1095 = vsel %vm657, %v1085, -inf
  %1096 = vmax.xlane.f32.xlu0 %v1095
  %v1097 = vpop.xlane.xlu0 %1096
  %v1098 = vsub.f32 %v1082, %v1088
  %v1099 = vsub.f32 %v1083, %v1091
  %v1100 = vsub.f32 %v1084, %v1094
  %v1101 = vsub.f32 %v1085, %v1097
  %v1102 = vmul.f32 %v1098, 1.442695
  %v1103 = vpow.pop %v1102
  %v1104 = vmul.f32 %v1099, 1.442695
  %v1105 = vpow.pop %v1104
  %v1106 = vmul.f32 %v1100, 1.442695
  %v1107 = vpow.pop %v1106
  %v1108 = vmul.f32 %v1101, 1.442695
  %v1109 = vpow.pop %v1108
  %1114 = vrot.lane.b32.xlu0 %v1103, 64
  %v1115 = vpop.permute.xlu0 %1114
  %1116 = vrot.lane.b32.xlu0 %v1105, 64
  %v1117 = vpop.permute.xlu0 %1116
  %1118 = vrot.lane.b32.xlu0 %v1107, 64
  %v1119 = vpop.permute.xlu0 %1118
  %1120 = vrot.lane.b32.xlu0 %v1109, 64
  %v1121 = vpop.permute.xlu0 %1120
  %v1126 = vsel %vm27, %v1115, 0.0
  %1127 = vadd.xlane.f32.xlu0 %v1126
  %v1128 = vpop.xlane.xlu0 %1127
  %v1129 = vsel %vm27, %v1117, 0.0
  %1130 = vadd.xlane.f32.xlu0 %v1129
  %v1131 = vpop.xlane.xlu0 %1130
  %v1132 = vsel %vm27, %v1119, 0.0
  %1133 = vadd.xlane.f32.xlu0 %v1132
  %v1134 = vpop.xlane.xlu0 %1133
  %v1135 = vsel %vm27, %v1121, 0.0
  %1136 = vadd.xlane.f32.xlu0 %v1135
  %v1137 = vpop.xlane.xlu0 %1136
  %v1138 = vrcp.pop %v1128
  %v1139 = vmul.f32 %v1103, %v1138
  %v1140 = vrcp.pop %v1131
  %v1141 = vmul.f32 %v1105, %v1140
  %v1142 = vrcp.pop %v1134
  %v1143 = vmul.f32 %v1107, %v1142
  %v1144 = vrcp.pop %v1137
  %v1145 = vmul.f32 %v1109, %v1144
  %1148 = vrot.lane.b32.xlu0 %v1139, 64
  %v1149 = vpop.permute.xlu0 %1148
  %1150 = vrot.lane.b32.xlu0 %v1141, 64
  %v1151 = vpop.permute.xlu0 %1150
  %v1152 = vsel %vm27, %v1149, 0
  %v1154 = vsel %vm27, %v1151, 0
  %1156 = vmatprep.subr.mxu0 0.0
  %1157 = vmatpush1.msra.mxu0 %v996
  %1158 = vmatprep.subr.mxu0 0.0
  %1159 = vmatpush1.msra.mxu0 %v1001
  %1160 = vmatprep.subr.mxu0 0.0
  %1161 = vmatpush1.msra.mxu0 0.0
  %1162 = vmatprep.subr.mxu0 0.0
  %1163 = vmatpush1.msra.mxu0 0.0
  %1164 = vmatprep.subr.mxu0 0.0
  %1165 = vmatpush1.msra.mxu0 0.0
  %1166 = vmatprep.subr.mxu0 0.0
  %1167 = vmatpush1.msra.mxu0 0.0
  %1168 = vmatprep.subr.mxu0 0.0
  %1169 = vmatpush1.msra.mxu0 0.0
  %1170 = vmatprep.subr.mxu0 0.0
  %1171 = vmatpush1.msra.mxu0 0.0
  %1172 = vmatprep.subr.mxu0 0.0
  %1173 = vmatpush1.msra.mxu0 0.0
  %1174 = vmatprep.subr.mxu0 0.0
  %1175 = vmatpush1.msra.mxu0 0.0
  %1176 = vmatprep.subr.mxu0 0.0
  %1177 = vmatpush1.msra.mxu0 0.0
  %1178 = vmatprep.subr.mxu0 0.0
  %1179 = vmatpush1.msra.mxu0 0.0
  %1180 = vmatprep.subr.mxu0 0.0
  %1181 = vmatpush1.msra.mxu0 0.0
  %1182 = vmatprep.subr.mxu0 0.0
  %1183 = vmatpush1.msra.mxu0 0.0
  %1184 = vmatprep.subr.mxu0 0.0
  %1185 = vmatpush1.msra.mxu0 0.0
  %1186 = vmatprep.subr.mxu0 0.0
  %1187 = vmatpush1.msra.mxu0 0.0
  %1188 = vmatprep.subr.mxu0 0.0
  %1189 = vmatpush1.msra.mxu0 0.0
  %1190 = vmatprep.subr.mxu0 0.0
  %1191 = vmatpush1.msra.mxu0 0.0
  %1192 = vmatprep.subr.mxu0 0.0
  %1193 = vmatpush1.msra.mxu0 0.0
  %1194 = vmatprep.subr.mxu0 0.0
  %1195 = vmatpush1.msra.mxu0 0.0
  %1196 = vmatprep.subr.mxu0 0.0
  %1197 = vmatpush1.msra.mxu0 0.0
  %1198 = vmatprep.subr.mxu0 0.0
  %1199 = vmatpush1.msra.mxu0 0.0
  %1200 = vmatprep.subr.mxu0 0.0
  %1201 = vmatpush1.msra.mxu0 0.0
  %1202 = vmatprep.subr.mxu0 0.0
  %1203 = vmatpush1.msra.mxu0 0.0
  %1204 = vmatprep.subr.mxu0 0.0
  %1205 = vmatpush1.msra.mxu0 0.0
  %1206 = vmatprep.subr.mxu0 0.0
  %1207 = vmatpush1.msra.mxu0 0.0
  %1208 = vmatprep.subr.mxu0 0.0
  %1209 = vmatpush1.msra.mxu0 0.0
  %1210 = vmatprep.subr.mxu0 0.0
  %1211 = vmatpush1.msra.mxu0 0.0
  %1212 = vmatprep.subr.mxu0 0.0
  %1213 = vmatpush1.msra.mxu0 0.0
  %1214 = vmatprep.subr.mxu0 0.0
  %1215 = vmatpush1.msra.mxu0 0.0
  %1216 = vmatprep.subr.mxu0 0.0
  %1217 = vmatpush1.msra.mxu0 0.0
  %1218 = vmatprep.subr.mxu0 0.0
  %1219 = vmatpush1.msra.mxu0 0.0
  %1220 = vmatprep.mubr.f32.mxu0 0.0
  %1221 = vmatmul.mubr.f32.gmra.mrb[0].mxu0 %v1152
  %v1222 = vpop.f32.mrb[0].mxu0
  %v1223 = vadd.f32 0.0, %v1222
  %v1224 = vpop.f32.mrb[0].mxu0
  %1225 = vmatprep.mubr.f32.mxu0 0.0
  %1226 = vmatmul.mubr.f32.gmra.mrb[0].mxu0 %v1154
  %v1227 = vpop.f32.mrb[0].mxu0
  %v1228 = vadd.f32 0.0, %v1227
  %v1229 = vpop.f32.mrb[0].mxu0
  %1230 = vdwg.mxu0
  %1233 = vrot.lane.b32.xlu0 %v1143, 64
  %v1234 = vpop.permute.xlu0 %1233
  %1235 = vrot.lane.b32.xlu0 %v1145, 64
  %v1236 = vpop.permute.xlu0 %1235
  %1237 = vrot.lane.b32.xlu0 %v996, 96
  %v1238 = vpop.permute.xlu0 %1237
  %1239 = vrot.lane.b32.xlu0 %v1001, 96
  %v1240 = vpop.permute.xlu0 %1239
  %v1243 = vsel %vm27, %v1234, 0
  %v1245 = vsel %vm27, %v1236, 0
  %1247 = vmatprep.subr.mxu0 0.0
  %1248 = vmatpush1.msra.mxu0 %v1238
  %1249 = vmatprep.subr.mxu0 0.0
  %1250 = vmatpush1.msra.mxu0 %v1240
  %1251 = vmatprep.subr.mxu0 0.0
  %1252 = vmatpush1.msra.mxu0 0.0
  %1253 = vmatprep.subr.mxu0 0.0
  %1254 = vmatpush1.msra.mxu0 0.0
  %1255 = vmatprep.subr.mxu0 0.0
  %1256 = vmatpush1.msra.mxu0 0.0
  %1257 = vmatprep.subr.mxu0 0.0
  %1258 = vmatpush1.msra.mxu0 0.0
  %1259 = vmatprep.subr.mxu0 0.0
  %1260 = vmatpush1.msra.mxu0 0.0
  %1261 = vmatprep.subr.mxu0 0.0
  %1262 = vmatpush1.msra.mxu0 0.0
  %1263 = vmatprep.subr.mxu0 0.0
  %1264 = vmatpush1.msra.mxu0 0.0
  %1265 = vmatprep.subr.mxu0 0.0
  %1266 = vmatpush1.msra.mxu0 0.0
  %1267 = vmatprep.subr.mxu0 0.0
  %1268 = vmatpush1.msra.mxu0 0.0
  %1269 = vmatprep.subr.mxu0 0.0
  %1270 = vmatpush1.msra.mxu0 0.0
  %1271 = vmatprep.subr.mxu0 0.0
  %1272 = vmatpush1.msra.mxu0 0.0
  %1273 = vmatprep.subr.mxu0 0.0
  %1274 = vmatpush1.msra.mxu0 0.0
  %1275 = vmatprep.subr.mxu0 0.0
  %1276 = vmatpush1.msra.mxu0 0.0
  %1277 = vmatprep.subr.mxu0 0.0
  %1278 = vmatpush1.msra.mxu0 0.0
  %1279 = vmatprep.subr.mxu0 0.0
  %1280 = vmatpush1.msra.mxu0 0.0
  %1281 = vmatprep.subr.mxu0 0.0
  %1282 = vmatpush1.msra.mxu0 0.0
  %1283 = vmatprep.subr.mxu0 0.0
  %1284 = vmatpush1.msra.mxu0 0.0
  %1285 = vmatprep.subr.mxu0 0.0
  %1286 = vmatpush1.msra.mxu0 0.0
  %1287 = vmatprep.subr.mxu0 0.0
  %1288 = vmatpush1.msra.mxu0 0.0
  %1289 = vmatprep.subr.mxu0 0.0
  %1290 = vmatpush1.msra.mxu0 0.0
  %1291 = vmatprep.subr.mxu0 0.0
  %1292 = vmatpush1.msra.mxu0 0.0
  %1293 = vmatprep.subr.mxu0 0.0
  %1294 = vmatpush1.msra.mxu0 0.0
  %1295 = vmatprep.subr.mxu0 0.0
  %1296 = vmatpush1.msra.mxu0 0.0
  %1297 = vmatprep.subr.mxu0 0.0
  %1298 = vmatpush1.msra.mxu0 0.0
  %1299 = vmatprep.subr.mxu0 0.0
  %1300 = vmatpush1.msra.mxu0 0.0
  %1301 = vmatprep.subr.mxu0 0.0
  %1302 = vmatpush1.msra.mxu0 0.0
  %1303 = vmatprep.subr.mxu0 0.0
  %1304 = vmatpush1.msra.mxu0 0.0
  %1305 = vmatprep.subr.mxu0 0.0
  %1306 = vmatpush1.msra.mxu0 0.0
  %1307 = vmatprep.subr.mxu0 0.0
  %1308 = vmatpush1.msra.mxu0 0.0
  %1309 = vmatprep.subr.mxu0 0.0
  %1310 = vmatpush1.msra.mxu0 0.0
  %1311 = vmatprep.mubr.f32.mxu0 0.0
  %1312 = vmatmul.mubr.f32.gmra.mrb[0].mxu0 %v1243
  %v1313 = vpop.f32.mrb[0].mxu0
  %v1314 = vadd.f32 0.0, %v1313
  %v1315 = vpop.f32.mrb[0].mxu0
  %1316 = vmatprep.mubr.f32.mxu0 0.0
  %1317 = vmatmul.mubr.f32.gmra.mrb[0].mxu0 %v1245
  %v1318 = vpop.f32.mrb[0].mxu0
  %v1319 = vadd.f32 0.0, %v1318
  %v1320 = vpop.f32.mrb[0].mxu0
  %1321 = vdwg.mxu0
  %1324 = vrot.lane.b32.xlu0 %v1314, 32
  %v1325 = vpop.permute.xlu0 %1324
  %1326 = vrot.lane.b32.xlu0 %v1319, 32
  %v1327 = vpop.permute.xlu0 %1326
  %v1330 = vsel %vm902, %v1223, %v1325
  %v1331 = vsel %vm902, %v1228, %v1327
  %v1332 = vld [vmem:[%s1 + $0xd0] sm:$0x1]
  %v1333 = vlaneseq
  %v1334 = vshrl.u32 %v1333, 7
  %v1335 = vsub.s32 0, %v1334
  %v1336 = vrot.slane %v1332, %v1335
  %v1337 = vadd.f32 %v1330, %v1336
  %v1338 = vadd.f32 %v1331, %v1336
  %v1339 = vmax.f32 %v1337, 0.0
  %v1340 = vmax.f32 %v1338, 0.0
  %v1341 = vld [vmem:[%s1 + $0xd8] sm:$0xff]
  %v1342 = vld [vmem:[%s1 + $0xe0] sm:$0xff]
  %v1343 = vld [vmem:[%s1 + $0xe8] sm:$0xff]
  %v1344 = vld [vmem:[%s1 + $0xf0] sm:$0xff]
  %v1345 = vld [vmem:[%s1 + $0xf8] sm:$0xff]
  %v1346 = vld [vmem:[%s1 + $0x100] sm:$0xff]
  %v1347 = vld [vmem:[%s1 + $0x108] sm:$0xff]
  %v1348 = vld [vmem:[%s1 + $0x110] sm:$0xff]
  %v1350 = vsel %vm922, %v1339, 0
  %v1353 = vsel %vm922, %v1340, 0
  %1355 = vmatprep.subr.mxu0 0.0
  %1356 = vmatpush1.msra.mxu0 %v1341
  %1357 = vmatprep.subr.mxu0 0.0
  %1358 = vmatpush1.msra.mxu0 %v1342
  %1359 = vmatprep.subr.mxu0 0.0
  %1360 = vmatpush1.msra.mxu0 %v1343
  %1361 = vmatprep.subr.mxu0 0.0
  %1362 = vmatpush1.msra.mxu0 %v1344
  %1363 = vmatprep.subr.mxu0 0.0
  %1364 = vmatpush1.msra.mxu0 %v1345
  %1365 = vmatprep.subr.mxu0 0.0
  %1366 = vmatpush1.msra.mxu0 %v1346
  %1367 = vmatprep.subr.mxu0 0.0
  %1368 = vmatpush1.msra.mxu0 %v1347
  %1369 = vmatprep.subr.mxu0 0.0
  %1370 = vmatpush1.msra.mxu0 %v1348
  %1371 = vmatprep.subr.mxu0 0.0
  %1372 = vmatpush1.msra.mxu0 0.0
  %1373 = vmatprep.subr.mxu0 0.0
  %1374 = vmatpush1.msra.mxu0 0.0
  %1375 = vmatprep.subr.mxu0 0.0
  %1376 = vmatpush1.msra.mxu0 0.0
  %1377 = vmatprep.subr.mxu0 0.0
  %1378 = vmatpush1.msra.mxu0 0.0
  %1379 = vmatprep.subr.mxu0 0.0
  %1380 = vmatpush1.msra.mxu0 0.0
  %1381 = vmatprep.subr.mxu0 0.0
  %1382 = vmatpush1.msra.mxu0 0.0
  %1383 = vmatprep.subr.mxu0 0.0
  %1384 = vmatpush1.msra.mxu0 0.0
  %1385 = vmatprep.subr.mxu0 0.0
  %1386 = vmatpush1.msra.mxu0 0.0
  %1387 = vmatprep.subr.mxu0 0.0
  %1388 = vmatpush1.msra.mxu0 0.0
  %1389 = vmatprep.subr.mxu0 0.0
  %1390 = vmatpush1.msra.mxu0 0.0
  %1391 = vmatprep.subr.mxu0 0.0
  %1392 = vmatpush1.msra.mxu0 0.0
  %1393 = vmatprep.subr.mxu0 0.0
  %1394 = vmatpush1.msra.mxu0 0.0
  %1395 = vmatprep.subr.mxu0 0.0
  %1396 = vmatpush1.msra.mxu0 0.0
  %1397 = vmatprep.subr.mxu0 0.0
  %1398 = vmatpush1.msra.mxu0 0.0
  %1399 = vmatprep.subr.mxu0 0.0
  %1400 = vmatpush1.msra.mxu0 0.0
  %1401 = vmatprep.subr.mxu0 0.0
  %1402 = vmatpush1.msra.mxu0 0.0
  %1403 = vmatprep.subr.mxu0 0.0
  %1404 = vmatpush1.msra.mxu0 0.0
  %1405 = vmatprep.subr.mxu0 0.0
  %1406 = vmatpush1.msra.mxu0 0.0
  %1407 = vmatprep.subr.mxu0 0.0
  %1408 = vmatpush1.msra.mxu0 0.0
  %1409 = vmatprep.subr.mxu0 0.0
  %1410 = vmatpush1.msra.mxu0 0.0
  %1411 = vmatprep.subr.mxu0 0.0
  %1412 = vmatpush1.msra.mxu0 0.0
  %1413 = vmatprep.subr.mxu0 0.0
  %1414 = vmatpush1.msra.mxu0 0.0
  %1415 = vmatprep.subr.mxu0 0.0
  %1416 = vmatpush1.msra.mxu0 0.0
  %1417 = vmatprep.subr.mxu0 0.0
  %1418 = vmatpush1.msra.mxu0 0.0
  %1419 = vmatprep.mubr.f32.mxu0 0.0
  %1420 = vmatmul.mubr.f32.gmra.mrb[0].mxu0 %v1350
  %v1421 = vpop.f32.mrb[0].mxu0
  %v1422 = vadd.f32 0.0, %v1421
  %v1423 = vpop.f32.mrb[0].mxu0
  %1424 = vmatprep.mubr.f32.mxu0 0.0
  %1425 = vmatmul.mubr.f32.gmra.mrb[0].mxu0 %v1353
  %v1426 = vpop.f32.mrb[0].mxu0
  %v1427 = vadd.f32 0.0, %v1426
  %v1428 = vpop.f32.mrb[0].mxu0
  %1429 = vdwg.mxu0
  %1432 = vset.pattern.permute.xlu0 64
  %1433 = vperm.xlu0 %1432, %v1422
  %v1434 = vpop.permute.xlu0 %1433
  %1435 = vset.pattern.permute.xlu0 64
  %1436 = vperm.xlu0 %1435, %v1427
  %v1437 = vpop.permute.xlu0 %1436
  %v1438 = vlaneseq
  %v1439 = vshrl.u32 %v1438, 7
  %v1440 = vsub.s32 %v566, %v1439
  %v1441 = vrot.slane %v1434, %v1440
  %v1442 = vlaneseq
  %v1443 = vshrl.u32 %v1442, 7
  %v1444 = vsub.s32 %v571, %v1443
  %v1445 = vrot.slane %v1437, %v1444
  %v1446 = vsel %vm576, %v1445, %v1441
  %v1447 = vsel %vm578, %v1446, %v1446
  %v1448 = vsel %vm580, %v1446, %v1447
  %v1449 = vsel %vm582, %v1446, %v1448
  %v1450 = vsel %vm584, %v1446, %v1449
  %v1451 = vsel %vm586, %v1446, %v1450
  %v1452 = vsel %vm588, %v1446, %v1451
  %1454 = vset.pattern.permute.xlu0 65
  %1455 = vperm.xlu0 %1454, %v1422
  %v1456 = vpop.permute.xlu0 %1455
  %1457 = vset.pattern.permute.xlu0 65
  %1458 = vperm.xlu0 %1457, %v1427
  %v1459 = vpop.permute.xlu0 %1458
  %v1460 = vlaneseq
  %v1461 = vshrl.u32 %v1460, 7
  %v1462 = vsub.s32 %v566, %v1461
  %v1463 = vrot.slane %v1456, %v1462
  %v1464 = vlaneseq
  %v1465 = vshrl.u32 %v1464, 7
  %v1466 = vsub.s32 %v571, %v1465
  %v1467 = vrot.slane %v1459, %v1466
  %v1468 = vsel %vm576, %v1467, %v1463
  %v1469 = vsel %vm578, %v1468, %v1468
  %v1470 = vsel %vm580, %v1468, %v1469
  %v1471 = vsel %vm582, %v1468, %v1470
  %v1472 = vsel %vm584, %v1468, %v1471
  %v1473 = vsel %vm586, %v1468, %v1472
  %v1474 = vsel %vm588, %v1468, %v1473
  %1476 = vrot.lane.b32.xlu0 %v1422, 127
  %v1477 = vpop.permute.xlu0 %1476
  %1478 = vrot.lane.b32.xlu0 %v1427, 127
  %v1479 = vpop.permute.xlu0 %1478
  %1480 = vset.pattern.permute.xlu0 66
  %1481 = vperm.xlu0 %1480, %v1422
  %v1482 = vpop.permute.xlu0 %1481
  %1484 = vset.pattern.permute.xlu0 66
  %1485 = vperm.xlu0 %1484, %v1427
  %v1486 = vpop.permute.xlu0 %1485
  %1488 = vset.pattern.permute.xlu0 66
  %1489 = vperm.xlu0 %1488, %v1477
  %v1490 = vpop.permute.xlu0 %1489
  %1492 = vset.pattern.permute.xlu0 66
  %1493 = vperm.xlu0 %1492, %v1479
  %v1494 = vpop.permute.xlu0 %1493
  %v1496 = vadd.f32 %v1482, %v1452
  %v1497 = vadd.f32 %v1486, %v1452
  %v1498 = vadd.f32 %v1490, %v1474
  %v1499 = vadd.f32 %v1494, %v1474
  %v1500 = vmul.f32 %v1496, 0.2
  %v1501 = vmul.f32 %v1497, 0.2
  %v1502 = vmul.f32 %v1498, 0.2
  %v1503 = vmul.f32 %v1499, 0.2
  %v1504 = vmax.f32 %v1496, %v1500
  %v1505 = vmax.f32 %v1497, %v1501
  %v1506 = vmax.f32 %v1498, %v1502
  %v1507 = vmax.f32 %v1499, %v1503
  %v1508 = vadd.f32 %v1504, %v648
  %v1509 = vadd.f32 %v1505, %v650
  %v1510 = vadd.f32 %v1506, %v648
  %v1511 = vadd.f32 %v1507, %v650
  %v1512 = vsel %vm657, %v1508, -inf
  %1513 = vmax.xlane.f32.xlu0 %v1512
  %v1514 = vpop.xlane.xlu0 %1513
  %v1515 = vsel %vm657, %v1509, -inf
  %1516 = vmax.xlane.f32.xlu0 %v1515
  %v1517 = vpop.xlane.xlu0 %1516
  %v1518 = vsel %vm657, %v1510, -inf
  %1519 = vmax.xlane.f32.xlu0 %v1518
  %v1520 = vpop.xlane.xlu0 %1519
  %v1521 = vsel %vm657, %v1511, -inf
  %1522 = vmax.xlane.f32.xlu0 %v1521
  %v1523 = vpop.xlane.xlu0 %1522
  %v1524 = vsub.f32 %v1508, %v1514
  %v1525 = vsub.f32 %v1509, %v1517
  %v1526 = vsub.f32 %v1510, %v1520
  %v1527 = vsub.f32 %v1511, %v1523
  %v1528 = vmul.f32 %v1524, 1.442695
  %v1529 = vpow.pop %v1528
  %v1530 = vmul.f32 %v1525, 1.442695
  %v1531 = vpow.pop %v1530
  %v1532 = vmul.f32 %v1526, 1.442695
  %v1533 = vpow.pop %v1532
  %v1534 = vmul.f32 %v1527, 1.442695
  %v1535 = vpow.pop %v1534
  %1540 = vrot.lane.b32.xlu0 %v1529, 64
  %v1541 = vpop.permute.xlu0 %1540
  %1542 = vrot.lane.b32.xlu0 %v1531, 64
  %v1543 = vpop.permute.xlu0 %1542
  %1544 = vrot.lane.b32.xlu0 %v1533, 64
  %v1545 = vpop.permute.xlu0 %1544
  %1546 = vrot.lane.b32.xlu0 %v1535, 64
  %v1547 = vpop.permute.xlu0 %1546
  %v1552 = vsel %vm27, %v1541, 0.0
  %1553 = vadd.xlane.f32.xlu0 %v1552
  %v1554 = vpop.xlane.xlu0 %1553
  %v1555 = vsel %vm27, %v1543, 0.0
  %1556 = vadd.xlane.f32.xlu0 %v1555
  %v1557 = vpop.xlane.xlu0 %1556
  %v1558 = vsel %vm27, %v1545, 0.0
  %1559 = vadd.xlane.f32.xlu0 %v1558
  %v1560 = vpop.xlane.xlu0 %1559
  %v1561 = vsel %vm27, %v1547, 0.0
  %1562 = vadd.xlane.f32.xlu0 %v1561
  %v1563 = vpop.xlane.xlu0 %1562
  %v1564 = vrcp.pop %v1554
  %v1565 = vmul.f32 %v1529, %v1564
  %v1566 = vrcp.pop %v1557
  %v1567 = vmul.f32 %v1531, %v1566
  %v1568 = vrcp.pop %v1560
  %v1569 = vmul.f32 %v1533, %v1568
  %v1570 = vrcp.pop %v1563
  %v1571 = vmul.f32 %v1535, %v1570
  %1574 = vrot.lane.b32.xlu0 %v1565, 64
  %v1575 = vpop.permute.xlu0 %1574
  %1576 = vrot.lane.b32.xlu0 %v1567, 64
  %v1577 = vpop.permute.xlu0 %1576
  %v1578 = vsel %vm27, %v1575, 0
  %v1580 = vsel %vm27, %v1577, 0
  %1582 = vmatprep.subr.mxu0 0.0
  %1583 = vmatpush1.msra.mxu0 %v1422
  %1584 = vmatprep.subr.mxu0 0.0
  %1585 = vmatpush1.msra.mxu0 %v1427
  %1586 = vmatprep.subr.mxu0 0.0
  %1587 = vmatpush1.msra.mxu0 0.0
  %1588 = vmatprep.subr.mxu0 0.0
  %1589 = vmatpush1.msra.mxu0 0.0
  %1590 = vmatprep.subr.mxu0 0.0
  %1591 = vmatpush1.msra.mxu0 0.0
  %1592 = vmatprep.subr.mxu0 0.0
  %1593 = vmatpush1.msra.mxu0 0.0
  %1594 = vmatprep.subr.mxu0 0.0
  %1595 = vmatpush1.msra.mxu0 0.0
  %1596 = vmatprep.subr.mxu0 0.0
  %1597 = vmatpush1.msra.mxu0 0.0
  %1598 = vmatprep.subr.mxu0 0.0
  %1599 = vmatpush1.msra.mxu0 0.0
  %1600 = vmatprep.subr.mxu0 0.0
  %1601 = vmatpush1.msra.mxu0 0.0
  %1602 = vmatprep.subr.mxu0 0.0
  %1603 = vmatpush1.msra.mxu0 0.0
  %1604 = vmatprep.subr.mxu0 0.0
  %1605 = vmatpush1.msra.mxu0 0.0
  %1606 = vmatprep.subr.mxu0 0.0
  %1607 = vmatpush1.msra.mxu0 0.0
  %1608 = vmatprep.subr.mxu0 0.0
  %1609 = vmatpush1.msra.mxu0 0.0
  %1610 = vmatprep.subr.mxu0 0.0
  %1611 = vmatpush1.msra.mxu0 0.0
  %1612 = vmatprep.subr.mxu0 0.0
  %1613 = vmatpush1.msra.mxu0 0.0
  %1614 = vmatprep.subr.mxu0 0.0
  %1615 = vmatpush1.msra.mxu0 0.0
  %1616 = vmatprep.subr.mxu0 0.0
  %1617 = vmatpush1.msra.mxu0 0.0
  %1618 = vmatprep.subr.mxu0 0.0
  %1619 = vmatpush1.msra.mxu0 0.0
  %1620 = vmatprep.subr.mxu0 0.0
  %1621 = vmatpush1.msra.mxu0 0.0
  %1622 = vmatprep.subr.mxu0 0.0
  %1623 = vmatpush1.msra.mxu0 0.0
  %1624 = vmatprep.subr.mxu0 0.0
  %1625 = vmatpush1.msra.mxu0 0.0
  %1626 = vmatprep.subr.mxu0 0.0
  %1627 = vmatpush1.msra.mxu0 0.0
  %1628 = vmatprep.subr.mxu0 0.0
  %1629 = vmatpush1.msra.mxu0 0.0
  %1630 = vmatprep.subr.mxu0 0.0
  %1631 = vmatpush1.msra.mxu0 0.0
  %1632 = vmatprep.subr.mxu0 0.0
  %1633 = vmatpush1.msra.mxu0 0.0
  %1634 = vmatprep.subr.mxu0 0.0
  %1635 = vmatpush1.msra.mxu0 0.0
  %1636 = vmatprep.subr.mxu0 0.0
  %1637 = vmatpush1.msra.mxu0 0.0
  %1638 = vmatprep.subr.mxu0 0.0
  %1639 = vmatpush1.msra.mxu0 0.0
  %1640 = vmatprep.subr.mxu0 0.0
  %1641 = vmatpush1.msra.mxu0 0.0
  %1642 = vmatprep.subr.mxu0 0.0
  %1643 = vmatpush1.msra.mxu0 0.0
  %1644 = vmatprep.subr.mxu0 0.0
  %1645 = vmatpush1.msra.mxu0 0.0
  %1646 = vmatprep.mubr.f32.mxu0 0.0
  %1647 = vmatmul.mubr.f32.gmra.mrb[0].mxu0 %v1578
  %v1648 = vpop.f32.mrb[0].mxu0
  %v1649 = vadd.f32 0.0, %v1648
  %v1650 = vpop.f32.mrb[0].mxu0
  %1651 = vmatprep.mubr.f32.mxu0 0.0
  %1652 = vmatmul.mubr.f32.gmra.mrb[0].mxu0 %v1580
  %v1653 = vpop.f32.mrb[0].mxu0
  %v1654 = vadd.f32 0.0, %v1653
  %v1655 = vpop.f32.mrb[0].mxu0
  %1656 = vdwg.mxu0
  %1659 = vrot.lane.b32.xlu0 %v1569, 64
  %v1660 = vpop.permute.xlu0 %1659
  %1661 = vrot.lane.b32.xlu0 %v1571, 64
  %v1662 = vpop.permute.xlu0 %1661
  %1663 = vrot.lane.b32.xlu0 %v1422, 96
  %v1664 = vpop.permute.xlu0 %1663
  %1665 = vrot.lane.b32.xlu0 %v1427, 96
  %v1666 = vpop.permute.xlu0 %1665
  %v1669 = vsel %vm27, %v1660, 0
  %v1671 = vsel %vm27, %v1662, 0
  %1673 = vmatprep.subr.mxu0 0.0
  %1674 = vmatpush1.msra.mxu0 %v1664
  %1675 = vmatprep.subr.mxu0 0.0
  %1676 = vmatpush1.msra.mxu0 %v1666
  %1677 = vmatprep.subr.mxu0 0.0
  %1678 = vmatpush1.msra.mxu0 0.0
  %1679 = vmatprep.subr.mxu0 0.0
  %1680 = vmatpush1.msra.mxu0 0.0
  %1681 = vmatprep.subr.mxu0 0.0
  %1682 = vmatpush1.msra.mxu0 0.0
  %1683 = vmatprep.subr.mxu0 0.0
  %1684 = vmatpush1.msra.mxu0 0.0
  %1685 = vmatprep.subr.mxu0 0.0
  %1686 = vmatpush1.msra.mxu0 0.0
  %1687 = vmatprep.subr.mxu0 0.0
  %1688 = vmatpush1.msra.mxu0 0.0
  %1689 = vmatprep.subr.mxu0 0.0
  %1690 = vmatpush1.msra.mxu0 0.0
  %1691 = vmatprep.subr.mxu0 0.0
  %1692 = vmatpush1.msra.mxu0 0.0
  %1693 = vmatprep.subr.mxu0 0.0
  %1694 = vmatpush1.msra.mxu0 0.0
  %1695 = vmatprep.subr.mxu0 0.0
  %1696 = vmatpush1.msra.mxu0 0.0
  %1697 = vmatprep.subr.mxu0 0.0
  %1698 = vmatpush1.msra.mxu0 0.0
  %1699 = vmatprep.subr.mxu0 0.0
  %1700 = vmatpush1.msra.mxu0 0.0
  %1701 = vmatprep.subr.mxu0 0.0
  %1702 = vmatpush1.msra.mxu0 0.0
  %1703 = vmatprep.subr.mxu0 0.0
  %1704 = vmatpush1.msra.mxu0 0.0
  %1705 = vmatprep.subr.mxu0 0.0
  %1706 = vmatpush1.msra.mxu0 0.0
  %1707 = vmatprep.subr.mxu0 0.0
  %1708 = vmatpush1.msra.mxu0 0.0
  %1709 = vmatprep.subr.mxu0 0.0
  %1710 = vmatpush1.msra.mxu0 0.0
  %1711 = vmatprep.subr.mxu0 0.0
  %1712 = vmatpush1.msra.mxu0 0.0
  %1713 = vmatprep.subr.mxu0 0.0
  %1714 = vmatpush1.msra.mxu0 0.0
  %1715 = vmatprep.subr.mxu0 0.0
  %1716 = vmatpush1.msra.mxu0 0.0
  %1717 = vmatprep.subr.mxu0 0.0
  %1718 = vmatpush1.msra.mxu0 0.0
  %1719 = vmatprep.subr.mxu0 0.0
  %1720 = vmatpush1.msra.mxu0 0.0
  %1721 = vmatprep.subr.mxu0 0.0
  %1722 = vmatpush1.msra.mxu0 0.0
  %1723 = vmatprep.subr.mxu0 0.0
  %1724 = vmatpush1.msra.mxu0 0.0
  %1725 = vmatprep.subr.mxu0 0.0
  %1726 = vmatpush1.msra.mxu0 0.0
  %1727 = vmatprep.subr.mxu0 0.0
  %1728 = vmatpush1.msra.mxu0 0.0
  %1729 = vmatprep.subr.mxu0 0.0
  %1730 = vmatpush1.msra.mxu0 0.0
  %1731 = vmatprep.subr.mxu0 0.0
  %1732 = vmatpush1.msra.mxu0 0.0
  %1733 = vmatprep.subr.mxu0 0.0
  %1734 = vmatpush1.msra.mxu0 0.0
  %1735 = vmatprep.subr.mxu0 0.0
  %1736 = vmatpush1.msra.mxu0 0.0
  %1737 = vmatprep.mubr.f32.mxu0 0.0
  %1738 = vmatmul.mubr.f32.gmra.mrb[0].mxu0 %v1669
  %v1739 = vpop.f32.mrb[0].mxu0
  %v1740 = vadd.f32 0.0, %v1739
  %v1741 = vpop.f32.mrb[0].mxu0
  %1742 = vmatprep.mubr.f32.mxu0 0.0
  %1743 = vmatmul.mubr.f32.gmra.mrb[0].mxu0 %v1671
  %v1744 = vpop.f32.mrb[0].mxu0
  %v1745 = vadd.f32 0.0, %v1744
  %v1746 = vpop.f32.mrb[0].mxu0
  %1747 = vdwg.mxu0
  %1750 = vrot.lane.b32.xlu0 %v1740, 32
  %v1751 = vpop.permute.xlu0 %1750
  %1752 = vrot.lane.b32.xlu0 %v1745, 32
  %v1753 = vpop.permute.xlu0 %1752
  %v1756 = vsel %vm902, %v1649, %v1751
  %v1757 = vsel %vm902, %v1654, %v1753
  %v1758 = vld [vmem:[%s1 + $0x118] sm:$0x1]
  %v1759 = vlaneseq
  %v1760 = vshrl.u32 %v1759, 7
  %v1761 = vsub.s32 0, %v1760
  %v1762 = vrot.slane %v1758, %v1761
  %v1763 = vadd.f32 %v1756, %v1762
  %v1764 = vadd.f32 %v1757, %v1762
  %v1765 = vmax.f32 %v1763, 0.0
  %v1766 = vmax.f32 %v1764, 0.0
  %v1767 = vld [vmem:[%s1 + $0x168] sm:$0xff]
  %v1768 = vld [vmem:[%s1 + $0x170] sm:$0xff]
  %v1769 = vld [vmem:[%s1 + $0x178] sm:$0xff]
  %v1770 = vld [vmem:[%s1 + $0x180] sm:$0xff]
  %v1771 = vld [vmem:[%s1 + $0x188] sm:$0xff]
  %v1772 = vld [vmem:[%s1 + $0x190] sm:$0xff]
  %v1773 = vld [vmem:[%s1 + $0x198] sm:$0xff]
  %v1774 = vld [vmem:[%s1 + $0x1a0] sm:$0xff]
  %v1775 = vld [vmem:[%s1 + $0x1c8] sm:$0x1]
  %v1776 = vlaneseq
  %v1777 = vshrl.u32 %v1776, 7
  %v1778 = vsub.s32 0, %v1777
  %v1779 = vrot.slane %v1775, %v1778
  %v1781 = vsel %vm922, %v1765, 0
  %v1784 = vsel %vm922, %v1766, 0
  %1786 = vmatprep.subr.mxu0 0.0
  %1787 = vmatpush1.msra.mxu0 %v1767
  %1788 = vmatprep.subr.mxu0 0.0
  %1789 = vmatpush1.msra.mxu0 %v1768
  %1790 = vmatprep.subr.mxu0 0.0
  %1791 = vmatpush1.msra.mxu0 %v1769
  %1792 = vmatprep.subr.mxu0 0.0
  %1793 = vmatpush1.msra.mxu0 %v1770
  %1794 = vmatprep.subr.mxu0 0.0
  %1795 = vmatpush1.msra.mxu0 %v1771
  %1796 = vmatprep.subr.mxu0 0.0
  %1797 = vmatpush1.msra.mxu0 %v1772
  %1798 = vmatprep.subr.mxu0 0.0
  %1799 = vmatpush1.msra.mxu0 %v1773
  %1800 = vmatprep.subr.mxu0 0.0
  %1801 = vmatpush1.msra.mxu0 %v1774
  %1802 = vmatprep.subr.mxu0 0.0
  %1803 = vmatpush1.msra.mxu0 0.0
  %1804 = vmatprep.subr.mxu0 0.0
  %1805 = vmatpush1.msra.mxu0 0.0
  %1806 = vmatprep.subr.mxu0 0.0
  %1807 = vmatpush1.msra.mxu0 0.0
  %1808 = vmatprep.subr.mxu0 0.0
  %1809 = vmatpush1.msra.mxu0 0.0
  %1810 = vmatprep.subr.mxu0 0.0
  %1811 = vmatpush1.msra.mxu0 0.0
  %1812 = vmatprep.subr.mxu0 0.0
  %1813 = vmatpush1.msra.mxu0 0.0
  %1814 = vmatprep.subr.mxu0 0.0
  %1815 = vmatpush1.msra.mxu0 0.0
  %1816 = vmatprep.subr.mxu0 0.0
  %1817 = vmatpush1.msra.mxu0 0.0
  %1818 = vmatprep.subr.mxu0 0.0
  %1819 = vmatpush1.msra.mxu0 0.0
  %1820 = vmatprep.subr.mxu0 0.0
  %1821 = vmatpush1.msra.mxu0 0.0
  %1822 = vmatprep.subr.mxu0 0.0
  %1823 = vmatpush1.msra.mxu0 0.0
  %1824 = vmatprep.subr.mxu0 0.0
  %1825 = vmatpush1.msra.mxu0 0.0
  %1826 = vmatprep.subr.mxu0 0.0
  %1827 = vmatpush1.msra.mxu0 0.0
  %1828 = vmatprep.subr.mxu0 0.0
  %1829 = vmatpush1.msra.mxu0 0.0
  %1830 = vmatprep.subr.mxu0 0.0
  %1831 = vmatpush1.msra.mxu0 0.0
  %1832 = vmatprep.subr.mxu0 0.0
  %1833 = vmatpush1.msra.mxu0 0.0
  %1834 = vmatprep.subr.mxu0 0.0
  %1835 = vmatpush1.msra.mxu0 0.0
  %1836 = vmatprep.subr.mxu0 0.0
  %1837 = vmatpush1.msra.mxu0 0.0
  %1838 = vmatprep.subr.mxu0 0.0
  %1839 = vmatpush1.msra.mxu0 0.0
  %1840 = vmatprep.subr.mxu0 0.0
  %1841 = vmatpush1.msra.mxu0 0.0
  %1842 = vmatprep.subr.mxu0 0.0
  %1843 = vmatpush1.msra.mxu0 0.0
  %1844 = vmatprep.subr.mxu0 0.0
  %1845 = vmatpush1.msra.mxu0 0.0
  %1846 = vmatprep.subr.mxu0 0.0
  %1847 = vmatpush1.msra.mxu0 0.0
  %1848 = vmatprep.subr.mxu0 0.0
  %1849 = vmatpush1.msra.mxu0 0.0
  %1850 = vmatprep.mubr.f32.mxu0 0.0
  %1851 = vmatmul.mubr.f32.gmra.mrb[0].mxu0 %v924
  %v1852 = vpop.f32.mrb[0].mxu0
  %v1853 = vadd.f32 %v1779, %v1852
  %v1854 = vpop.f32.mrb[0].mxu0
  %1855 = vmatprep.mubr.f32.mxu0 0.0
  %1856 = vmatmul.mubr.f32.gmra.mrb[0].mxu0 %v927
  %v1857 = vpop.f32.mrb[0].mxu0
  %v1858 = vadd.f32 %v1779, %v1857
  %v1859 = vpop.f32.mrb[0].mxu0
  %1860 = vmatprep.mubr.f32.mxu0 0.0
  %1861 = vmatmul.mubr.f32.gmra.mrb[0].mxu0 %v1350
  %v1862 = vpop.f32.mrb[0].mxu0
  %v1863 = vadd.f32 %v1779, %v1862
  %v1864 = vpop.f32.mrb[0].mxu0
  %1865 = vmatprep.mubr.f32.mxu0 0.0
  %1866 = vmatmul.mubr.f32.gmra.mrb[0].mxu0 %v1353
  %v1867 = vpop.f32.mrb[0].mxu0
  %v1868 = vadd.f32 %v1779, %v1867
  %v1869 = vpop.f32.mrb[0].mxu0
  %1870 = vmatprep.mubr.f32.mxu0 0.0
  %1871 = vmatmul.mubr.f32.gmra.mrb[0].mxu0 %v1781
  %v1872 = vpop.f32.mrb[0].mxu0
  %v1873 = vadd.f32 %v1779, %v1872
  %v1874 = vpop.f32.mrb[0].mxu0
  %1875 = vmatprep.mubr.f32.mxu0 0.0
  %1876 = vmatmul.mubr.f32.gmra.mrb[0].mxu0 %v1784
  %v1877 = vpop.f32.mrb[0].mxu0
  %v1878 = vadd.f32 %v1779, %v1877
  %v1879 = vpop.f32.mrb[0].mxu0
  %1880 = vdwg.mxu0
  %v1881 = vld [vmem:[%s1 + $0x1d0] sm:$0xff]
  %v1882 = vld [vmem:[%s1 + $0x1d8] sm:$0xff]
  %v1883 = vld [vmem:[%s1 + $0x1e0] sm:$0xff]
  %v1884 = vld [vmem:[%s1 + $0x1e8] sm:$0xff]
  %v1885 = vld [vmem:[%s1 + $0x1f0] sm:$0xff]
  %v1886 = vld [vmem:[%s1 + $0x1f8] sm:$0xff]
  %v1887 = vld [vmem:[%s1 + $0x200] sm:$0xff]
  %v1888 = vld [vmem:[%s1 + $0x208] sm:$0xff]
  %v1889 = vld [vmem:[%s1 + $0x230] sm:$0x1]
  %v1890 = vlaneseq
  %v1891 = vshrl.u32 %v1890, 7
  %v1892 = vsub.s32 0, %v1891
  %v1893 = vrot.slane %v1889, %v1892
  %1894 = vmatprep.subr.mxu0 0.0
  %1895 = vmatpush1.msra.mxu0 %v1881
  %1896 = vmatprep.subr.mxu0 0.0
  %1897 = vmatpush1.msra.mxu0 %v1882
  %1898 = vmatprep.subr.mxu0 0.0
  %1899 = vmatpush1.msra.mxu0 %v1883
  %1900 = vmatprep.subr.mxu0 0.0
  %1901 = vmatpush1.msra.mxu0 %v1884
  %1902 = vmatprep.subr.mxu0 0.0
  %1903 = vmatpush1.msra.mxu0 %v1885
  %1904 = vmatprep.subr.mxu0 0.0
  %1905 = vmatpush1.msra.mxu0 %v1886
  %1906 = vmatprep.subr.mxu0 0.0
  %1907 = vmatpush1.msra.mxu0 %v1887
  %1908 = vmatprep.subr.mxu0 0.0
  %1909 = vmatpush1.msra.mxu0 %v1888
  %1910 = vmatprep.subr.mxu0 0.0
  %1911 = vmatpush1.msra.mxu0 0.0
  %1912 = vmatprep.subr.mxu0 0.0
  %1913 = vmatpush1.msra.mxu0 0.0
  %1914 = vmatprep.subr.mxu0 0.0
  %1915 = vmatpush1.msra.mxu0 0.0
  %1916 = vmatprep.subr.mxu0 0.0
  %1917 = vmatpush1.msra.mxu0 0.0
  %1918 = vmatprep.subr.mxu0 0.0
  %1919 = vmatpush1.msra.mxu0 0.0
  %1920 = vmatprep.subr.mxu0 0.0
  %1921 = vmatpush1.msra.mxu0 0.0
  %1922 = vmatprep.subr.mxu0 0.0
  %1923 = vmatpush1.msra.mxu0 0.0
  %1924 = vmatprep.subr.mxu0 0.0
  %1925 = vmatpush1.msra.mxu0 0.0
  %1926 = vmatprep.subr.mxu0 0.0
  %1927 = vmatpush1.msra.mxu0 0.0
  %1928 = vmatprep.subr.mxu0 0.0
  %1929 = vmatpush1.msra.mxu0 0.0
  %1930 = vmatprep.subr.mxu0 0.0
  %1931 = vmatpush1.msra.mxu0 0.0
  %1932 = vmatprep.subr.mxu0 0.0
  %1933 = vmatpush1.msra.mxu0 0.0
  %1934 = vmatprep.subr.mxu0 0.0
  %1935 = vmatpush1.msra.mxu0 0.0
  %1936 = vmatprep.subr.mxu0 0.0
  %1937 = vmatpush1.msra.mxu0 0.0
  %1938 = vmatprep.subr.mxu0 0.0
  %1939 = vmatpush1.msra.mxu0 0.0
  %1940 = vmatprep.subr.mxu0 0.0
  %1941 = vmatpush1.msra.mxu0 0.0
  %1942 = vmatprep.subr.mxu0 0.0
  %1943 = vmatpush1.msra.mxu0 0.0
  %1944 = vmatprep.subr.mxu0 0.0
  %1945 = vmatpush1.msra.mxu0 0.0
  %1946 = vmatprep.subr.mxu0 0.0
  %1947 = vmatpush1.msra.mxu0 0.0
  %1948 = vmatprep.subr.mxu0 0.0
  %1949 = vmatpush1.msra.mxu0 0.0
  %1950 = vmatprep.subr.mxu0 0.0
  %1951 = vmatpush1.msra.mxu0 0.0
  %1952 = vmatprep.subr.mxu0 0.0
  %1953 = vmatpush1.msra.mxu0 0.0
  %1954 = vmatprep.subr.mxu0 0.0
  %1955 = vmatpush1.msra.mxu0 0.0
  %1956 = vmatprep.subr.mxu0 0.0
  %1957 = vmatpush1.msra.mxu0 0.0
  %1958 = vmatprep.mubr.f32.mxu0 0.0
  %1959 = vmatmul.mubr.f32.gmra.mrb[0].mxu0 %v924
  %v1960 = vpop.f32.mrb[0].mxu0
  %v1961 = vadd.f32 %v1893, %v1960
  %v1962 = vpop.f32.mrb[0].mxu0
  %1963 = vmatprep.mubr.f32.mxu0 0.0
  %1964 = vmatmul.mubr.f32.gmra.mrb[0].mxu0 %v927
  %v1965 = vpop.f32.mrb[0].mxu0
  %v1966 = vadd.f32 %v1893, %v1965
  %v1967 = vpop.f32.mrb[0].mxu0
  %1968 = vmatprep.mubr.f32.mxu0 0.0
  %1969 = vmatmul.mubr.f32.gmra.mrb[0].mxu0 %v1350
  %v1970 = vpop.f32.mrb[0].mxu0
  %v1971 = vadd.f32 %v1893, %v1970
  %v1972 = vpop.f32.mrb[0].mxu0
  %1973 = vmatprep.mubr.f32.mxu0 0.0
  %1974 = vmatmul.mubr.f32.gmra.mrb[0].mxu0 %v1353
  %v1975 = vpop.f32.mrb[0].mxu0
  %v1976 = vadd.f32 %v1893, %v1975
  %v1977 = vpop.f32.mrb[0].mxu0
  %1978 = vmatprep.mubr.f32.mxu0 0.0
  %1979 = vmatmul.mubr.f32.gmra.mrb[0].mxu0 %v1781
  %v1980 = vpop.f32.mrb[0].mxu0
  %v1981 = vadd.f32 %v1893, %v1980
  %v1982 = vpop.f32.mrb[0].mxu0
  %1983 = vmatprep.mubr.f32.mxu0 0.0
  %1984 = vmatmul.mubr.f32.gmra.mrb[0].mxu0 %v1784
  %v1985 = vpop.f32.mrb[0].mxu0
  %v1986 = vadd.f32 %v1893, %v1985
  %v1987 = vpop.f32.mrb[0].mxu0
  %1988 = vdwg.mxu0
  %v1989 = vld [vmem:[%s1 + $0x1a8] sm:$0xff]
  %v1990 = vld [vmem:[%s1 + $0x1b0] sm:$0xff]
  %v1991 = vld [vmem:[%s1 + $0x1b8] sm:$0xff]
  %v1992 = vld [vmem:[%s1 + $0x1c0] sm:$0xff]
  %v1993 = vld [vmem:[%s1 + $0x210] sm:$0xff]
  %v1994 = vld [vmem:[%s1 + $0x218] sm:$0xff]
  %v1995 = vld [vmem:[%s1 + $0x220] sm:$0xff]
  %v1996 = vld [vmem:[%s1 + $0x228] sm:$0xff]
  %v1998 = vsel %vm902, 0.0, 0
  %2000 = vmatprep.subr.mxu0 0.0
  %2001 = vmatpush1.msra.mxu0 %v1989
  %2002 = vmatprep.subr.mxu0 0.0
  %2003 = vmatpush1.msra.mxu0 %v1990
  %2004 = vmatprep.subr.mxu0 0.0
  %2005 = vmatpush1.msra.mxu0 %v1991
  %2006 = vmatprep.subr.mxu0 0.0
  %2007 = vmatpush1.msra.mxu0 %v1992
  %2008 = vmatprep.subr.mxu0 0.0
  %2009 = vmatpush1.msra.mxu0 0.0
  %2010 = vmatprep.subr.mxu0 0.0
  %2011 = vmatpush1.msra.mxu0 0.0
  %2012 = vmatprep.subr.mxu0 0.0
  %2013 = vmatpush1.msra.mxu0 0.0
  %2014 = vmatprep.subr.mxu0 0.0
  %2015 = vmatpush1.msra.mxu0 0.0
  %2016 = vmatprep.subr.mxu0 0.0
  %2017 = vmatpush1.msra.mxu0 0.0
  %2018 = vmatprep.subr.mxu0 0.0
  %2019 = vmatpush1.msra.mxu0 0.0
  %2020 = vmatprep.subr.mxu0 0.0
  %2021 = vmatpush1.msra.mxu0 0.0
  %2022 = vmatprep.subr.mxu0 0.0
  %2023 = vmatpush1.msra.mxu0 0.0
  %2024 = vmatprep.subr.mxu0 0.0
  %2025 = vmatpush1.msra.mxu0 0.0
  %2026 = vmatprep.subr.mxu0 0.0
  %2027 = vmatpush1.msra.mxu0 0.0
  %2028 = vmatprep.subr.mxu0 0.0
  %2029 = vmatpush1.msra.mxu0 0.0
  %2030 = vmatprep.subr.mxu0 0.0
  %2031 = vmatpush1.msra.mxu0 0.0
  %2032 = vmatprep.subr.mxu0 0.0
  %2033 = vmatpush1.msra.mxu0 0.0
  %2034 = vmatprep.subr.mxu0 0.0
  %2035 = vmatpush1.msra.mxu0 0.0
  %2036 = vmatprep.subr.mxu0 0.0
  %2037 = vmatpush1.msra.mxu0 0.0
  %2038 = vmatprep.subr.mxu0 0.0
  %2039 = vmatpush1.msra.mxu0 0.0
  %2040 = vmatprep.subr.mxu0 0.0
  %2041 = vmatpush1.msra.mxu0 0.0
  %2042 = vmatprep.subr.mxu0 0.0
  %2043 = vmatpush1.msra.mxu0 0.0
  %2044 = vmatprep.subr.mxu0 0.0
  %2045 = vmatpush1.msra.mxu0 0.0
  %2046 = vmatprep.subr.mxu0 0.0
  %2047 = vmatpush1.msra.mxu0 0.0
  %2048 = vmatprep.subr.mxu0 0.0
  %2049 = vmatpush1.msra.mxu0 0.0
  %2050 = vmatprep.subr.mxu0 0.0
  %2051 = vmatpush1.msra.mxu0 0.0
  %2052 = vmatprep.subr.mxu0 0.0
  %2053 = vmatpush1.msra.mxu0 0.0
  %2054 = vmatprep.subr.mxu0 0.0
  %2055 = vmatpush1.msra.mxu0 0.0
  %2056 = vmatprep.subr.mxu0 0.0
  %2057 = vmatpush1.msra.mxu0 0.0
  %2058 = vmatprep.subr.mxu0 0.0
  %2059 = vmatpush1.msra.mxu0 0.0
  %2060 = vmatprep.subr.mxu0 0.0
  %2061 = vmatpush1.msra.mxu0 0.0
  %2062 = vmatprep.subr.mxu0 0.0
  %2063 = vmatpush1.msra.mxu0 0.0
  %2064 = vmatprep.mubr.f32.mxu0 0.0
  %2065 = vmatmul.mubr.f32.gmra.mrb[0].mxu0 %v1998
  %v2066 = vpop.f32.mrb[0].mxu0
  %v2067 = vadd.f32 0.0, %v2066
  %v2068 = vpop.f32.mrb[0].mxu0
  %2069 = vmatprep.mubr.f32.mxu0 0.0
  %2070 = vmatmul.mubr.f32.gmra.mrb[0].mxu0 %v1998
  %v2071 = vpop.f32.mrb[0].mxu0
  %v2072 = vadd.f32 0.0, %v2071
  %v2073 = vpop.f32.mrb[0].mxu0
  %2074 = vdwg.mxu0
  %v2075 = vadd.f32 %v1853, %v2067
  %v2076 = vadd.f32 %v1858, %v2072
  %2077 = vmatprep.subr.mxu0 0.0
  %2078 = vmatpush1.msra.mxu0 %v1993
  %2079 = vmatprep.subr.mxu0 0.0
  %2080 = vmatpush1.msra.mxu0 %v1994
  %2081 = vmatprep.subr.mxu0 0.0
  %2082 = vmatpush1.msra.mxu0 %v1995
  %2083 = vmatprep.subr.mxu0 0.0
  %2084 = vmatpush1.msra.mxu0 %v1996
  %2085 = vmatprep.subr.mxu0 0.0
  %2086 = vmatpush1.msra.mxu0 0.0
  %2087 = vmatprep.subr.mxu0 0.0
  %2088 = vmatpush1.msra.mxu0 0.0
  %2089 = vmatprep.subr.mxu0 0.0
  %2090 = vmatpush1.msra.mxu0 0.0
  %2091 = vmatprep.subr.mxu0 0.0
  %2092 = vmatpush1.msra.mxu0 0.0
  %2093 = vmatprep.subr.mxu0 0.0
  %2094 = vmatpush1.msra.mxu0 0.0
  %2095 = vmatprep.subr.mxu0 0.0
  %2096 = vmatpush1.msra.mxu0 0.0
  %2097 = vmatprep.subr.mxu0 0.0
  %2098 = vmatpush1.msra.mxu0 0.0
  %2099 = vmatprep.subr.mxu0 0.0
  %2100 = vmatpush1.msra.mxu0 0.0
  %2101 = vmatprep.subr.mxu0 0.0
  %2102 = vmatpush1.msra.mxu0 0.0
  %2103 = vmatprep.subr.mxu0 0.0
  %2104 = vmatpush1.msra.mxu0 0.0
  %2105 = vmatprep.subr.mxu0 0.0
  %2106 = vmatpush1.msra.mxu0 0.0
  %2107 = vmatprep.subr.mxu0 0.0
  %2108 = vmatpush1.msra.mxu0 0.0
  %2109 = vmatprep.subr.mxu0 0.0
  %2110 = vmatpush1.msra.mxu0 0.0
  %2111 = vmatprep.subr.mxu0 0.0
  %2112 = vmatpush1.msra.mxu0 0.0
  %2113 = vmatprep.subr.mxu0 0.0
  %2114 = vmatpush1.msra.mxu0 0.0
  %2115 = vmatprep.subr.mxu0 0.0
  %2116 = vmatpush1.msra.mxu0 0.0
  %2117 = vmatprep.subr.mxu0 0.0
  %2118 = vmatpush1.msra.mxu0 0.0
  %2119 = vmatprep.subr.mxu0 0.0
  %2120 = vmatpush1.msra.mxu0 0.0
  %2121 = vmatprep.subr.mxu0 0.0
  %2122 = vmatpush1.msra.mxu0 0.0
  %2123 = vmatprep.subr.mxu0 0.0
  %2124 = vmatpush1.msra.mxu0 0.0
  %2125 = vmatprep.subr.mxu0 0.0
  %2126 = vmatpush1.msra.mxu0 0.0
  %2127 = vmatprep.subr.mxu0 0.0
  %2128 = vmatpush1.msra.mxu0 0.0
  %2129 = vmatprep.subr.mxu0 0.0
  %2130 = vmatpush1.msra.mxu0 0.0
  %2131 = vmatprep.subr.mxu0 0.0
  %2132 = vmatpush1.msra.mxu0 0.0
  %2133 = vmatprep.subr.mxu0 0.0
  %2134 = vmatpush1.msra.mxu0 0.0
  %2135 = vmatprep.subr.mxu0 0.0
  %2136 = vmatpush1.msra.mxu0 0.0
  %2137 = vmatprep.subr.mxu0 0.0
  %2138 = vmatpush1.msra.mxu0 0.0
  %2139 = vmatprep.subr.mxu0 0.0
  %2140 = vmatpush1.msra.mxu0 0.0
  %2141 = vmatprep.mubr.f32.mxu0 0.0
  %2142 = vmatmul.mubr.f32.gmra.mrb[0].mxu0 %v1998
  %v2143 = vpop.f32.mrb[0].mxu0
  %v2144 = vadd.f32 0.0, %v2143
  %v2145 = vpop.f32.mrb[0].mxu0
  %2146 = vmatprep.mubr.f32.mxu0 0.0
  %2147 = vmatmul.mubr.f32.gmra.mrb[0].mxu0 %v1998
  %v2148 = vpop.f32.mrb[0].mxu0
  %v2149 = vadd.f32 0.0, %v2148
  %v2150 = vpop.f32.mrb[0].mxu0
  %2151 = vdwg.mxu0
  %v2152 = vadd.f32 %v1981, %v2144
  %v2153 = vadd.f32 %v1986, %v2149
  %v2154 = vxor.u32 %v2075, 2147483648
  %v2155 = vxor.u32 %v2076, 2147483648
  %v2156 = vxor.u32 %v2152, 2147483648
  %v2157 = vxor.u32 %v2153, 2147483648
  %v2158 = vmul.f32 %v2154, 1.442695
  %v2159 = vpow.pop %v2158
  %v2160 = vmul.f32 %v2155, 1.442695
  %v2161 = vpow.pop %v2160
  %v2162 = vmul.f32 %v2156, 1.442695
  %v2163 = vpow.pop %v2162
  %v2164 = vmul.f32 %v2157, 1.442695
  %v2165 = vpow.pop %v2164
  %v2166 = vadd.f32 %v2159, 1.0
  %v2167 = vadd.f32 %v2161, 1.0
  %v2168 = vadd.f32 %v2163, 1.0
  %v2169 = vadd.f32 %v2165, 1.0
  %v2170 = vrcp.pop %v2166
  %v2171 = vmul.f32 1.0, %v2170
  %v2172 = vrcp.pop %v2167
  %v2173 = vmul.f32 1.0, %v2172
  %v2174 = vrcp.pop %v2168
  %v2175 = vmul.f32 1.0, %v2174
  %v2176 = vrcp.pop %v2169
  %v2177 = vmul.f32 1.0, %v2176
  %v2178 = vtanh.pop %v2075
  %v2179 = vtanh.pop %v2076
  %v2180 = vtanh.pop %v2152
  %v2181 = vtanh.pop %v2153
  %v2182 = vmul.f32 %v2171, 0.0
  %v2183 = vmul.f32 %v2173, 0.0
  %v2184 = vmul.f32 %v2175, 0.0
  %v2185 = vmul.f32 %v2177, 0.0
  %2190 = vrot.lane.b32.xlu0 %v2178, 32
  %v2191 = vpop.permute.xlu0 %2190
  %2192 = vrot.lane.b32.xlu0 %v2179, 32
  %v2193 = vpop.permute.xlu0 %2192
  %2194 = vrot.lane.b32.xlu0 %v2180, 32
  %v2195 = vpop.permute.xlu0 %2194
  %2196 = vrot.lane.b32.xlu0 %v2181, 32
  %v2197 = vpop.permute.xlu0 %2196
  %v2202 = vmul.f32 %v2171, %v2191
  %v2203 = vmul.f32 %v2173, %v2193
  %v2204 = vmul.f32 %v2175, %v2195
  %v2205 = vmul.f32 %v2177, %v2197
  %2210 = vrot.lane.b32.xlu0 %v2202, 32
  %v2211 = vpop.permute.xlu0 %2210
  %2212 = vrot.lane.b32.xlu0 %v2203, 32
  %v2213 = vpop.permute.xlu0 %2212
  %2214 = vrot.lane.b32.xlu0 %v2204, 32
  %v2215 = vpop.permute.xlu0 %2214
  %2216 = vrot.lane.b32.xlu0 %v2205, 32
  %v2217 = vpop.permute.xlu0 %2216
  %v2222 = vadd.f32 %v2182, %v2211
  %v2223 = vadd.f32 %v2183, %v2213
  %v2224 = vadd.f32 %v2184, %v2215
  %v2225 = vadd.f32 %v2185, %v2217
  %v2226 = vtanh.pop %v2222
  %v2227 = vtanh.pop %v2223
  %v2228 = vtanh.pop %v2224
  %v2229 = vtanh.pop %v2225
  %2234 = vrot.lane.b32.xlu0 %v2226, 32
  %v2235 = vpop.permute.xlu0 %2234
  %2236 = vrot.lane.b32.xlu0 %v2227, 32
  %v2237 = vpop.permute.xlu0 %2236
  %2238 = vrot.lane.b32.xlu0 %v2228, 32
  %v2239 = vpop.permute.xlu0 %2238
  %2240 = vrot.lane.b32.xlu0 %v2229, 32
  %v2241 = vpop.permute.xlu0 %2240
  %v2246 = vmul.f32 %v2171, %v2235
  %v2247 = vmul.f32 %v2173, %v2237
  %v2248 = vmul.f32 %v2175, %v2239
  %v2249 = vmul.f32 %v2177, %v2241
  %2252 = vrot.lane.b32.xlu0 %v2246, 64
  %v2253 = vpop.permute.xlu0 %2252
  %2254 = vrot.lane.b32.xlu0 %v2247, 64
  %v2255 = vpop.permute.xlu0 %2254
  %v2256 = vsel %vm902, %v2253, 0
  %v2258 = vsel %vm902, %v2255, 0
  %2260 = vmatprep.subr.mxu0 0.0
  %2261 = vmatpush1.msra.mxu0 %v1989
  %2262 = vmatprep.subr.mxu0 0.0
  %2263 = vmatpush1.msra.mxu0 %v1990
  %2264 = vmatprep.subr.mxu0 0.0
  %2265 = vmatpush1.msra.mxu0 %v1991
  %2266 = vmatprep.subr.mxu0 0.0
  %2267 = vmatpush1.msra.mxu0 %v1992
  %2268 = vmatprep.subr.mxu0 0.0
  %2269 = vmatpush1.msra.mxu0 0.0
  %2270 = vmatprep.subr.mxu0 0.0
  %2271 = vmatpush1.msra.mxu0 0.0
  %2272 = vmatprep.subr.mxu0 0.0
  %2273 = vmatpush1.msra.mxu0 0.0
  %2274 = vmatprep.subr.mxu0 0.0
  %2275 = vmatpush1.msra.mxu0 0.0
  %2276 = vmatprep.subr.mxu0 0.0
  %2277 = vmatpush1.msra.mxu0 0.0
  %2278 = vmatprep.subr.mxu0 0.0
  %2279 = vmatpush1.msra.mxu0 0.0
  %2280 = vmatprep.subr.mxu0 0.0
  %2281 = vmatpush1.msra.mxu0 0.0
  %2282 = vmatprep.subr.mxu0 0.0
  %2283 = vmatpush1.msra.mxu0 0.0
  %2284 = vmatprep.subr.mxu0 0.0
  %2285 = vmatpush1.msra.mxu0 0.0
  %2286 = vmatprep.subr.mxu0 0.0
  %2287 = vmatpush1.msra.mxu0 0.0
  %2288 = vmatprep.subr.mxu0 0.0
  %2289 = vmatpush1.msra.mxu0 0.0
  %2290 = vmatprep.subr.mxu0 0.0
  %2291 = vmatpush1.msra.mxu0 0.0
  %2292 = vmatprep.subr.mxu0 0.0
  %2293 = vmatpush1.msra.mxu0 0.0
  %2294 = vmatprep.subr.mxu0 0.0
  %2295 = vmatpush1.msra.mxu0 0.0
  %2296 = vmatprep.subr.mxu0 0.0
  %2297 = vmatpush1.msra.mxu0 0.0
  %2298 = vmatprep.subr.mxu0 0.0
  %2299 = vmatpush1.msra.mxu0 0.0
  %2300 = vmatprep.subr.mxu0 0.0
  %2301 = vmatpush1.msra.mxu0 0.0
  %2302 = vmatprep.subr.mxu0 0.0
  %2303 = vmatpush1.msra.mxu0 0.0
  %2304 = vmatprep.subr.mxu0 0.0
  %2305 = vmatpush1.msra.mxu0 0.0
  %2306 = vmatprep.subr.mxu0 0.0
  %2307 = vmatpush1.msra.mxu0 0.0
  %2308 = vmatprep.subr.mxu0 0.0
  %2309 = vmatpush1.msra.mxu0 0.0
  %2310 = vmatprep.subr.mxu0 0.0
  %2311 = vmatpush1.msra.mxu0 0.0
  %2312 = vmatprep.subr.mxu0 0.0
  %2313 = vmatpush1.msra.mxu0 0.0
  %2314 = vmatprep.subr.mxu0 0.0
  %2315 = vmatpush1.msra.mxu0 0.0
  %2316 = vmatprep.subr.mxu0 0.0
  %2317 = vmatpush1.msra.mxu0 0.0
  %2318 = vmatprep.subr.mxu0 0.0
  %2319 = vmatpush1.msra.mxu0 0.0
  %2320 = vmatprep.subr.mxu0 0.0
  %2321 = vmatpush1.msra.mxu0 0.0
  %2322 = vmatprep.subr.mxu0 0.0
  %2323 = vmatpush1.msra.mxu0 0.0
  %2324 = vmatprep.mubr.f32.mxu0 0.0
  %2325 = vmatmul.mubr.f32.gmra.mrb[0].mxu0 %v2256
  %v2326 = vpop.f32.mrb[0].mxu0
  %v2327 = vadd.f32 0.0, %v2326
  %v2328 = vpop.f32.mrb[0].mxu0
  %2329 = vmatprep.mubr.f32.mxu0 0.0
  %2330 = vmatmul.mubr.f32.gmra.mrb[0].mxu0 %v2258
  %v2331 = vpop.f32.mrb[0].mxu0
  %v2332 = vadd.f32 0.0, %v2331
  %v2333 = vpop.f32.mrb[0].mxu0
  %2334 = vdwg.mxu0
  %v2335 = vadd.f32 %v1863, %v2327
  %v2336 = vadd.f32 %v1868, %v2332
  %2339 = vrot.lane.b32.xlu0 %v2248, 64
  %v2340 = vpop.permute.xlu0 %2339
  %2341 = vrot.lane.b32.xlu0 %v2249, 64
  %v2342 = vpop.permute.xlu0 %2341
  %v2343 = vsel %vm902, %v2340, 0
  %v2345 = vsel %vm902, %v2342, 0
  %2347 = vmatprep.subr.mxu0 0.0
  %2348 = vmatpush1.msra.mxu0 %v1993
  %2349 = vmatprep.subr.mxu0 0.0
  %2350 = vmatpush1.msra.mxu0 %v1994
  %2351 = vmatprep.subr.mxu0 0.0
  %2352 = vmatpush1.msra.mxu0 %v1995
  %2353 = vmatprep.subr.mxu0 0.0
  %2354 = vmatpush1.msra.mxu0 %v1996
  %2355 = vmatprep.subr.mxu0 0.0
  %2356 = vmatpush1.msra.mxu0 0.0
  %2357 = vmatprep.subr.mxu0 0.0
  %2358 = vmatpush1.msra.mxu0 0.0
  %2359 = vmatprep.subr.mxu0 0.0
  %2360 = vmatpush1.msra.mxu0 0.0
  %2361 = vmatprep.subr.mxu0 0.0
  %2362 = vmatpush1.msra.mxu0 0.0
  %2363 = vmatprep.subr.mxu0 0.0
  %2364 = vmatpush1.msra.mxu0 0.0
  %2365 = vmatprep.subr.mxu0 0.0
  %2366 = vmatpush1.msra.mxu0 0.0
  %2367 = vmatprep.subr.mxu0 0.0
  %2368 = vmatpush1.msra.mxu0 0.0
  %2369 = vmatprep.subr.mxu0 0.0
  %2370 = vmatpush1.msra.mxu0 0.0
  %2371 = vmatprep.subr.mxu0 0.0
  %2372 = vmatpush1.msra.mxu0 0.0
  %2373 = vmatprep.subr.mxu0 0.0
  %2374 = vmatpush1.msra.mxu0 0.0
  %2375 = vmatprep.subr.mxu0 0.0
  %2376 = vmatpush1.msra.mxu0 0.0
  %2377 = vmatprep.subr.mxu0 0.0
  %2378 = vmatpush1.msra.mxu0 0.0
  %2379 = vmatprep.subr.mxu0 0.0
  %2380 = vmatpush1.msra.mxu0 0.0
  %2381 = vmatprep.subr.mxu0 0.0
  %2382 = vmatpush1.msra.mxu0 0.0
  %2383 = vmatprep.subr.mxu0 0.0
  %2384 = vmatpush1.msra.mxu0 0.0
  %2385 = vmatprep.subr.mxu0 0.0
  %2386 = vmatpush1.msra.mxu0 0.0
  %2387 = vmatprep.subr.mxu0 0.0
  %2388 = vmatpush1.msra.mxu0 0.0
  %2389 = vmatprep.subr.mxu0 0.0
  %2390 = vmatpush1.msra.mxu0 0.0
  %2391 = vmatprep.subr.mxu0 0.0
  %2392 = vmatpush1.msra.mxu0 0.0
  %2393 = vmatprep.subr.mxu0 0.0
  %2394 = vmatpush1.msra.mxu0 0.0
  %2395 = vmatprep.subr.mxu0 0.0
  %2396 = vmatpush1.msra.mxu0 0.0
  %2397 = vmatprep.subr.mxu0 0.0
  %2398 = vmatpush1.msra.mxu0 0.0
  %2399 = vmatprep.subr.mxu0 0.0
  %2400 = vmatpush1.msra.mxu0 0.0
  %2401 = vmatprep.subr.mxu0 0.0
  %2402 = vmatpush1.msra.mxu0 0.0
  %2403 = vmatprep.subr.mxu0 0.0
  %2404 = vmatpush1.msra.mxu0 0.0
  %2405 = vmatprep.subr.mxu0 0.0
  %2406 = vmatpush1.msra.mxu0 0.0
  %2407 = vmatprep.subr.mxu0 0.0
  %2408 = vmatpush1.msra.mxu0 0.0
  %2409 = vmatprep.subr.mxu0 0.0
  %2410 = vmatpush1.msra.mxu0 0.0
  %2411 = vmatprep.mubr.f32.mxu0 0.0
  %2412 = vmatmul.mubr.f32.gmra.mrb[0].mxu0 %v2343
  %v2413 = vpop.f32.mrb[0].mxu0
  %v2414 = vadd.f32 0.0, %v2413
  %v2415 = vpop.f32.mrb[0].mxu0
  %2416 = vmatprep.mubr.f32.mxu0 0.0
  %2417 = vmatmul.mubr.f32.gmra.mrb[0].mxu0 %v2345
  %v2418 = vpop.f32.mrb[0].mxu0
  %v2419 = vadd.f32 0.0, %v2418
  %v2420 = vpop.f32.mrb[0].mxu0
  %2421 = vdwg.mxu0
  %v2422 = vadd.f32 %v1971, %v2414
  %v2423 = vadd.f32 %v1976, %v2419
  %v2424 = vxor.u32 %v2335, 2147483648
  %v2425 = vxor.u32 %v2336, 2147483648
  %v2426 = vxor.u32 %v2422, 2147483648
  %v2427 = vxor.u32 %v2423, 2147483648
  %v2428 = vmul.f32 %v2424, 1.442695
  %v2429 = vpow.pop %v2428
  %v2430 = vmul.f32 %v2425, 1.442695
  %v2431 = vpow.pop %v2430
  %v2432 = vmul.f32 %v2426, 1.442695
  %v2433 = vpow.pop %v2432
  %v2434 = vmul.f32 %v2427, 1.442695
  %v2435 = vpow.pop %v2434
  %v2436 = vadd.f32 %v2429, 1.0
  %v2437 = vadd.f32 %v2431, 1.0
  %v2438 = vadd.f32 %v2433, 1.0
  %v2439 = vadd.f32 %v2435, 1.0
  %v2440 = vrcp.pop %v2436
  %v2441 = vmul.f32 1.0, %v2440
  %v2442 = vrcp.pop %v2437
  %v2443 = vmul.f32 1.0, %v2442
  %v2444 = vrcp.pop %v2438
  %v2445 = vmul.f32 1.0, %v2444
  %v2446 = vrcp.pop %v2439
  %v2447 = vmul.f32 1.0, %v2446
  %v2448 = vtanh.pop %v2335
  %v2449 = vtanh.pop %v2336
  %v2450 = vtanh.pop %v2422
  %v2451 = vtanh.pop %v2423
  %v2452 = vmul.f32 %v2441, %v2222
  %v2453 = vmul.f32 %v2443, %v2223
  %v2454 = vmul.f32 %v2445, %v2224
  %v2455 = vmul.f32 %v2447, %v2225
  %2460 = vrot.lane.b32.xlu0 %v2448, 32
  %v2461 = vpop.permute.xlu0 %2460
  %2462 = vrot.lane.b32.xlu0 %v2449, 32
  %v2463 = vpop.permute.xlu0 %2462
  %2464 = vrot.lane.b32.xlu0 %v2450, 32
  %v2465 = vpop.permute.xlu0 %2464
  %2466 = vrot.lane.b32.xlu0 %v2451, 32
  %v2467 = vpop.permute.xlu0 %2466
  %v2472 = vmul.f32 %v2441, %v2461
  %v2473 = vmul.f32 %v2443, %v2463
  %v2474 = vmul.f32 %v2445, %v2465
  %v2475 = vmul.f32 %v2447, %v2467
  %2480 = vrot.lane.b32.xlu0 %v2472, 32
  %v2481 = vpop.permute.xlu0 %2480
  %2482 = vrot.lane.b32.xlu0 %v2473, 32
  %v2483 = vpop.permute.xlu0 %2482
  %2484 = vrot.lane.b32.xlu0 %v2474, 32
  %v2485 = vpop.permute.xlu0 %2484
  %2486 = vrot.lane.b32.xlu0 %v2475, 32
  %v2487 = vpop.permute.xlu0 %2486
  %v2492 = vadd.f32 %v2452, %v2481
  %v2493 = vadd.f32 %v2453, %v2483
  %v2494 = vadd.f32 %v2454, %v2485
  %v2495 = vadd.f32 %v2455, %v2487
  %v2496 = vtanh.pop %v2492
  %v2497 = vtanh.pop %v2493
  %v2498 = vtanh.pop %v2494
  %v2499 = vtanh.pop %v2495
  %2504 = vrot.lane.b32.xlu0 %v2496, 32
  %v2505 = vpop.permute.xlu0 %2504
  %2506 = vrot.lane.b32.xlu0 %v2497, 32
  %v2507 = vpop.permute.xlu0 %2506
  %2508 = vrot.lane.b32.xlu0 %v2498, 32
  %v2509 = vpop.permute.xlu0 %2508
  %2510 = vrot.lane.b32.xlu0 %v2499, 32
  %v2511 = vpop.permute.xlu0 %2510
  %v2516 = vmul.f32 %v2441, %v2505
  %v2517 = vmul.f32 %v2443, %v2507
  %v2518 = vmul.f32 %v2445, %v2509
  %v2519 = vmul.f32 %v2447, %v2511
  %2522 = vrot.lane.b32.xlu0 %v2516, 64
  %v2523 = vpop.permute.xlu0 %2522
  %2524 = vrot.lane.b32.xlu0 %v2517, 64
  %v2525 = vpop.permute.xlu0 %2524
  %v2526 = vsel %vm902, %v2523, 0
  %v2528 = vsel %vm902, %v2525, 0
  %2530 = vmatprep.subr.mxu0 0.0
  %2531 = vmatpush1.msra.mxu0 %v1989
  %2532 = vmatprep.subr.mxu0 0.0
  %2533 = vmatpush1.msra.mxu0 %v1990
  %2534 = vmatprep.subr.mxu0 0.0
  %2535 = vmatpush1.msra.mxu0 %v1991
  %2536 = vmatprep.subr.mxu0 0.0
  %2537 = vmatpush1.msra.mxu0 %v1992
  %2538 = vmatprep.subr.mxu0 0.0
  %2539 = vmatpush1.msra.mxu0 0.0
  %2540 = vmatprep.subr.mxu0 0.0
  %2541 = vmatpush1.msra.mxu0 0.0
  %2542 = vmatprep.subr.mxu0 0.0
  %2543 = vmatpush1.msra.mxu0 0.0
  %2544 = vmatprep.subr.mxu0 0.0
  %2545 = vmatpush1.msra.mxu0 0.0
  %2546 = vmatprep.subr.mxu0 0.0
  %2547 = vmatpush1.msra.mxu0 0.0
  %2548 = vmatprep.subr.mxu0 0.0
  %2549 = vmatpush1.msra.mxu0 0.0
  %2550 = vmatprep.subr.mxu0 0.0
  %2551 = vmatpush1.msra.mxu0 0.0
  %2552 = vmatprep.subr.mxu0 0.0
  %2553 = vmatpush1.msra.mxu0 0.0
  %2554 = vmatprep.subr.mxu0 0.0
  %2555 = vmatpush1.msra.mxu0 0.0
  %2556 = vmatprep.subr.mxu0 0.0
  %2557 = vmatpush1.msra.mxu0 0.0
  %2558 = vmatprep.subr.mxu0 0.0
  %2559 = vmatpush1.msra.mxu0 0.0
  %2560 = vmatprep.subr.mxu0 0.0
  %2561 = vmatpush1.msra.mxu0 0.0
  %2562 = vmatprep.subr.mxu0 0.0
  %2563 = vmatpush1.msra.mxu0 0.0
  %2564 = vmatprep.subr.mxu0 0.0
  %2565 = vmatpush1.msra.mxu0 0.0
  %2566 = vmatprep.subr.mxu0 0.0
  %2567 = vmatpush1.msra.mxu0 0.0
  %2568 = vmatprep.subr.mxu0 0.0
  %2569 = vmatpush1.msra.mxu0 0.0
  %2570 = vmatprep.subr.mxu0 0.0
  %2571 = vmatpush1.msra.mxu0 0.0
  %2572 = vmatprep.subr.mxu0 0.0
  %2573 = vmatpush1.msra.mxu0 0.0
  %2574 = vmatprep.subr.mxu0 0.0
  %2575 = vmatpush1.msra.mxu0 0.0
  %2576 = vmatprep.subr.mxu0 0.0
  %2577 = vmatpush1.msra.mxu0 0.0
  %2578 = vmatprep.subr.mxu0 0.0
  %2579 = vmatpush1.msra.mxu0 0.0
  %2580 = vmatprep.subr.mxu0 0.0
  %2581 = vmatpush1.msra.mxu0 0.0
  %2582 = vmatprep.subr.mxu0 0.0
  %2583 = vmatpush1.msra.mxu0 0.0
  %2584 = vmatprep.subr.mxu0 0.0
  %2585 = vmatpush1.msra.mxu0 0.0
  %2586 = vmatprep.subr.mxu0 0.0
  %2587 = vmatpush1.msra.mxu0 0.0
  %2588 = vmatprep.subr.mxu0 0.0
  %2589 = vmatpush1.msra.mxu0 0.0
  %2590 = vmatprep.subr.mxu0 0.0
  %2591 = vmatpush1.msra.mxu0 0.0
  %2592 = vmatprep.subr.mxu0 0.0
  %2593 = vmatpush1.msra.mxu0 0.0
  %2594 = vmatprep.mubr.f32.mxu0 0.0
  %2595 = vmatmul.mubr.f32.gmra.mrb[0].mxu0 %v2526
  %v2596 = vpop.f32.mrb[0].mxu0
  %v2597 = vadd.f32 0.0, %v2596
  %v2598 = vpop.f32.mrb[0].mxu0
  %2599 = vmatprep.mubr.f32.mxu0 0.0
  %2600 = vmatmul.mubr.f32.gmra.mrb[0].mxu0 %v2528
  %v2601 = vpop.f32.mrb[0].mxu0
  %v2602 = vadd.f32 0.0, %v2601
  %v2603 = vpop.f32.mrb[0].mxu0
  %2604 = vdwg.mxu0
  %v2605 = vadd.f32 %v1873, %v2597
  %v2606 = vadd.f32 %v1878, %v2602
  %2609 = vrot.lane.b32.xlu0 %v2518, 64
  %v2610 = vpop.permute.xlu0 %2609
  %2611 = vrot.lane.b32.xlu0 %v2519, 64
  %v2612 = vpop.permute.xlu0 %2611
  %v2613 = vsel %vm902, %v2610, 0
  %v2615 = vsel %vm902, %v2612, 0
  %2617 = vmatprep.subr.mxu0 0.0
  %2618 = vmatpush1.msra.mxu0 %v1993
  %2619 = vmatprep.subr.mxu0 0.0
  %2620 = vmatpush1.msra.mxu0 %v1994
  %2621 = vmatprep.subr.mxu0 0.0
  %2622 = vmatpush1.msra.mxu0 %v1995
  %2623 = vmatprep.subr.mxu0 0.0
  %2624 = vmatpush1.msra.mxu0 %v1996
  %2625 = vmatprep.subr.mxu0 0.0
  %2626 = vmatpush1.msra.mxu0 0.0
  %2627 = vmatprep.subr.mxu0 0.0
  %2628 = vmatpush1.msra.mxu0 0.0
  %2629 = vmatprep.subr.mxu0 0.0
  %2630 = vmatpush1.msra.mxu0 0.0
  %2631 = vmatprep.subr.mxu0 0.0
  %2632 = vmatpush1.msra.mxu0 0.0
  %2633 = vmatprep.subr.mxu0 0.0
  %2634 = vmatpush1.msra.mxu0 0.0
  %2635 = vmatprep.subr.mxu0 0.0
  %2636 = vmatpush1.msra.mxu0 0.0
  %2637 = vmatprep.subr.mxu0 0.0
  %2638 = vmatpush1.msra.mxu0 0.0
  %2639 = vmatprep.subr.mxu0 0.0
  %2640 = vmatpush1.msra.mxu0 0.0
  %2641 = vmatprep.subr.mxu0 0.0
  %2642 = vmatpush1.msra.mxu0 0.0
  %2643 = vmatprep.subr.mxu0 0.0
  %2644 = vmatpush1.msra.mxu0 0.0
  %2645 = vmatprep.subr.mxu0 0.0
  %2646 = vmatpush1.msra.mxu0 0.0
  %2647 = vmatprep.subr.mxu0 0.0
  %2648 = vmatpush1.msra.mxu0 0.0
  %2649 = vmatprep.subr.mxu0 0.0
  %2650 = vmatpush1.msra.mxu0 0.0
  %2651 = vmatprep.subr.mxu0 0.0
  %2652 = vmatpush1.msra.mxu0 0.0
  %2653 = vmatprep.subr.mxu0 0.0
  %2654 = vmatpush1.msra.mxu0 0.0
  %2655 = vmatprep.subr.mxu0 0.0
  %2656 = vmatpush1.msra.mxu0 0.0
  %2657 = vmatprep.subr.mxu0 0.0
  %2658 = vmatpush1.msra.mxu0 0.0
  %2659 = vmatprep.subr.mxu0 0.0
  %2660 = vmatpush1.msra.mxu0 0.0
  %2661 = vmatprep.subr.mxu0 0.0
  %2662 = vmatpush1.msra.mxu0 0.0
  %2663 = vmatprep.subr.mxu0 0.0
  %2664 = vmatpush1.msra.mxu0 0.0
  %2665 = vmatprep.subr.mxu0 0.0
  %2666 = vmatpush1.msra.mxu0 0.0
  %2667 = vmatprep.subr.mxu0 0.0
  %2668 = vmatpush1.msra.mxu0 0.0
  %2669 = vmatprep.subr.mxu0 0.0
  %2670 = vmatpush1.msra.mxu0 0.0
  %2671 = vmatprep.subr.mxu0 0.0
  %2672 = vmatpush1.msra.mxu0 0.0
  %2673 = vmatprep.subr.mxu0 0.0
  %2674 = vmatpush1.msra.mxu0 0.0
  %2675 = vmatprep.subr.mxu0 0.0
  %2676 = vmatpush1.msra.mxu0 0.0
  %2677 = vmatprep.subr.mxu0 0.0
  %2678 = vmatpush1.msra.mxu0 0.0
  %2679 = vmatprep.subr.mxu0 0.0
  %2680 = vmatpush1.msra.mxu0 0.0
  %2681 = vmatprep.mubr.f32.mxu0 0.0
  %2682 = vmatmul.mubr.f32.gmra.mrb[0].mxu0 %v2613
  %v2683 = vpop.f32.mrb[0].mxu0
  %v2684 = vadd.f32 0.0, %v2683
  %v2685 = vpop.f32.mrb[0].mxu0
  %2686 = vmatprep.mubr.f32.mxu0 0.0
  %2687 = vmatmul.mubr.f32.gmra.mrb[0].mxu0 %v2615
  %v2688 = vpop.f32.mrb[0].mxu0
  %v2689 = vadd.f32 0.0, %v2688
  %v2690 = vpop.f32.mrb[0].mxu0
  %2691 = vdwg.mxu0
  %v2692 = vadd.f32 %v1961, %v2684
  %v2693 = vadd.f32 %v1966, %v2689
  %v2694 = vxor.u32 %v2605, 2147483648
  %v2695 = vxor.u32 %v2606, 2147483648
  %v2696 = vxor.u32 %v2692, 2147483648
  %v2697 = vxor.u32 %v2693, 2147483648
  %v2698 = vmul.f32 %v2694, 1.442695
  %v2699 = vpow.pop %v2698
  %v2700 = vmul.f32 %v2695, 1.442695
  %v2701 = vpow.pop %v2700
  %v2702 = vmul.f32 %v2696, 1.442695
  %v2703 = vpow.pop %v2702
  %v2704 = vmul.f32 %v2697, 1.442695
  %v2705 = vpow.pop %v2704
  %v2706 = vadd.f32 %v2699, 1.0
  %v2707 = vadd.f32 %v2701, 1.0
  %v2708 = vadd.f32 %v2703, 1.0
  %v2709 = vadd.f32 %v2705, 1.0
  %v2710 = vrcp.pop %v2706
  %v2711 = vmul.f32 1.0, %v2710
  %v2712 = vrcp.pop %v2707
  %v2713 = vmul.f32 1.0, %v2712
  %v2714 = vrcp.pop %v2708
  %v2715 = vmul.f32 1.0, %v2714
  %v2716 = vrcp.pop %v2709
  %v2717 = vmul.f32 1.0, %v2716
  %v2718 = vtanh.pop %v2605
  %v2719 = vtanh.pop %v2606
  %v2720 = vtanh.pop %v2692
  %v2721 = vtanh.pop %v2693
  %v2722 = vmul.f32 %v2711, %v2492
  %v2723 = vmul.f32 %v2713, %v2493
  %v2724 = vmul.f32 %v2715, %v2494
  %v2725 = vmul.f32 %v2717, %v2495
  %2730 = vrot.lane.b32.xlu0 %v2718, 32
  %v2731 = vpop.permute.xlu0 %2730
  %2732 = vrot.lane.b32.xlu0 %v2719, 32
  %v2733 = vpop.permute.xlu0 %2732
  %2734 = vrot.lane.b32.xlu0 %v2720, 32
  %v2735 = vpop.permute.xlu0 %2734
  %2736 = vrot.lane.b32.xlu0 %v2721, 32
  %v2737 = vpop.permute.xlu0 %2736
  %v2742 = vmul.f32 %v2711, %v2731
  %v2743 = vmul.f32 %v2713, %v2733
  %v2744 = vmul.f32 %v2715, %v2735
  %v2745 = vmul.f32 %v2717, %v2737
  %2750 = vrot.lane.b32.xlu0 %v2742, 32
  %v2751 = vpop.permute.xlu0 %2750
  %2752 = vrot.lane.b32.xlu0 %v2743, 32
  %v2753 = vpop.permute.xlu0 %2752
  %2754 = vrot.lane.b32.xlu0 %v2744, 32
  %v2755 = vpop.permute.xlu0 %2754
  %2756 = vrot.lane.b32.xlu0 %v2745, 32
  %v2757 = vpop.permute.xlu0 %2756
  %v2762 = vadd.f32 %v2722, %v2751
  %v2763 = vadd.f32 %v2723, %v2753
  %v2764 = vadd.f32 %v2724, %v2755
  %v2765 = vadd.f32 %v2725, %v2757
  %v2766 = vtanh.pop %v2762
  %v2767 = vtanh.pop %v2763
  %v2768 = vtanh.pop %v2764
  %v2769 = vtanh.pop %v2765
  %2774 = vrot.lane.b32.xlu0 %v2766, 32
  %v2775 = vpop.permute.xlu0 %2774
  %2776 = vrot.lane.b32.xlu0 %v2767, 32
  %v2777 = vpop.permute.xlu0 %2776
  %2778 = vrot.lane.b32.xlu0 %v2768, 32
  %v2779 = vpop.permute.xlu0 %2778
  %2780 = vrot.lane.b32.xlu0 %v2769, 32
  %v2781 = vpop.permute.xlu0 %2780
  %v2786 = vmul.f32 %v2711, %v2775
  %v2787 = vmul.f32 %v2713, %v2777
  %v2788 = vmul.f32 %v2715, %v2779
  %v2789 = vmul.f32 %v2717, %v2781
  %2792 = vrot.lane.b32.xlu0 %v2786, 64
  %v2793 = vpop.permute.xlu0 %2792
  %2794 = vrot.lane.b32.xlu0 %v2787, 64
  %v2795 = vpop.permute.xlu0 %2794
  %2804 = vrot.lane.b32.xlu0 %v2788, 96
  %v2805 = vpop.permute.xlu0 %2804
  %2806 = vrot.lane.b32.xlu0 %v2789, 96
  %v2807 = vpop.permute.xlu0 %2806
  %2808 = vrot.lane.b32.xlu0 %v2518, 96
  %v2809 = vpop.permute.xlu0 %2808
  %2810 = vrot.lane.b32.xlu0 %v2519, 96
  %v2811 = vpop.permute.xlu0 %2810
  %2812 = vrot.lane.b32.xlu0 %v2248, 96
  %v2813 = vpop.permute.xlu0 %2812
  %2814 = vrot.lane.b32.xlu0 %v2249, 96
  %v2815 = vpop.permute.xlu0 %2814
  %v2822 = vsel %vm902, %v2253, %v2805
  %v2823 = vsel %vm902, %v2255, %v2807
  %v2824 = vsel %vm902, %v2523, %v2809
  %v2825 = vsel %vm902, %v2525, %v2811
  %v2826 = vsel %vm902, %v2793, %v2813
  %v2827 = vsel %vm902, %v2795, %v2815
  %v2828 = vld [vmem:[%s1 + $0x238] sm:$0xff]
  %v2829 = vld [vmem:[%s1 + $0x240] sm:$0xff]
  %v2830 = vld [vmem:[%s1 + $0x248] sm:$0xff]
  %v2831 = vld [vmem:[%s1 + $0x250] sm:$0xff]
  %v2832 = vld [vmem:[%s1 + $0x258] sm:$0xff]
  %v2833 = vld [vmem:[%s1 + $0x260] sm:$0xff]
  %v2834 = vld [vmem:[%s1 + $0x268] sm:$0xff]
  %v2835 = vld [vmem:[%s1 + $0x270] sm:$0xff]
  %v2836 = vld [vmem:[%s1 + $0x298] sm:$0x1]
  %v2837 = vlaneseq
  %v2838 = vshrl.u32 %v2837, 7
  %v2839 = vsub.s32 0, %v2838
  %v2840 = vrot.slane %v2836, %v2839
  %v2842 = vsel %vm922, %v2822, 0
  %v2845 = vsel %vm922, %v2823, 0
  %v2848 = vsel %vm922, %v2824, 0
  %v2851 = vsel %vm922, %v2825, 0
  %v2854 = vsel %vm922, %v2826, 0
  %v2857 = vsel %vm922, %v2827, 0
  %2859 = vmatprep.subr.mxu0 0.0
  %2860 = vmatpush1.msra.mxu0 %v2828
  %2861 = vmatprep.subr.mxu0 0.0
  %2862 = vmatpush1.msra.mxu0 %v2829
  %2863 = vmatprep.subr.mxu0 0.0
  %2864 = vmatpush1.msra.mxu0 %v2830
  %2865 = vmatprep.subr.mxu0 0.0
  %2866 = vmatpush1.msra.mxu0 %v2831
  %2867 = vmatprep.subr.mxu0 0.0
  %2868 = vmatpush1.msra.mxu0 %v2832
  %2869 = vmatprep.subr.mxu0 0.0
  %2870 = vmatpush1.msra.mxu0 %v2833
  %2871 = vmatprep.subr.mxu0 0.0
  %2872 = vmatpush1.msra.mxu0 %v2834
  %2873 = vmatprep.subr.mxu0 0.0
  %2874 = vmatpush1.msra.mxu0 %v2835
  %2875 = vmatprep.subr.mxu0 0.0
  %2876 = vmatpush1.msra.mxu0 0.0
  %2877 = vmatprep.subr.mxu0 0.0
  %2878 = vmatpush1.msra.mxu0 0.0
  %2879 = vmatprep.subr.mxu0 0.0
  %2880 = vmatpush1.msra.mxu0 0.0
  %2881 = vmatprep.subr.mxu0 0.0
  %2882 = vmatpush1.msra.mxu0 0.0
  %2883 = vmatprep.subr.mxu0 0.0
  %2884 = vmatpush1.msra.mxu0 0.0
  %2885 = vmatprep.subr.mxu0 0.0
  %2886 = vmatpush1.msra.mxu0 0.0
  %2887 = vmatprep.subr.mxu0 0.0
  %2888 = vmatpush1.msra.mxu0 0.0
  %2889 = vmatprep.subr.mxu0 0.0
  %2890 = vmatpush1.msra.mxu0 0.0
  %2891 = vmatprep.subr.mxu0 0.0
  %2892 = vmatpush1.msra.mxu0 0.0
  %2893 = vmatprep.subr.mxu0 0.0
  %2894 = vmatpush1.msra.mxu0 0.0
  %2895 = vmatprep.subr.mxu0 0.0
  %2896 = vmatpush1.msra.mxu0 0.0
  %2897 = vmatprep.subr.mxu0 0.0
  %2898 = vmatpush1.msra.mxu0 0.0
  %2899 = vmatprep.subr.mxu0 0.0
  %2900 = vmatpush1.msra.mxu0 0.0
  %2901 = vmatprep.subr.mxu0 0.0
  %2902 = vmatpush1.msra.mxu0 0.0
  %2903 = vmatprep.subr.mxu0 0.0
  %2904 = vmatpush1.msra.mxu0 0.0
  %2905 = vmatprep.subr.mxu0 0.0
  %2906 = vmatpush1.msra.mxu0 0.0
  %2907 = vmatprep.subr.mxu0 0.0
  %2908 = vmatpush1.msra.mxu0 0.0
  %2909 = vmatprep.subr.mxu0 0.0
  %2910 = vmatpush1.msra.mxu0 0.0
  %2911 = vmatprep.subr.mxu0 0.0
  %2912 = vmatpush1.msra.mxu0 0.0
  %2913 = vmatprep.subr.mxu0 0.0
  %2914 = vmatpush1.msra.mxu0 0.0
  %2915 = vmatprep.subr.mxu0 0.0
  %2916 = vmatpush1.msra.mxu0 0.0
  %2917 = vmatprep.subr.mxu0 0.0
  %2918 = vmatpush1.msra.mxu0 0.0
  %2919 = vmatprep.subr.mxu0 0.0
  %2920 = vmatpush1.msra.mxu0 0.0
  %2921 = vmatprep.subr.mxu0 0.0
  %2922 = vmatpush1.msra.mxu0 0.0
  %2923 = vmatprep.mubr.f32.mxu0 0.0
  %2924 = vmatmul.mubr.f32.gmra.mrb[0].mxu0 %v2842
  %v2925 = vpop.f32.mrb[0].mxu0
  %v2926 = vadd.f32 %v2840, %v2925
  %v2927 = vpop.f32.mrb[0].mxu0
  %2928 = vmatprep.mubr.f32.mxu0 0.0
  %2929 = vmatmul.mubr.f32.gmra.mrb[0].mxu0 %v2845
  %v2930 = vpop.f32.mrb[0].mxu0
  %v2931 = vadd.f32 %v2840, %v2930
  %v2932 = vpop.f32.mrb[0].mxu0
  %2933 = vmatprep.mubr.f32.mxu0 0.0
  %2934 = vmatmul.mubr.f32.gmra.mrb[0].mxu0 %v2848
  %v2935 = vpop.f32.mrb[0].mxu0
  %v2936 = vadd.f32 %v2840, %v2935
  %v2937 = vpop.f32.mrb[0].mxu0
  %2938 = vmatprep.mubr.f32.mxu0 0.0
  %2939 = vmatmul.mubr.f32.gmra.mrb[0].mxu0 %v2851
  %v2940 = vpop.f32.mrb[0].mxu0
  %v2941 = vadd.f32 %v2840, %v2940
  %v2942 = vpop.f32.mrb[0].mxu0
  %2943 = vmatprep.mubr.f32.mxu0 0.0
  %2944 = vmatmul.mubr.f32.gmra.mrb[0].mxu0 %v2854
  %v2945 = vpop.f32.mrb[0].mxu0
  %v2946 = vadd.f32 %v2840, %v2945
  %v2947 = vpop.f32.mrb[0].mxu0
  %2948 = vmatprep.mubr.f32.mxu0 0.0
  %2949 = vmatmul.mubr.f32.gmra.mrb[0].mxu0 %v2857
  %v2950 = vpop.f32.mrb[0].mxu0
  %v2951 = vadd.f32 %v2840, %v2950
  %v2952 = vpop.f32.mrb[0].mxu0
  %2953 = vdwg.mxu0
  %v2954 = vld [vmem:[%s1 + $0x2a0] sm:$0xff]
  %v2955 = vld [vmem:[%s1 + $0x2a8] sm:$0xff]
  %v2956 = vld [vmem:[%s1 + $0x2b0] sm:$0xff]
  %v2957 = vld [vmem:[%s1 + $0x2b8] sm:$0xff]
  %v2958 = vld [vmem:[%s1 + $0x2c0] sm:$0xff]
  %v2959 = vld [vmem:[%s1 + $0x2c8] sm:$0xff]
  %v2960 = vld [vmem:[%s1 + $0x2d0] sm:$0xff]
  %v2961 = vld [vmem:[%s1 + $0x2d8] sm:$0xff]
  %v2962 = vld [vmem:[%s1 + $0x300] sm:$0x1]
  %v2963 = vlaneseq
  %v2964 = vshrl.u32 %v2963, 7
  %v2965 = vsub.s32 0, %v2964
  %v2966 = vrot.slane %v2962, %v2965
  %2967 = vmatprep.subr.mxu0 0.0
  %2968 = vmatpush1.msra.mxu0 %v2954
  %2969 = vmatprep.subr.mxu0 0.0
  %2970 = vmatpush1.msra.mxu0 %v2955
  %2971 = vmatprep.subr.mxu0 0.0
  %2972 = vmatpush1.msra.mxu0 %v2956
  %2973 = vmatprep.subr.mxu0 0.0
  %2974 = vmatpush1.msra.mxu0 %v2957
  %2975 = vmatprep.subr.mxu0 0.0
  %2976 = vmatpush1.msra.mxu0 %v2958
  %2977 = vmatprep.subr.mxu0 0.0
  %2978 = vmatpush1.msra.mxu0 %v2959
  %2979 = vmatprep.subr.mxu0 0.0
  %2980 = vmatpush1.msra.mxu0 %v2960
  %2981 = vmatprep.subr.mxu0 0.0
  %2982 = vmatpush1.msra.mxu0 %v2961
  %2983 = vmatprep.subr.mxu0 0.0
  %2984 = vmatpush1.msra.mxu0 0.0
  %2985 = vmatprep.subr.mxu0 0.0
  %2986 = vmatpush1.msra.mxu0 0.0
  %2987 = vmatprep.subr.mxu0 0.0
  %2988 = vmatpush1.msra.mxu0 0.0
  %2989 = vmatprep.subr.mxu0 0.0
  %2990 = vmatpush1.msra.mxu0 0.0
  %2991 = vmatprep.subr.mxu0 0.0
  %2992 = vmatpush1.msra.mxu0 0.0
  %2993 = vmatprep.subr.mxu0 0.0
  %2994 = vmatpush1.msra.mxu0 0.0
  %2995 = vmatprep.subr.mxu0 0.0
  %2996 = vmatpush1.msra.mxu0 0.0
  %2997 = vmatprep.subr.mxu0 0.0
  %2998 = vmatpush1.msra.mxu0 0.0
  %2999 = vmatprep.subr.mxu0 0.0
  %3000 = vmatpush1.msra.mxu0 0.0
  %3001 = vmatprep.subr.mxu0 0.0
  %3002 = vmatpush1.msra.mxu0 0.0
  %3003 = vmatprep.subr.mxu0 0.0
  %3004 = vmatpush1.msra.mxu0 0.0
  %3005 = vmatprep.subr.mxu0 0.0
  %3006 = vmatpush1.msra.mxu0 0.0
  %3007 = vmatprep.subr.mxu0 0.0
  %3008 = vmatpush1.msra.mxu0 0.0
  %3009 = vmatprep.subr.mxu0 0.0
  %3010 = vmatpush1.msra.mxu0 0.0
  %3011 = vmatprep.subr.mxu0 0.0
  %3012 = vmatpush1.msra.mxu0 0.0
  %3013 = vmatprep.subr.mxu0 0.0
  %3014 = vmatpush1.msra.mxu0 0.0
  %3015 = vmatprep.subr.mxu0 0.0
  %3016 = vmatpush1.msra.mxu0 0.0
  %3017 = vmatprep.subr.mxu0 0.0
  %3018 = vmatpush1.msra.mxu0 0.0
  %3019 = vmatprep.subr.mxu0 0.0
  %3020 = vmatpush1.msra.mxu0 0.0
  %3021 = vmatprep.subr.mxu0 0.0
  %3022 = vmatpush1.msra.mxu0 0.0
  %3023 = vmatprep.subr.mxu0 0.0
  %3024 = vmatpush1.msra.mxu0 0.0
  %3025 = vmatprep.subr.mxu0 0.0
  %3026 = vmatpush1.msra.mxu0 0.0
  %3027 = vmatprep.subr.mxu0 0.0
  %3028 = vmatpush1.msra.mxu0 0.0
  %3029 = vmatprep.subr.mxu0 0.0
  %3030 = vmatpush1.msra.mxu0 0.0
  %3031 = vmatprep.mubr.f32.mxu0 0.0
  %3032 = vmatmul.mubr.f32.gmra.mrb[0].mxu0 %v2842
  %v3033 = vpop.f32.mrb[0].mxu0
  %v3034 = vadd.f32 %v2966, %v3033
  %v3035 = vpop.f32.mrb[0].mxu0
  %3036 = vmatprep.mubr.f32.mxu0 0.0
  %3037 = vmatmul.mubr.f32.gmra.mrb[0].mxu0 %v2845
  %v3038 = vpop.f32.mrb[0].mxu0
  %v3039 = vadd.f32 %v2966, %v3038
  %v3040 = vpop.f32.mrb[0].mxu0
  %3041 = vmatprep.mubr.f32.mxu0 0.0
  %3042 = vmatmul.mubr.f32.gmra.mrb[0].mxu0 %v2848
  %v3043 = vpop.f32.mrb[0].mxu0
  %v3044 = vadd.f32 %v2966, %v3043
  %v3045 = vpop.f32.mrb[0].mxu0
  %3046 = vmatprep.mubr.f32.mxu0 0.0
  %3047 = vmatmul.mubr.f32.gmra.mrb[0].mxu0 %v2851
  %v3048 = vpop.f32.mrb[0].mxu0
  %v3049 = vadd.f32 %v2966, %v3048
  %v3050 = vpop.f32.mrb[0].mxu0
  %3051 = vmatprep.mubr.f32.mxu0 0.0
  %3052 = vmatmul.mubr.f32.gmra.mrb[0].mxu0 %v2854
  %v3053 = vpop.f32.mrb[0].mxu0
  %v3054 = vadd.f32 %v2966, %v3053
  %v3055 = vpop.f32.mrb[0].mxu0
  %3056 = vmatprep.mubr.f32.mxu0 0.0
  %3057 = vmatmul.mubr.f32.gmra.mrb[0].mxu0 %v2857
  %v3058 = vpop.f32.mrb[0].mxu0
  %v3059 = vadd.f32 %v2966, %v3058
  %v3060 = vpop.f32.mrb[0].mxu0
  %3061 = vdwg.mxu0
  %v3062 = vld [vmem:[%s1 + $0x278] sm:$0xff]
  %v3063 = vld [vmem:[%s1 + $0x280] sm:$0xff]
  %v3064 = vld [vmem:[%s1 + $0x288] sm:$0xff]
  %v3065 = vld [vmem:[%s1 + $0x290] sm:$0xff]
  %v3066 = vld [vmem:[%s1 + $0x2e0] sm:$0xff]
  %v3067 = vld [vmem:[%s1 + $0x2e8] sm:$0xff]
  %v3068 = vld [vmem:[%s1 + $0x2f0] sm:$0xff]
  %v3069 = vld [vmem:[%s1 + $0x2f8] sm:$0xff]
  %3070 = vmatprep.subr.mxu0 0.0
  %3071 = vmatpush1.msra.mxu0 %v3062
  %3072 = vmatprep.subr.mxu0 0.0
  %3073 = vmatpush1.msra.mxu0 %v3063
  %3074 = vmatprep.subr.mxu0 0.0
  %3075 = vmatpush1.msra.mxu0 %v3064
  %3076 = vmatprep.subr.mxu0 0.0
  %3077 = vmatpush1.msra.mxu0 %v3065
  %3078 = vmatprep.subr.mxu0 0.0
  %3079 = vmatpush1.msra.mxu0 0.0
  %3080 = vmatprep.subr.mxu0 0.0
  %3081 = vmatpush1.msra.mxu0 0.0
  %3082 = vmatprep.subr.mxu0 0.0
  %3083 = vmatpush1.msra.mxu0 0.0
  %3084 = vmatprep.subr.mxu0 0.0
  %3085 = vmatpush1.msra.mxu0 0.0
  %3086 = vmatprep.subr.mxu0 0.0
  %3087 = vmatpush1.msra.mxu0 0.0
  %3088 = vmatprep.subr.mxu0 0.0
  %3089 = vmatpush1.msra.mxu0 0.0
  %3090 = vmatprep.subr.mxu0 0.0
  %3091 = vmatpush1.msra.mxu0 0.0
  %3092 = vmatprep.subr.mxu0 0.0
  %3093 = vmatpush1.msra.mxu0 0.0
  %3094 = vmatprep.subr.mxu0 0.0
  %3095 = vmatpush1.msra.mxu0 0.0
  %3096 = vmatprep.subr.mxu0 0.0
  %3097 = vmatpush1.msra.mxu0 0.0
  %3098 = vmatprep.subr.mxu0 0.0
  %3099 = vmatpush1.msra.mxu0 0.0
  %3100 = vmatprep.subr.mxu0 0.0
  %3101 = vmatpush1.msra.mxu0 0.0
  %3102 = vmatprep.subr.mxu0 0.0
  %3103 = vmatpush1.msra.mxu0 0.0
  %3104 = vmatprep.subr.mxu0 0.0
  %3105 = vmatpush1.msra.mxu0 0.0
  %3106 = vmatprep.subr.mxu0 0.0
  %3107 = vmatpush1.msra.mxu0 0.0
  %3108 = vmatprep.subr.mxu0 0.0
  %3109 = vmatpush1.msra.mxu0 0.0
  %3110 = vmatprep.subr.mxu0 0.0
  %3111 = vmatpush1.msra.mxu0 0.0
  %3112 = vmatprep.subr.mxu0 0.0
  %3113 = vmatpush1.msra.mxu0 0.0
  %3114 = vmatprep.subr.mxu0 0.0
  %3115 = vmatpush1.msra.mxu0 0.0
  %3116 = vmatprep.subr.mxu0 0.0
  %3117 = vmatpush1.msra.mxu0 0.0
  %3118 = vmatprep.subr.mxu0 0.0
  %3119 = vmatpush1.msra.mxu0 0.0
  %3120 = vmatprep.subr.mxu0 0.0
  %3121 = vmatpush1.msra.mxu0 0.0
  %3122 = vmatprep.subr.mxu0 0.0
  %3123 = vmatpush1.msra.mxu0 0.0
  %3124 = vmatprep.subr.mxu0 0.0
  %3125 = vmatpush1.msra.mxu0 0.0
  %3126 = vmatprep.subr.mxu0 0.0
  %3127 = vmatpush1.msra.mxu0 0.0
  %3128 = vmatprep.subr.mxu0 0.0
  %3129 = vmatpush1.msra.mxu0 0.0
  %3130 = vmatprep.subr.mxu0 0.0
  %3131 = vmatpush1.msra.mxu0 0.0
  %3132 = vmatprep.subr.mxu0 0.0
  %3133 = vmatpush1.msra.mxu0 0.0
  %3134 = vmatprep.mubr.f32.mxu0 0.0
  %3135 = vmatmul.mubr.f32.gmra.mrb[0].mxu0 %v1998
  %v3136 = vpop.f32.mrb[0].mxu0
  %v3137 = vadd.f32 0.0, %v3136
  %v3138 = vpop.f32.mrb[0].mxu0
  %3139 = vmatprep.mubr.f32.mxu0 0.0
  %3140 = vmatmul.mubr.f32.gmra.mrb[0].mxu0 %v1998
  %v3141 = vpop.f32.mrb[0].mxu0
  %v3142 = vadd.f32 0.0, %v3141
  %v3143 = vpop.f32.mrb[0].mxu0
  %3144 = vdwg.mxu0
  %v3145 = vadd.f32 %v2926, %v3137
  %v3146 = vadd.f32 %v2931, %v3142
  %3147 = vmatprep.subr.mxu0 0.0
  %3148 = vmatpush1.msra.mxu0 %v3066
  %3149 = vmatprep.subr.mxu0 0.0
  %3150 = vmatpush1.msra.mxu0 %v3067
  %3151 = vmatprep.subr.mxu0 0.0
  %3152 = vmatpush1.msra.mxu0 %v3068
  %3153 = vmatprep.subr.mxu0 0.0
  %3154 = vmatpush1.msra.mxu0 %v3069
  %3155 = vmatprep.subr.mxu0 0.0
  %3156 = vmatpush1.msra.mxu0 0.0
  %3157 = vmatprep.subr.mxu0 0.0
  %3158 = vmatpush1.msra.mxu0 0.0
  %3159 = vmatprep.subr.mxu0 0.0
  %3160 = vmatpush1.msra.mxu0 0.0
  %3161 = vmatprep.subr.mxu0 0.0
  %3162 = vmatpush1.msra.mxu0 0.0
  %3163 = vmatprep.subr.mxu0 0.0
  %3164 = vmatpush1.msra.mxu0 0.0
  %3165 = vmatprep.subr.mxu0 0.0
  %3166 = vmatpush1.msra.mxu0 0.0
  %3167 = vmatprep.subr.mxu0 0.0
  %3168 = vmatpush1.msra.mxu0 0.0
  %3169 = vmatprep.subr.mxu0 0.0
  %3170 = vmatpush1.msra.mxu0 0.0
  %3171 = vmatprep.subr.mxu0 0.0
  %3172 = vmatpush1.msra.mxu0 0.0
  %3173 = vmatprep.subr.mxu0 0.0
  %3174 = vmatpush1.msra.mxu0 0.0
  %3175 = vmatprep.subr.mxu0 0.0
  %3176 = vmatpush1.msra.mxu0 0.0
  %3177 = vmatprep.subr.mxu0 0.0
  %3178 = vmatpush1.msra.mxu0 0.0
  %3179 = vmatprep.subr.mxu0 0.0
  %3180 = vmatpush1.msra.mxu0 0.0
  %3181 = vmatprep.subr.mxu0 0.0
  %3182 = vmatpush1.msra.mxu0 0.0
  %3183 = vmatprep.subr.mxu0 0.0
  %3184 = vmatpush1.msra.mxu0 0.0
  %3185 = vmatprep.subr.mxu0 0.0
  %3186 = vmatpush1.msra.mxu0 0.0
  %3187 = vmatprep.subr.mxu0 0.0
  %3188 = vmatpush1.msra.mxu0 0.0
  %3189 = vmatprep.subr.mxu0 0.0
  %3190 = vmatpush1.msra.mxu0 0.0
  %3191 = vmatprep.subr.mxu0 0.0
  %3192 = vmatpush1.msra.mxu0 0.0
  %3193 = vmatprep.subr.mxu0 0.0
  %3194 = vmatpush1.msra.mxu0 0.0
  %3195 = vmatprep.subr.mxu0 0.0
  %3196 = vmatpush1.msra.mxu0 0.0
  %3197 = vmatprep.subr.mxu0 0.0
  %3198 = vmatpush1.msra.mxu0 0.0
  %3199 = vmatprep.subr.mxu0 0.0
  %3200 = vmatpush1.msra.mxu0 0.0
  %3201 = vmatprep.subr.mxu0 0.0
  %3202 = vmatpush1.msra.mxu0 0.0
  %3203 = vmatprep.subr.mxu0 0.0
  %3204 = vmatpush1.msra.mxu0 0.0
  %3205 = vmatprep.subr.mxu0 0.0
  %3206 = vmatpush1.msra.mxu0 0.0
  %3207 = vmatprep.subr.mxu0 0.0
  %3208 = vmatpush1.msra.mxu0 0.0
  %3209 = vmatprep.subr.mxu0 0.0
  %3210 = vmatpush1.msra.mxu0 0.0
  %3211 = vmatprep.mubr.f32.mxu0 0.0
  %3212 = vmatmul.mubr.f32.gmra.mrb[0].mxu0 %v1998
  %v3213 = vpop.f32.mrb[0].mxu0
  %v3214 = vadd.f32 0.0, %v3213
  %v3215 = vpop.f32.mrb[0].mxu0
  %3216 = vmatprep.mubr.f32.mxu0 0.0
  %3217 = vmatmul.mubr.f32.gmra.mrb[0].mxu0 %v1998
  %v3218 = vpop.f32.mrb[0].mxu0
  %v3219 = vadd.f32 0.0, %v3218
  %v3220 = vpop.f32.mrb[0].mxu0
  %3221 = vdwg.mxu0
  %v3222 = vadd.f32 %v3054, %v3214
  %v3223 = vadd.f32 %v3059, %v3219
  %v3224 = vxor.u32 %v3145, 2147483648
  %v3225 = vxor.u32 %v3146, 2147483648
  %v3226 = vxor.u32 %v3222, 2147483648
  %v3227 = vxor.u32 %v3223, 2147483648
  %v3228 = vmul.f32 %v3224, 1.442695
  %v3229 = vpow.pop %v3228
  %v3230 = vmul.f32 %v3225, 1.442695
  %v3231 = vpow.pop %v3230
  %v3232 = vmul.f32 %v3226, 1.442695
  %v3233 = vpow.pop %v3232
  %v3234 = vmul.f32 %v3227, 1.442695
  %v3235 = vpow.pop %v3234
  %v3236 = vadd.f32 %v3229, 1.0
  %v3237 = vadd.f32 %v3231, 1.0
  %v3238 = vadd.f32 %v3233, 1.0
  %v3239 = vadd.f32 %v3235, 1.0
  %v3240 = vrcp.pop %v3236
  %v3241 = vmul.f32 1.0, %v3240
  %v3242 = vrcp.pop %v3237
  %v3243 = vmul.f32 1.0, %v3242
  %v3244 = vrcp.pop %v3238
  %v3245 = vmul.f32 1.0, %v3244
  %v3246 = vrcp.pop %v3239
  %v3247 = vmul.f32 1.0, %v3246
  %v3248 = vtanh.pop %v3145
  %v3249 = vtanh.pop %v3146
  %v3250 = vtanh.pop %v3222
  %v3251 = vtanh.pop %v3223
  %v3252 = vmul.f32 %v3241, 0.0
  %v3253 = vmul.f32 %v3243, 0.0
  %v3254 = vmul.f32 %v3245, 0.0
  %v3255 = vmul.f32 %v3247, 0.0
  %3260 = vrot.lane.b32.xlu0 %v3248, 32
  %v3261 = vpop.permute.xlu0 %3260
  %3262 = vrot.lane.b32.xlu0 %v3249, 32
  %v3263 = vpop.permute.xlu0 %3262
  %3264 = vrot.lane.b32.xlu0 %v3250, 32
  %v3265 = vpop.permute.xlu0 %3264
  %3266 = vrot.lane.b32.xlu0 %v3251, 32
  %v3267 = vpop.permute.xlu0 %3266
  %v3272 = vmul.f32 %v3241, %v3261
  %v3273 = vmul.f32 %v3243, %v3263
  %v3274 = vmul.f32 %v3245, %v3265
  %v3275 = vmul.f32 %v3247, %v3267
  %3280 = vrot.lane.b32.xlu0 %v3272, 32
  %v3281 = vpop.permute.xlu0 %3280
  %3282 = vrot.lane.b32.xlu0 %v3273, 32
  %v3283 = vpop.permute.xlu0 %3282
  %3284 = vrot.lane.b32.xlu0 %v3274, 32
  %v3285 = vpop.permute.xlu0 %3284
  %3286 = vrot.lane.b32.xlu0 %v3275, 32
  %v3287 = vpop.permute.xlu0 %3286
  %v3292 = vadd.f32 %v3252, %v3281
  %v3293 = vadd.f32 %v3253, %v3283
  %v3294 = vadd.f32 %v3254, %v3285
  %v3295 = vadd.f32 %v3255, %v3287
  %v3296 = vtanh.pop %v3292
  %v3297 = vtanh.pop %v3293
  %v3298 = vtanh.pop %v3294
  %v3299 = vtanh.pop %v3295
  %3304 = vrot.lane.b32.xlu0 %v3296, 32
  %v3305 = vpop.permute.xlu0 %3304
  %3306 = vrot.lane.b32.xlu0 %v3297, 32
  %v3307 = vpop.permute.xlu0 %3306
  %3308 = vrot.lane.b32.xlu0 %v3298, 32
  %v3309 = vpop.permute.xlu0 %3308
  %3310 = vrot.lane.b32.xlu0 %v3299, 32
  %v3311 = vpop.permute.xlu0 %3310
  %v3316 = vmul.f32 %v3241, %v3305
  %v3317 = vmul.f32 %v3243, %v3307
  %v3318 = vmul.f32 %v3245, %v3309
  %v3319 = vmul.f32 %v3247, %v3311
  %3322 = vrot.lane.b32.xlu0 %v3316, 64
  %v3323 = vpop.permute.xlu0 %3322
  %3324 = vrot.lane.b32.xlu0 %v3317, 64
  %v3325 = vpop.permute.xlu0 %3324
  %v3326 = vsel %vm902, %v3323, 0
  %v3328 = vsel %vm902, %v3325, 0
  %3330 = vmatprep.subr.mxu0 0.0
  %3331 = vmatpush1.msra.mxu0 %v3062
  %3332 = vmatprep.subr.mxu0 0.0
  %3333 = vmatpush1.msra.mxu0 %v3063
  %3334 = vmatprep.subr.mxu0 0.0
  %3335 = vmatpush1.msra.mxu0 %v3064
  %3336 = vmatprep.subr.mxu0 0.0
  %3337 = vmatpush1.msra.mxu0 %v3065
  %3338 = vmatprep.subr.mxu0 0.0
  %3339 = vmatpush1.msra.mxu0 0.0
  %3340 = vmatprep.subr.mxu0 0.0
  %3341 = vmatpush1.msra.mxu0 0.0
  %3342 = vmatprep.subr.mxu0 0.0
  %3343 = vmatpush1.msra.mxu0 0.0
  %3344 = vmatprep.subr.mxu0 0.0
  %3345 = vmatpush1.msra.mxu0 0.0
  %3346 = vmatprep.subr.mxu0 0.0
  %3347 = vmatpush1.msra.mxu0 0.0
  %3348 = vmatprep.subr.mxu0 0.0
  %3349 = vmatpush1.msra.mxu0 0.0
  %3350 = vmatprep.subr.mxu0 0.0
  %3351 = vmatpush1.msra.mxu0 0.0
  %3352 = vmatprep.subr.mxu0 0.0
  %3353 = vmatpush1.msra.mxu0 0.0
  %3354 = vmatprep.subr.mxu0 0.0
  %3355 = vmatpush1.msra.mxu0 0.0
  %3356 = vmatprep.subr.mxu0 0.0
  %3357 = vmatpush1.msra.mxu0 0.0
  %3358 = vmatprep.subr.mxu0 0.0
  %3359 = vmatpush1.msra.mxu0 0.0
  %3360 = vmatprep.subr.mxu0 0.0
  %3361 = vmatpush1.msra.mxu0 0.0
  %3362 = vmatprep.subr.mxu0 0.0
  %3363 = vmatpush1.msra.mxu0 0.0
  %3364 = vmatprep.subr.mxu0 0.0
  %3365 = vmatpush1.msra.mxu0 0.0
  %3366 = vmatprep.subr.mxu0 0.0
  %3367 = vmatpush1.msra.mxu0 0.0
  %3368 = vmatprep.subr.mxu0 0.0
  %3369 = vmatpush1.msra.mxu0 0.0
  %3370 = vmatprep.subr.mxu0 0.0
  %3371 = vmatpush1.msra.mxu0 0.0
  %3372 = vmatprep.subr.mxu0 0.0
  %3373 = vmatpush1.msra.mxu0 0.0
  %3374 = vmatprep.subr.mxu0 0.0
  %3375 = vmatpush1.msra.mxu0 0.0
  %3376 = vmatprep.subr.mxu0 0.0
  %3377 = vmatpush1.msra.mxu0 0.0
  %3378 = vmatprep.subr.mxu0 0.0
  %3379 = vmatpush1.msra.mxu0 0.0
  %3380 = vmatprep.subr.mxu0 0.0
  %3381 = vmatpush1.msra.mxu0 0.0
  %3382 = vmatprep.subr.mxu0 0.0
  %3383 = vmatpush1.msra.mxu0 0.0
  %3384 = vmatprep.subr.mxu0 0.0
  %3385 = vmatpush1.msra.mxu0 0.0
  %3386 = vmatprep.subr.mxu0 0.0
  %3387 = vmatpush1.msra.mxu0 0.0
  %3388 = vmatprep.subr.mxu0 0.0
  %3389 = vmatpush1.msra.mxu0 0.0
  %3390 = vmatprep.subr.mxu0 0.0
  %3391 = vmatpush1.msra.mxu0 0.0
  %3392 = vmatprep.subr.mxu0 0.0
  %3393 = vmatpush1.msra.mxu0 0.0
  %3394 = vmatprep.mubr.f32.mxu0 0.0
  %3395 = vmatmul.mubr.f32.gmra.mrb[0].mxu0 %v3326
  %v3396 = vpop.f32.mrb[0].mxu0
  %v3397 = vadd.f32 0.0, %v3396
  %v3398 = vpop.f32.mrb[0].mxu0
  %3399 = vmatprep.mubr.f32.mxu0 0.0
  %3400 = vmatmul.mubr.f32.gmra.mrb[0].mxu0 %v3328
  %v3401 = vpop.f32.mrb[0].mxu0
  %v3402 = vadd.f32 0.0, %v3401
  %v3403 = vpop.f32.mrb[0].mxu0
  %3404 = vdwg.mxu0
  %v3405 = vadd.f32 %v2936, %v3397
  %v3406 = vadd.f32 %v2941, %v3402
  %3409 = vrot.lane.b32.xlu0 %v3318, 64
  %v3410 = vpop.permute.xlu0 %3409
  %3411 = vrot.lane.b32.xlu0 %v3319, 64
  %v3412 = vpop.permute.xlu0 %3411
  %v3413 = vsel %vm902, %v3410, 0
  %v3415 = vsel %vm902, %v3412, 0
  %3417 = vmatprep.subr.mxu0 0.0
  %3418 = vmatpush1.msra.mxu0 %v3066
  %3419 = vmatprep.subr.mxu0 0.0
  %3420 = vmatpush1.msra.mxu0 %v3067
  %3421 = vmatprep.subr.mxu0 0.0
  %3422 = vmatpush1.msra.mxu0 %v3068
  %3423 = vmatprep.subr.mxu0 0.0
  %3424 = vmatpush1.msra.mxu0 %v3069
  %3425 = vmatprep.subr.mxu0 0.0
  %3426 = vmatpush1.msra.mxu0 0.0
  %3427 = vmatprep.subr.mxu0 0.0
  %3428 = vmatpush1.msra.mxu0 0.0
  %3429 = vmatprep.subr.mxu0 0.0
  %3430 = vmatpush1.msra.mxu0 0.0
  %3431 = vmatprep.subr.mxu0 0.0
  %3432 = vmatpush1.msra.mxu0 0.0
  %3433 = vmatprep.subr.mxu0 0.0
  %3434 = vmatpush1.msra.mxu0 0.0
  %3435 = vmatprep.subr.mxu0 0.0
  %3436 = vmatpush1.msra.mxu0 0.0
  %3437 = vmatprep.subr.mxu0 0.0
  %3438 = vmatpush1.msra.mxu0 0.0
  %3439 = vmatprep.subr.mxu0 0.0
  %3440 = vmatpush1.msra.mxu0 0.0
  %3441 = vmatprep.subr.mxu0 0.0
  %3442 = vmatpush1.msra.mxu0 0.0
  %3443 = vmatprep.subr.mxu0 0.0
  %3444 = vmatpush1.msra.mxu0 0.0
  %3445 = vmatprep.subr.mxu0 0.0
  %3446 = vmatpush1.msra.mxu0 0.0
  %3447 = vmatprep.subr.mxu0 0.0
  %3448 = vmatpush1.msra.mxu0 0.0
  %3449 = vmatprep.subr.mxu0 0.0
  %3450 = vmatpush1.msra.mxu0 0.0
  %3451 = vmatprep.subr.mxu0 0.0
  %3452 = vmatpush1.msra.mxu0 0.0
  %3453 = vmatprep.subr.mxu0 0.0
  %3454 = vmatpush1.msra.mxu0 0.0
  %3455 = vmatprep.subr.mxu0 0.0
  %3456 = vmatpush1.msra.mxu0 0.0
  %3457 = vmatprep.subr.mxu0 0.0
  %3458 = vmatpush1.msra.mxu0 0.0
  %3459 = vmatprep.subr.mxu0 0.0
  %3460 = vmatpush1.msra.mxu0 0.0
  %3461 = vmatprep.subr.mxu0 0.0
  %3462 = vmatpush1.msra.mxu0 0.0
  %3463 = vmatprep.subr.mxu0 0.0
  %3464 = vmatpush1.msra.mxu0 0.0
  %3465 = vmatprep.subr.mxu0 0.0
  %3466 = vmatpush1.msra.mxu0 0.0
  %3467 = vmatprep.subr.mxu0 0.0
  %3468 = vmatpush1.msra.mxu0 0.0
  %3469 = vmatprep.subr.mxu0 0.0
  %3470 = vmatpush1.msra.mxu0 0.0
  %3471 = vmatprep.subr.mxu0 0.0
  %3472 = vmatpush1.msra.mxu0 0.0
  %3473 = vmatprep.subr.mxu0 0.0
  %3474 = vmatpush1.msra.mxu0 0.0
  %3475 = vmatprep.subr.mxu0 0.0
  %3476 = vmatpush1.msra.mxu0 0.0
  %3477 = vmatprep.subr.mxu0 0.0
  %3478 = vmatpush1.msra.mxu0 0.0
  %3479 = vmatprep.subr.mxu0 0.0
  %3480 = vmatpush1.msra.mxu0 0.0
  %3481 = vmatprep.mubr.f32.mxu0 0.0
  %3482 = vmatmul.mubr.f32.gmra.mrb[0].mxu0 %v3413
  %v3483 = vpop.f32.mrb[0].mxu0
  %v3484 = vadd.f32 0.0, %v3483
  %v3485 = vpop.f32.mrb[0].mxu0
  %3486 = vmatprep.mubr.f32.mxu0 0.0
  %3487 = vmatmul.mubr.f32.gmra.mrb[0].mxu0 %v3415
  %v3488 = vpop.f32.mrb[0].mxu0
  %v3489 = vadd.f32 0.0, %v3488
  %v3490 = vpop.f32.mrb[0].mxu0
  %3491 = vdwg.mxu0
  %v3492 = vadd.f32 %v3044, %v3484
  %v3493 = vadd.f32 %v3049, %v3489
  %v3494 = vxor.u32 %v3405, 2147483648
  %v3495 = vxor.u32 %v3406, 2147483648
  %v3496 = vxor.u32 %v3492, 2147483648
  %v3497 = vxor.u32 %v3493, 2147483648
  %v3498 = vmul.f32 %v3494, 1.442695
  %v3499 = vpow.pop %v3498
  %v3500 = vmul.f32 %v3495, 1.442695
  %v3501 = vpow.pop %v3500
  %v3502 = vmul.f32 %v3496, 1.442695
  %v3503 = vpow.pop %v3502
  %v3504 = vmul.f32 %v3497, 1.442695
  %v3505 = vpow.pop %v3504
  %v3506 = vadd.f32 %v3499, 1.0
  %v3507 = vadd.f32 %v3501, 1.0
  %v3508 = vadd.f32 %v3503, 1.0
  %v3509 = vadd.f32 %v3505, 1.0
  %v3510 = vrcp.pop %v3506
  %v3511 = vmul.f32 1.0, %v3510
  %v3512 = vrcp.pop %v3507
  %v3513 = vmul.f32 1.0, %v3512
  %v3514 = vrcp.pop %v3508
  %v3515 = vmul.f32 1.0, %v3514
  %v3516 = vrcp.pop %v3509
  %v3517 = vmul.f32 1.0, %v3516
  %v3518 = vtanh.pop %v3405
  %v3519 = vtanh.pop %v3406
  %v3520 = vtanh.pop %v3492
  %v3521 = vtanh.pop %v3493
  %v3522 = vmul.f32 %v3511, %v3292
  %v3523 = vmul.f32 %v3513, %v3293
  %v3524 = vmul.f32 %v3515, %v3294
  %v3525 = vmul.f32 %v3517, %v3295
  %3530 = vrot.lane.b32.xlu0 %v3518, 32
  %v3531 = vpop.permute.xlu0 %3530
  %3532 = vrot.lane.b32.xlu0 %v3519, 32
  %v3533 = vpop.permute.xlu0 %3532
  %3534 = vrot.lane.b32.xlu0 %v3520, 32
  %v3535 = vpop.permute.xlu0 %3534
  %3536 = vrot.lane.b32.xlu0 %v3521, 32
  %v3537 = vpop.permute.xlu0 %3536
  %v3542 = vmul.f32 %v3511, %v3531
  %v3543 = vmul.f32 %v3513, %v3533
  %v3544 = vmul.f32 %v3515, %v3535
  %v3545 = vmul.f32 %v3517, %v3537
  %3550 = vrot.lane.b32.xlu0 %v3542, 32
  %v3551 = vpop.permute.xlu0 %3550
  %3552 = vrot.lane.b32.xlu0 %v3543, 32
  %v3553 = vpop.permute.xlu0 %3552
  %3554 = vrot.lane.b32.xlu0 %v3544, 32
  %v3555 = vpop.permute.xlu0 %3554
  %3556 = vrot.lane.b32.xlu0 %v3545, 32
  %v3557 = vpop.permute.xlu0 %3556
  %v3562 = vadd.f32 %v3522, %v3551
  %v3563 = vadd.f32 %v3523, %v3553
  %v3564 = vadd.f32 %v3524, %v3555
  %v3565 = vadd.f32 %v3525, %v3557
  %v3566 = vtanh.pop %v3562
  %v3567 = vtanh.pop %v3563
  %v3568 = vtanh.pop %v3564
  %v3569 = vtanh.pop %v3565
  %3574 = vrot.lane.b32.xlu0 %v3566, 32
  %v3575 = vpop.permute.xlu0 %3574
  %3576 = vrot.lane.b32.xlu0 %v3567, 32
  %v3577 = vpop.permute.xlu0 %3576
  %3578 = vrot.lane.b32.xlu0 %v3568, 32
  %v3579 = vpop.permute.xlu0 %3578
  %3580 = vrot.lane.b32.xlu0 %v3569, 32
  %v3581 = vpop.permute.xlu0 %3580
  %v3586 = vmul.f32 %v3511, %v3575
  %v3587 = vmul.f32 %v3513, %v3577
  %v3588 = vmul.f32 %v3515, %v3579
  %v3589 = vmul.f32 %v3517, %v3581
  %3592 = vrot.lane.b32.xlu0 %v3586, 64
  %v3593 = vpop.permute.xlu0 %3592
  %3594 = vrot.lane.b32.xlu0 %v3587, 64
  %v3595 = vpop.permute.xlu0 %3594
  %v3596 = vsel %vm902, %v3593, 0
  %v3598 = vsel %vm902, %v3595, 0
  %3600 = vmatprep.subr.mxu0 0.0
  %3601 = vmatpush1.msra.mxu0 %v3062
  %3602 = vmatprep.subr.mxu0 0.0
  %3603 = vmatpush1.msra.mxu0 %v3063
  %3604 = vmatprep.subr.mxu0 0.0
  %3605 = vmatpush1.msra.mxu0 %v3064
  %3606 = vmatprep.subr.mxu0 0.0
  %3607 = vmatpush1.msra.mxu0 %v3065
  %3608 = vmatprep.subr.mxu0 0.0
  %3609 = vmatpush1.msra.mxu0 0.0
  %3610 = vmatprep.subr.mxu0 0.0
  %3611 = vmatpush1.msra.mxu0 0.0
  %3612 = vmatprep.subr.mxu0 0.0
  %3613 = vmatpush1.msra.mxu0 0.0
  %3614 = vmatprep.subr.mxu0 0.0
  %3615 = vmatpush1.msra.mxu0 0.0
  %3616 = vmatprep.subr.mxu0 0.0
  %3617 = vmatpush1.msra.mxu0 0.0
  %3618 = vmatprep.subr.mxu0 0.0
  %3619 = vmatpush1.msra.mxu0 0.0
  %3620 = vmatprep.subr.mxu0 0.0
  %3621 = vmatpush1.msra.mxu0 0.0
  %3622 = vmatprep.subr.mxu0 0.0
  %3623 = vmatpush1.msra.mxu0 0.0
  %3624 = vmatprep.subr.mxu0 0.0
  %3625 = vmatpush1.msra.mxu0 0.0
  %3626 = vmatprep.subr.mxu0 0.0
  %3627 = vmatpush1.msra.mxu0 0.0
  %3628 = vmatprep.subr.mxu0 0.0
  %3629 = vmatpush1.msra.mxu0 0.0
  %3630 = vmatprep.subr.mxu0 0.0
  %3631 = vmatpush1.msra.mxu0 0.0
  %3632 = vmatprep.subr.mxu0 0.0
  %3633 = vmatpush1.msra.mxu0 0.0
  %3634 = vmatprep.subr.mxu0 0.0
  %3635 = vmatpush1.msra.mxu0 0.0
  %3636 = vmatprep.subr.mxu0 0.0
  %3637 = vmatpush1.msra.mxu0 0.0
  %3638 = vmatprep.subr.mxu0 0.0
  %3639 = vmatpush1.msra.mxu0 0.0
  %3640 = vmatprep.subr.mxu0 0.0
  %3641 = vmatpush1.msra.mxu0 0.0
  %3642 = vmatprep.subr.mxu0 0.0
  %3643 = vmatpush1.msra.mxu0 0.0
  %3644 = vmatprep.subr.mxu0 0.0
  %3645 = vmatpush1.msra.mxu0 0.0
  %3646 = vmatprep.subr.mxu0 0.0
  %3647 = vmatpush1.msra.mxu0 0.0
  %3648 = vmatprep.subr.mxu0 0.0
  %3649 = vmatpush1.msra.mxu0 0.0
  %3650 = vmatprep.subr.mxu0 0.0
  %3651 = vmatpush1.msra.mxu0 0.0
  %3652 = vmatprep.subr.mxu0 0.0
  %3653 = vmatpush1.msra.mxu0 0.0
  %3654 = vmatprep.subr.mxu0 0.0
  %3655 = vmatpush1.msra.mxu0 0.0
  %3656 = vmatprep.subr.mxu0 0.0
  %3657 = vmatpush1.msra.mxu0 0.0
  %3658 = vmatprep.subr.mxu0 0.0
  %3659 = vmatpush1.msra.mxu0 0.0
  %3660 = vmatprep.subr.mxu0 0.0
  %3661 = vmatpush1.msra.mxu0 0.0
  %3662 = vmatprep.subr.mxu0 0.0
  %3663 = vmatpush1.msra.mxu0 0.0
  %3664 = vmatprep.mubr.f32.mxu0 0.0
  %3665 = vmatmul.mubr.f32.gmra.mrb[0].mxu0 %v3596
  %v3666 = vpop.f32.mrb[0].mxu0
  %v3667 = vadd.f32 0.0, %v3666
  %v3668 = vpop.f32.mrb[0].mxu0
  %3669 = vmatprep.mubr.f32.mxu0 0.0
  %3670 = vmatmul.mubr.f32.gmra.mrb[0].mxu0 %v3598
  %v3671 = vpop.f32.mrb[0].mxu0
  %v3672 = vadd.f32 0.0, %v3671
  %v3673 = vpop.f32.mrb[0].mxu0
  %3674 = vdwg.mxu0
  %v3675 = vadd.f32 %v2946, %v3667
  %v3676 = vadd.f32 %v2951, %v3672
  %3679 = vrot.lane.b32.xlu0 %v3588, 64
  %v3680 = vpop.permute.xlu0 %3679
  %3681 = vrot.lane.b32.xlu0 %v3589, 64
  %v3682 = vpop.permute.xlu0 %3681
  %v3683 = vsel %vm902, %v3680, 0
  %v3685 = vsel %vm902, %v3682, 0
  %3687 = vmatprep.subr.mxu0 0.0
  %3688 = vmatpush1.msra.mxu0 %v3066
  %3689 = vmatprep.subr.mxu0 0.0
  %3690 = vmatpush1.msra.mxu0 %v3067
  %3691 = vmatprep.subr.mxu0 0.0
  %3692 = vmatpush1.msra.mxu0 %v3068
  %3693 = vmatprep.subr.mxu0 0.0
  %3694 = vmatpush1.msra.mxu0 %v3069
  %3695 = vmatprep.subr.mxu0 0.0
  %3696 = vmatpush1.msra.mxu0 0.0
  %3697 = vmatprep.subr.mxu0 0.0
  %3698 = vmatpush1.msra.mxu0 0.0
  %3699 = vmatprep.subr.mxu0 0.0
  %3700 = vmatpush1.msra.mxu0 0.0
  %3701 = vmatprep.subr.mxu0 0.0
  %3702 = vmatpush1.msra.mxu0 0.0
  %3703 = vmatprep.subr.mxu0 0.0
  %3704 = vmatpush1.msra.mxu0 0.0
  %3705 = vmatprep.subr.mxu0 0.0
  %3706 = vmatpush1.msra.mxu0 0.0
  %3707 = vmatprep.subr.mxu0 0.0
  %3708 = vmatpush1.msra.mxu0 0.0
  %3709 = vmatprep.subr.mxu0 0.0
  %3710 = vmatpush1.msra.mxu0 0.0
  %3711 = vmatprep.subr.mxu0 0.0
  %3712 = vmatpush1.msra.mxu0 0.0
  %3713 = vmatprep.subr.mxu0 0.0
  %3714 = vmatpush1.msra.mxu0 0.0
  %3715 = vmatprep.subr.mxu0 0.0
  %3716 = vmatpush1.msra.mxu0 0.0
  %3717 = vmatprep.subr.mxu0 0.0
  %3718 = vmatpush1.msra.mxu0 0.0
  %3719 = vmatprep.subr.mxu0 0.0
  %3720 = vmatpush1.msra.mxu0 0.0
  %3721 = vmatprep.subr.mxu0 0.0
  %3722 = vmatpush1.msra.mxu0 0.0
  %3723 = vmatprep.subr.mxu0 0.0
  %3724 = vmatpush1.msra.mxu0 0.0
  %3725 = vmatprep.subr.mxu0 0.0
  %3726 = vmatpush1.msra.mxu0 0.0
  %3727 = vmatprep.subr.mxu0 0.0
  %3728 = vmatpush1.msra.mxu0 0.0
  %3729 = vmatprep.subr.mxu0 0.0
  %3730 = vmatpush1.msra.mxu0 0.0
  %3731 = vmatprep.subr.mxu0 0.0
  %3732 = vmatpush1.msra.mxu0 0.0
  %3733 = vmatprep.subr.mxu0 0.0
  %3734 = vmatpush1.msra.mxu0 0.0
  %3735 = vmatprep.subr.mxu0 0.0
  %3736 = vmatpush1.msra.mxu0 0.0
  %3737 = vmatprep.subr.mxu0 0.0
  %3738 = vmatpush1.msra.mxu0 0.0
  %3739 = vmatprep.subr.mxu0 0.0
  %3740 = vmatpush1.msra.mxu0 0.0
  %3741 = vmatprep.subr.mxu0 0.0
  %3742 = vmatpush1.msra.mxu0 0.0
  %3743 = vmatprep.subr.mxu0 0.0
  %3744 = vmatpush1.msra.mxu0 0.0
  %3745 = vmatprep.subr.mxu0 0.0
  %3746 = vmatpush1.msra.mxu0 0.0
  %3747 = vmatprep.subr.mxu0 0.0
  %3748 = vmatpush1.msra.mxu0 0.0
  %3749 = vmatprep.subr.mxu0 0.0
  %3750 = vmatpush1.msra.mxu0 0.0
  %3751 = vmatprep.mubr.f32.mxu0 0.0
  %3752 = vmatmul.mubr.f32.gmra.mrb[0].mxu0 %v3683
  %v3753 = vpop.f32.mrb[0].mxu0
  %v3754 = vadd.f32 0.0, %v3753
  %v3755 = vpop.f32.mrb[0].mxu0
  %3756 = vmatprep.mubr.f32.mxu0 0.0
  %3757 = vmatmul.mubr.f32.gmra.mrb[0].mxu0 %v3685
  %v3758 = vpop.f32.mrb[0].mxu0
  %v3759 = vadd.f32 0.0, %v3758
  %v3760 = vpop.f32.mrb[0].mxu0
  %3761 = vdwg.mxu0
  %v3762 = vadd.f32 %v3034, %v3754
  %v3763 = vadd.f32 %v3039, %v3759
  %v3764 = vxor.u32 %v3675, 2147483648
  %v3765 = vxor.u32 %v3676, 2147483648
  %v3766 = vxor.u32 %v3762, 2147483648
  %v3767 = vxor.u32 %v3763, 2147483648
  %v3768 = vmul.f32 %v3764, 1.442695
  %v3769 = vpow.pop %v3768
  %v3770 = vmul.f32 %v3765, 1.442695
  %v3771 = vpow.pop %v3770
  %v3772 = vmul.f32 %v3766, 1.442695
  %v3773 = vpow.pop %v3772
  %v3774 = vmul.f32 %v3767, 1.442695
  %v3775 = vpow.pop %v3774
  %v3776 = vadd.f32 %v3769, 1.0
  %v3777 = vadd.f32 %v3771, 1.0
  %v3778 = vadd.f32 %v3773, 1.0
  %v3779 = vadd.f32 %v3775, 1.0
  %v3780 = vrcp.pop %v3776
  %v3781 = vmul.f32 1.0, %v3780
  %v3782 = vrcp.pop %v3777
  %v3783 = vmul.f32 1.0, %v3782
  %v3784 = vrcp.pop %v3778
  %v3785 = vmul.f32 1.0, %v3784
  %v3786 = vrcp.pop %v3779
  %v3787 = vmul.f32 1.0, %v3786
  %v3788 = vtanh.pop %v3675
  %v3789 = vtanh.pop %v3676
  %v3790 = vtanh.pop %v3762
  %v3791 = vtanh.pop %v3763
  %v3792 = vmul.f32 %v3781, %v3562
  %v3793 = vmul.f32 %v3783, %v3563
  %v3794 = vmul.f32 %v3785, %v3564
  %v3795 = vmul.f32 %v3787, %v3565
  %3800 = vrot.lane.b32.xlu0 %v3788, 32
  %v3801 = vpop.permute.xlu0 %3800
  %3802 = vrot.lane.b32.xlu0 %v3789, 32
  %v3803 = vpop.permute.xlu0 %3802
  %3804 = vrot.lane.b32.xlu0 %v3790, 32
  %v3805 = vpop.permute.xlu0 %3804
  %3806 = vrot.lane.b32.xlu0 %v3791, 32
  %v3807 = vpop.permute.xlu0 %3806
  %v3812 = vmul.f32 %v3781, %v3801
  %v3813 = vmul.f32 %v3783, %v3803
  %v3814 = vmul.f32 %v3785, %v3805
  %v3815 = vmul.f32 %v3787, %v3807
  %3820 = vrot.lane.b32.xlu0 %v3812, 32
  %v3821 = vpop.permute.xlu0 %3820
  %3822 = vrot.lane.b32.xlu0 %v3813, 32
  %v3823 = vpop.permute.xlu0 %3822
  %3824 = vrot.lane.b32.xlu0 %v3814, 32
  %v3825 = vpop.permute.xlu0 %3824
  %3826 = vrot.lane.b32.xlu0 %v3815, 32
  %v3827 = vpop.permute.xlu0 %3826
  %v3832 = vadd.f32 %v3792, %v3821
  %v3833 = vadd.f32 %v3793, %v3823
  %v3834 = vadd.f32 %v3794, %v3825
  %v3835 = vadd.f32 %v3795, %v3827
  %v3836 = vtanh.pop %v3832
  %v3837 = vtanh.pop %v3833
  %v3838 = vtanh.pop %v3834
  %v3839 = vtanh.pop %v3835
  %3844 = vrot.lane.b32.xlu0 %v3836, 32
  %v3845 = vpop.permute.xlu0 %3844
  %3846 = vrot.lane.b32.xlu0 %v3837, 32
  %v3847 = vpop.permute.xlu0 %3846
  %3848 = vrot.lane.b32.xlu0 %v3838, 32
  %v3849 = vpop.permute.xlu0 %3848
  %3850 = vrot.lane.b32.xlu0 %v3839, 32
  %v3851 = vpop.permute.xlu0 %3850
  %v3856 = vmul.f32 %v3781, %v3845
  %v3857 = vmul.f32 %v3783, %v3847
  %v3858 = vmul.f32 %v3785, %v3849
  %v3859 = vmul.f32 %v3787, %v3851
  %3862 = vrot.lane.b32.xlu0 %v3856, 64
  %v3863 = vpop.permute.xlu0 %3862
  %3864 = vrot.lane.b32.xlu0 %v3857, 64
  %v3865 = vpop.permute.xlu0 %3864
  %3874 = vrot.lane.b32.xlu0 %v3858, 96
  %v3875 = vpop.permute.xlu0 %3874
  %3876 = vrot.lane.b32.xlu0 %v3859, 96
  %v3877 = vpop.permute.xlu0 %3876
  %3878 = vrot.lane.b32.xlu0 %v3588, 96
  %v3879 = vpop.permute.xlu0 %3878
  %3880 = vrot.lane.b32.xlu0 %v3589, 96
  %v3881 = vpop.permute.xlu0 %3880
  %3882 = vrot.lane.b32.xlu0 %v3318, 96
  %v3883 = vpop.permute.xlu0 %3882
  %3884 = vrot.lane.b32.xlu0 %v3319, 96
  %v3885 = vpop.permute.xlu0 %3884
  %v3892 = vsel %vm902, %v3323, %v3875
  %v3893 = vsel %vm902, %v3325, %v3877
  %v3894 = vsel %vm902, %v3593, %v3879
  %v3895 = vsel %vm902, %v3595, %v3881
  %v3896 = vsel %vm902, %v3863, %v3883
  %v3897 = vsel %vm902, %v3865, %v3885
  %v3898 = vld [vmem:[%s1 + $0x308] sm:$0xff]
  %v3899 = vld [vmem:[%s1 + $0x310] sm:$0xff]
  %v3900 = vld [vmem:[%s1 + $0x318] sm:$0xff]
  %v3901 = vld [vmem:[%s1 + $0x320] sm:$0xff]
  %v3902 = vld [vmem:[%s1 + $0x328] sm:$0xff]
  %v3903 = vld [vmem:[%s1 + $0x330] sm:$0xff]
  %v3904 = vld [vmem:[%s1 + $0x338] sm:$0xff]
  %v3905 = vld [vmem:[%s1 + $0x340] sm:$0xff]
  %v3906 = vld [vmem:[%s1 + $0x368] sm:$0x1]
  %v3907 = vlaneseq
  %v3908 = vshrl.u32 %v3907, 7
  %v3909 = vsub.s32 0, %v3908
  %v3910 = vrot.slane %v3906, %v3909
  %v3912 = vsel %vm922, %v3892, 0
  %v3915 = vsel %vm922, %v3893, 0
  %v3918 = vsel %vm922, %v3894, 0
  %v3921 = vsel %vm922, %v3895, 0
  %v3924 = vsel %vm922, %v3896, 0
  %v3927 = vsel %vm922, %v3897, 0
  %3929 = vmatprep.subr.mxu0 0.0
  %3930 = vmatpush1.msra.mxu0 %v3898
  %3931 = vmatprep.subr.mxu0 0.0
  %3932 = vmatpush1.msra.mxu0 %v3899
  %3933 = vmatprep.subr.mxu0 0.0
  %3934 = vmatpush1.msra.mxu0 %v3900
  %3935 = vmatprep.subr.mxu0 0.0
  %3936 = vmatpush1.msra.mxu0 %v3901
  %3937 = vmatprep.subr.mxu0 0.0
  %3938 = vmatpush1.msra.mxu0 %v3902
  %3939 = vmatprep.subr.mxu0 0.0
  %3940 = vmatpush1.msra.mxu0 %v3903
  %3941 = vmatprep.subr.mxu0 0.0
  %3942 = vmatpush1.msra.mxu0 %v3904
  %3943 = vmatprep.subr.mxu0 0.0
  %3944 = vmatpush1.msra.mxu0 %v3905
  %3945 = vmatprep.subr.mxu0 0.0
  %3946 = vmatpush1.msra.mxu0 0.0
  %3947 = vmatprep.subr.mxu0 0.0
  %3948 = vmatpush1.msra.mxu0 0.0
  %3949 = vmatprep.subr.mxu0 0.0
  %3950 = vmatpush1.msra.mxu0 0.0
  %3951 = vmatprep.subr.mxu0 0.0
  %3952 = vmatpush1.msra.mxu0 0.0
  %3953 = vmatprep.subr.mxu0 0.0
  %3954 = vmatpush1.msra.mxu0 0.0
  %3955 = vmatprep.subr.mxu0 0.0
  %3956 = vmatpush1.msra.mxu0 0.0
  %3957 = vmatprep.subr.mxu0 0.0
  %3958 = vmatpush1.msra.mxu0 0.0
  %3959 = vmatprep.subr.mxu0 0.0
  %3960 = vmatpush1.msra.mxu0 0.0
  %3961 = vmatprep.subr.mxu0 0.0
  %3962 = vmatpush1.msra.mxu0 0.0
  %3963 = vmatprep.subr.mxu0 0.0
  %3964 = vmatpush1.msra.mxu0 0.0
  %3965 = vmatprep.subr.mxu0 0.0
  %3966 = vmatpush1.msra.mxu0 0.0
  %3967 = vmatprep.subr.mxu0 0.0
  %3968 = vmatpush1.msra.mxu0 0.0
  %3969 = vmatprep.subr.mxu0 0.0
  %3970 = vmatpush1.msra.mxu0 0.0
  %3971 = vmatprep.subr.mxu0 0.0
  %3972 = vmatpush1.msra.mxu0 0.0
  %3973 = vmatprep.subr.mxu0 0.0
  %3974 = vmatpush1.msra.mxu0 0.0
  %3975 = vmatprep.subr.mxu0 0.0
  %3976 = vmatpush1.msra.mxu0 0.0
  %3977 = vmatprep.subr.mxu0 0.0
  %3978 = vmatpush1.msra.mxu0 0.0
  %3979 = vmatprep.subr.mxu0 0.0
  %3980 = vmatpush1.msra.mxu0 0.0
  %3981 = vmatprep.subr.mxu0 0.0
  %3982 = vmatpush1.msra.mxu0 0.0
  %3983 = vmatprep.subr.mxu0 0.0
  %3984 = vmatpush1.msra.mxu0 0.0
  %3985 = vmatprep.subr.mxu0 0.0
  %3986 = vmatpush1.msra.mxu0 0.0
  %3987 = vmatprep.subr.mxu0 0.0
  %3988 = vmatpush1.msra.mxu0 0.0
  %3989 = vmatprep.subr.mxu0 0.0
  %3990 = vmatpush1.msra.mxu0 0.0
  %3991 = vmatprep.subr.mxu0 0.0
  %3992 = vmatpush1.msra.mxu0 0.0
  %3993 = vmatprep.mubr.f32.mxu0 0.0
  %3994 = vmatmul.mubr.f32.gmra.mrb[0].mxu0 %v3912
  %v3995 = vpop.f32.mrb[0].mxu0
  %v3996 = vadd.f32 %v3910, %v3995
  %v3997 = vpop.f32.mrb[0].mxu0
  %3998 = vmatprep.mubr.f32.mxu0 0.0
  %3999 = vmatmul.mubr.f32.gmra.mrb[0].mxu0 %v3915
  %v4000 = vpop.f32.mrb[0].mxu0
  %v4001 = vadd.f32 %v3910, %v4000
  %v4002 = vpop.f32.mrb[0].mxu0
  %4003 = vmatprep.mubr.f32.mxu0 0.0
  %4004 = vmatmul.mubr.f32.gmra.mrb[0].mxu0 %v3918
  %v4005 = vpop.f32.mrb[0].mxu0
  %v4006 = vadd.f32 %v3910, %v4005
  %v4007 = vpop.f32.mrb[0].mxu0
  %4008 = vmatprep.mubr.f32.mxu0 0.0
  %4009 = vmatmul.mubr.f32.gmra.mrb[0].mxu0 %v3921
  %v4010 = vpop.f32.mrb[0].mxu0
  %v4011 = vadd.f32 %v3910, %v4010
  %v4012 = vpop.f32.mrb[0].mxu0
  %4013 = vmatprep.mubr.f32.mxu0 0.0
  %4014 = vmatmul.mubr.f32.gmra.mrb[0].mxu0 %v3924
  %v4015 = vpop.f32.mrb[0].mxu0
  %v4016 = vadd.f32 %v3910, %v4015
  %v4017 = vpop.f32.mrb[0].mxu0
  %4018 = vmatprep.mubr.f32.mxu0 0.0
  %4019 = vmatmul.mubr.f32.gmra.mrb[0].mxu0 %v3927
  %v4020 = vpop.f32.mrb[0].mxu0
  %v4021 = vadd.f32 %v3910, %v4020
  %v4022 = vpop.f32.mrb[0].mxu0
  %4023 = vdwg.mxu0
  %v4024 = vld [vmem:[%s1 + $0x370] sm:$0xff]
  %v4025 = vld [vmem:[%s1 + $0x378] sm:$0xff]
  %v4026 = vld [vmem:[%s1 + $0x380] sm:$0xff]
  %v4027 = vld [vmem:[%s1 + $0x388] sm:$0xff]
  %v4028 = vld [vmem:[%s1 + $0x390] sm:$0xff]
  %v4029 = vld [vmem:[%s1 + $0x398] sm:$0xff]
  %v4030 = vld [vmem:[%s1 + $0x3a0] sm:$0xff]
  %v4031 = vld [vmem:[%s1 + $0x3a8] sm:$0xff]
  %v4032 = vld [vmem:[%s1 + $0x3d0] sm:$0x1]
  %v4033 = vlaneseq
  %v4034 = vshrl.u32 %v4033, 7
  %v4035 = vsub.s32 0, %v4034
  %v4036 = vrot.slane %v4032, %v4035
  %4037 = vmatprep.subr.mxu0 0.0
  %4038 = vmatpush1.msra.mxu0 %v4024
  %4039 = vmatprep.subr.mxu0 0.0
  %4040 = vmatpush1.msra.mxu0 %v4025
  %4041 = vmatprep.subr.mxu0 0.0
  %4042 = vmatpush1.msra.mxu0 %v4026
  %4043 = vmatprep.subr.mxu0 0.0
  %4044 = vmatpush1.msra.mxu0 %v4027
  %4045 = vmatprep.subr.mxu0 0.0
  %4046 = vmatpush1.msra.mxu0 %v4028
  %4047 = vmatprep.subr.mxu0 0.0
  %4048 = vmatpush1.msra.mxu0 %v4029
  %4049 = vmatprep.subr.mxu0 0.0
  %4050 = vmatpush1.msra.mxu0 %v4030
  %4051 = vmatprep.subr.mxu0 0.0
  %4052 = vmatpush1.msra.mxu0 %v4031
  %4053 = vmatprep.subr.mxu0 0.0
  %4054 = vmatpush1.msra.mxu0 0.0
  %4055 = vmatprep.subr.mxu0 0.0
  %4056 = vmatpush1.msra.mxu0 0.0
  %4057 = vmatprep.subr.mxu0 0.0
  %4058 = vmatpush1.msra.mxu0 0.0
  %4059 = vmatprep.subr.mxu0 0.0
  %4060 = vmatpush1.msra.mxu0 0.0
  %4061 = vmatprep.subr.mxu0 0.0
  %4062 = vmatpush1.msra.mxu0 0.0
  %4063 = vmatprep.subr.mxu0 0.0
  %4064 = vmatpush1.msra.mxu0 0.0
  %4065 = vmatprep.subr.mxu0 0.0
  %4066 = vmatpush1.msra.mxu0 0.0
  %4067 = vmatprep.subr.mxu0 0.0
  %4068 = vmatpush1.msra.mxu0 0.0
  %4069 = vmatprep.subr.mxu0 0.0
  %4070 = vmatpush1.msra.mxu0 0.0
  %4071 = vmatprep.subr.mxu0 0.0
  %4072 = vmatpush1.msra.mxu0 0.0
  %4073 = vmatprep.subr.mxu0 0.0
  %4074 = vmatpush1.msra.mxu0 0.0
  %4075 = vmatprep.subr.mxu0 0.0
  %4076 = vmatpush1.msra.mxu0 0.0
  %4077 = vmatprep.subr.mxu0 0.0
  %4078 = vmatpush1.msra.mxu0 0.0
  %4079 = vmatprep.subr.mxu0 0.0
  %4080 = vmatpush1.msra.mxu0 0.0
  %4081 = vmatprep.subr.mxu0 0.0
  %4082 = vmatpush1.msra.mxu0 0.0
  %4083 = vmatprep.subr.mxu0 0.0
  %4084 = vmatpush1.msra.mxu0 0.0
  %4085 = vmatprep.subr.mxu0 0.0
  %4086 = vmatpush1.msra.mxu0 0.0
  %4087 = vmatprep.subr.mxu0 0.0
  %4088 = vmatpush1.msra.mxu0 0.0
  %4089 = vmatprep.subr.mxu0 0.0
  %4090 = vmatpush1.msra.mxu0 0.0
  %4091 = vmatprep.subr.mxu0 0.0
  %4092 = vmatpush1.msra.mxu0 0.0
  %4093 = vmatprep.subr.mxu0 0.0
  %4094 = vmatpush1.msra.mxu0 0.0
  %4095 = vmatprep.subr.mxu0 0.0
  %4096 = vmatpush1.msra.mxu0 0.0
  %4097 = vmatprep.subr.mxu0 0.0
  %4098 = vmatpush1.msra.mxu0 0.0
  %4099 = vmatprep.subr.mxu0 0.0
  %4100 = vmatpush1.msra.mxu0 0.0
  %4101 = vmatprep.mubr.f32.mxu0 0.0
  %4102 = vmatmul.mubr.f32.gmra.mrb[0].mxu0 %v3912
  %v4103 = vpop.f32.mrb[0].mxu0
  %v4104 = vadd.f32 %v4036, %v4103
  %v4105 = vpop.f32.mrb[0].mxu0
  %4106 = vmatprep.mubr.f32.mxu0 0.0
  %4107 = vmatmul.mubr.f32.gmra.mrb[0].mxu0 %v3915
  %v4108 = vpop.f32.mrb[0].mxu0
  %v4109 = vadd.f32 %v4036, %v4108
  %v4110 = vpop.f32.mrb[0].mxu0
  %4111 = vmatprep.mubr.f32.mxu0 0.0
  %4112 = vmatmul.mubr.f32.gmra.mrb[0].mxu0 %v3918
  %v4113 = vpop.f32.mrb[0].mxu0
  %v4114 = vadd.f32 %v4036, %v4113
  %v4115 = vpop.f32.mrb[0].mxu0
  %4116 = vmatprep.mubr.f32.mxu0 0.0
  %4117 = vmatmul.mubr.f32.gmra.mrb[0].mxu0 %v3921
  %v4118 = vpop.f32.mrb[0].mxu0
  %v4119 = vadd.f32 %v4036, %v4118
  %v4120 = vpop.f32.mrb[0].mxu0
  %4121 = vmatprep.mubr.f32.mxu0 0.0
  %4122 = vmatmul.mubr.f32.gmra.mrb[0].mxu0 %v3924
  %v4123 = vpop.f32.mrb[0].mxu0
  %v4124 = vadd.f32 %v4036, %v4123
  %v4125 = vpop.f32.mrb[0].mxu0
  %4126 = vmatprep.mubr.f32.mxu0 0.0
  %4127 = vmatmul.mubr.f32.gmra.mrb[0].mxu0 %v3927
  %v4128 = vpop.f32.mrb[0].mxu0
  %v4129 = vadd.f32 %v4036, %v4128
  %v4130 = vpop.f32.mrb[0].mxu0
  %4131 = vdwg.mxu0
  %v4132 = vld [vmem:[%s1 + $0x348] sm:$0xff]
  %v4133 = vld [vmem:[%s1 + $0x350] sm:$0xff]
  %v4134 = vld [vmem:[%s1 + $0x358] sm:$0xff]
  %v4135 = vld [vmem:[%s1 + $0x360] sm:$0xff]
  %v4136 = vld [vmem:[%s1 + $0x3b0] sm:$0xff]
  %v4137 = vld [vmem:[%s1 + $0x3b8] sm:$0xff]
  %v4138 = vld [vmem:[%s1 + $0x3c0] sm:$0xff]
  %v4139 = vld [vmem:[%s1 + $0x3c8] sm:$0xff]
  %4140 = vmatprep.subr.mxu0 0.0
  %4141 = vmatpush1.msra.mxu0 %v4132
  %4142 = vmatprep.subr.mxu0 0.0
  %4143 = vmatpush1.msra.mxu0 %v4133
  %4144 = vmatprep.subr.mxu0 0.0
  %4145 = vmatpush1.msra.mxu0 %v4134
  %4146 = vmatprep.subr.mxu0 0.0
  %4147 = vmatpush1.msra.mxu0 %v4135
  %4148 = vmatprep.subr.mxu0 0.0
  %4149 = vmatpush1.msra.mxu0 0.0
  %4150 = vmatprep.subr.mxu0 0.0
  %4151 = vmatpush1.msra.mxu0 0.0
  %4152 = vmatprep.subr.mxu0 0.0
  %4153 = vmatpush1.msra.mxu0 0.0
  %4154 = vmatprep.subr.mxu0 0.0
  %4155 = vmatpush1.msra.mxu0 0.0
  %4156 = vmatprep.subr.mxu0 0.0
  %4157 = vmatpush1.msra.mxu0 0.0
  %4158 = vmatprep.subr.mxu0 0.0
  %4159 = vmatpush1.msra.mxu0 0.0
  %4160 = vmatprep.subr.mxu0 0.0
  %4161 = vmatpush1.msra.mxu0 0.0
  %4162 = vmatprep.subr.mxu0 0.0
  %4163 = vmatpush1.msra.mxu0 0.0
  %4164 = vmatprep.subr.mxu0 0.0
  %4165 = vmatpush1.msra.mxu0 0.0
  %4166 = vmatprep.subr.mxu0 0.0
  %4167 = vmatpush1.msra.mxu0 0.0
  %4168 = vmatprep.subr.mxu0 0.0
  %4169 = vmatpush1.msra.mxu0 0.0
  %4170 = vmatprep.subr.mxu0 0.0
  %4171 = vmatpush1.msra.mxu0 0.0
  %4172 = vmatprep.subr.mxu0 0.0
  %4173 = vmatpush1.msra.mxu0 0.0
  %4174 = vmatprep.subr.mxu0 0.0
  %4175 = vmatpush1.msra.mxu0 0.0
  %4176 = vmatprep.subr.mxu0 0.0
  %4177 = vmatpush1.msra.mxu0 0.0
  %4178 = vmatprep.subr.mxu0 0.0
  %4179 = vmatpush1.msra.mxu0 0.0
  %4180 = vmatprep.subr.mxu0 0.0
  %4181 = vmatpush1.msra.mxu0 0.0
  %4182 = vmatprep.subr.mxu0 0.0
  %4183 = vmatpush1.msra.mxu0 0.0
  %4184 = vmatprep.subr.mxu0 0.0
  %4185 = vmatpush1.msra.mxu0 0.0
  %4186 = vmatprep.subr.mxu0 0.0
  %4187 = vmatpush1.msra.mxu0 0.0
  %4188 = vmatprep.subr.mxu0 0.0
  %4189 = vmatpush1.msra.mxu0 0.0
  %4190 = vmatprep.subr.mxu0 0.0
  %4191 = vmatpush1.msra.mxu0 0.0
  %4192 = vmatprep.subr.mxu0 0.0
  %4193 = vmatpush1.msra.mxu0 0.0
  %4194 = vmatprep.subr.mxu0 0.0
  %4195 = vmatpush1.msra.mxu0 0.0
  %4196 = vmatprep.subr.mxu0 0.0
  %4197 = vmatpush1.msra.mxu0 0.0
  %4198 = vmatprep.subr.mxu0 0.0
  %4199 = vmatpush1.msra.mxu0 0.0
  %4200 = vmatprep.subr.mxu0 0.0
  %4201 = vmatpush1.msra.mxu0 0.0
  %4202 = vmatprep.subr.mxu0 0.0
  %4203 = vmatpush1.msra.mxu0 0.0
  %4204 = vmatprep.mubr.f32.mxu0 0.0
  %4205 = vmatmul.mubr.f32.gmra.mrb[0].mxu0 %v1998
  %v4206 = vpop.f32.mrb[0].mxu0
  %v4207 = vadd.f32 0.0, %v4206
  %v4208 = vpop.f32.mrb[0].mxu0
  %4209 = vmatprep.mubr.f32.mxu0 0.0
  %4210 = vmatmul.mubr.f32.gmra.mrb[0].mxu0 %v1998
  %v4211 = vpop.f32.mrb[0].mxu0
  %v4212 = vadd.f32 0.0, %v4211
  %v4213 = vpop.f32.mrb[0].mxu0
  %4214 = vdwg.mxu0
  %v4215 = vadd.f32 %v3996, %v4207
  %v4216 = vadd.f32 %v4001, %v4212
  %4217 = vmatprep.subr.mxu0 0.0
  %4218 = vmatpush1.msra.mxu0 %v4136
  %4219 = vmatprep.subr.mxu0 0.0
  %4220 = vmatpush1.msra.mxu0 %v4137
  %4221 = vmatprep.subr.mxu0 0.0
  %4222 = vmatpush1.msra.mxu0 %v4138
  %4223 = vmatprep.subr.mxu0 0.0
  %4224 = vmatpush1.msra.mxu0 %v4139
  %4225 = vmatprep.subr.mxu0 0.0
  %4226 = vmatpush1.msra.mxu0 0.0
  %4227 = vmatprep.subr.mxu0 0.0
  %4228 = vmatpush1.msra.mxu0 0.0
  %4229 = vmatprep.subr.mxu0 0.0
  %4230 = vmatpush1.msra.mxu0 0.0
  %4231 = vmatprep.subr.mxu0 0.0
  %4232 = vmatpush1.msra.mxu0 0.0
  %4233 = vmatprep.subr.mxu0 0.0
  %4234 = vmatpush1.msra.mxu0 0.0
  %4235 = vmatprep.subr.mxu0 0.0
  %4236 = vmatpush1.msra.mxu0 0.0
  %4237 = vmatprep.subr.mxu0 0.0
  %4238 = vmatpush1.msra.mxu0 0.0
  %4239 = vmatprep.subr.mxu0 0.0
  %4240 = vmatpush1.msra.mxu0 0.0
  %4241 = vmatprep.subr.mxu0 0.0
  %4242 = vmatpush1.msra.mxu0 0.0
  %4243 = vmatprep.subr.mxu0 0.0
  %4244 = vmatpush1.msra.mxu0 0.0
  %4245 = vmatprep.subr.mxu0 0.0
  %4246 = vmatpush1.msra.mxu0 0.0
  %4247 = vmatprep.subr.mxu0 0.0
  %4248 = vmatpush1.msra.mxu0 0.0
  %4249 = vmatprep.subr.mxu0 0.0
  %4250 = vmatpush1.msra.mxu0 0.0
  %4251 = vmatprep.subr.mxu0 0.0
  %4252 = vmatpush1.msra.mxu0 0.0
  %4253 = vmatprep.subr.mxu0 0.0
  %4254 = vmatpush1.msra.mxu0 0.0
  %4255 = vmatprep.subr.mxu0 0.0
  %4256 = vmatpush1.msra.mxu0 0.0
  %4257 = vmatprep.subr.mxu0 0.0
  %4258 = vmatpush1.msra.mxu0 0.0
  %4259 = vmatprep.subr.mxu0 0.0
  %4260 = vmatpush1.msra.mxu0 0.0
  %4261 = vmatprep.subr.mxu0 0.0
  %4262 = vmatpush1.msra.mxu0 0.0
  %4263 = vmatprep.subr.mxu0 0.0
  %4264 = vmatpush1.msra.mxu0 0.0
  %4265 = vmatprep.subr.mxu0 0.0
  %4266 = vmatpush1.msra.mxu0 0.0
  %4267 = vmatprep.subr.mxu0 0.0
  %4268 = vmatpush1.msra.mxu0 0.0
  %4269 = vmatprep.subr.mxu0 0.0
  %4270 = vmatpush1.msra.mxu0 0.0
  %4271 = vmatprep.subr.mxu0 0.0
  %4272 = vmatpush1.msra.mxu0 0.0
  %4273 = vmatprep.subr.mxu0 0.0
  %4274 = vmatpush1.msra.mxu0 0.0
  %4275 = vmatprep.subr.mxu0 0.0
  %4276 = vmatpush1.msra.mxu0 0.0
  %4277 = vmatprep.subr.mxu0 0.0
  %4278 = vmatpush1.msra.mxu0 0.0
  %4279 = vmatprep.subr.mxu0 0.0
  %4280 = vmatpush1.msra.mxu0 0.0
  %4281 = vmatprep.mubr.f32.mxu0 0.0
  %4282 = vmatmul.mubr.f32.gmra.mrb[0].mxu0 %v1998
  %v4283 = vpop.f32.mrb[0].mxu0
  %v4284 = vadd.f32 0.0, %v4283
  %v4285 = vpop.f32.mrb[0].mxu0
  %4286 = vmatprep.mubr.f32.mxu0 0.0
  %4287 = vmatmul.mubr.f32.gmra.mrb[0].mxu0 %v1998
  %v4288 = vpop.f32.mrb[0].mxu0
  %v4289 = vadd.f32 0.0, %v4288
  %v4290 = vpop.f32.mrb[0].mxu0
  %4291 = vdwg.mxu0
  %v4292 = vadd.f32 %v4124, %v4284
  %v4293 = vadd.f32 %v4129, %v4289
  %v4294 = vxor.u32 %v4215, 2147483648
  %v4295 = vxor.u32 %v4216, 2147483648
  %v4296 = vxor.u32 %v4292, 2147483648
  %v4297 = vxor.u32 %v4293, 2147483648
  %v4298 = vmul.f32 %v4294, 1.442695
  %v4299 = vpow.pop %v4298
  %v4300 = vmul.f32 %v4295, 1.442695
  %v4301 = vpow.pop %v4300
  %v4302 = vmul.f32 %v4296, 1.442695
  %v4303 = vpow.pop %v4302
  %v4304 = vmul.f32 %v4297, 1.442695
  %v4305 = vpow.pop %v4304
  %v4306 = vadd.f32 %v4299, 1.0
  %v4307 = vadd.f32 %v4301, 1.0
  %v4308 = vadd.f32 %v4303, 1.0
  %v4309 = vadd.f32 %v4305, 1.0
  %v4310 = vrcp.pop %v4306
  %v4311 = vmul.f32 1.0, %v4310
  %v4312 = vrcp.pop %v4307
  %v4313 = vmul.f32 1.0, %v4312
  %v4314 = vrcp.pop %v4308
  %v4315 = vmul.f32 1.0, %v4314
  %v4316 = vrcp.pop %v4309
  %v4317 = vmul.f32 1.0, %v4316
  %v4318 = vtanh.pop %v4215
  %v4319 = vtanh.pop %v4216
  %v4320 = vtanh.pop %v4292
  %v4321 = vtanh.pop %v4293
  %v4322 = vmul.f32 %v4311, 0.0
  %v4323 = vmul.f32 %v4313, 0.0
  %v4324 = vmul.f32 %v4315, 0.0
  %v4325 = vmul.f32 %v4317, 0.0
  %4330 = vrot.lane.b32.xlu0 %v4318, 32
  %v4331 = vpop.permute.xlu0 %4330
  %4332 = vrot.lane.b32.xlu0 %v4319, 32
  %v4333 = vpop.permute.xlu0 %4332
  %4334 = vrot.lane.b32.xlu0 %v4320, 32
  %v4335 = vpop.permute.xlu0 %4334
  %4336 = vrot.lane.b32.xlu0 %v4321, 32
  %v4337 = vpop.permute.xlu0 %4336
  %v4342 = vmul.f32 %v4311, %v4331
  %v4343 = vmul.f32 %v4313, %v4333
  %v4344 = vmul.f32 %v4315, %v4335
  %v4345 = vmul.f32 %v4317, %v4337
  %4350 = vrot.lane.b32.xlu0 %v4342, 32
  %v4351 = vpop.permute.xlu0 %4350
  %4352 = vrot.lane.b32.xlu0 %v4343, 32
  %v4353 = vpop.permute.xlu0 %4352
  %4354 = vrot.lane.b32.xlu0 %v4344, 32
  %v4355 = vpop.permute.xlu0 %4354
  %4356 = vrot.lane.b32.xlu0 %v4345, 32
  %v4357 = vpop.permute.xlu0 %4356
  %v4362 = vadd.f32 %v4322, %v4351
  %v4363 = vadd.f32 %v4323, %v4353
  %v4364 = vadd.f32 %v4324, %v4355
  %v4365 = vadd.f32 %v4325, %v4357
  %v4366 = vtanh.pop %v4362
  %v4367 = vtanh.pop %v4363
  %v4368 = vtanh.pop %v4364
  %v4369 = vtanh.pop %v4365
  %4374 = vrot.lane.b32.xlu0 %v4366, 32
  %v4375 = vpop.permute.xlu0 %4374
  %4376 = vrot.lane.b32.xlu0 %v4367, 32
  %v4377 = vpop.permute.xlu0 %4376
  %4378 = vrot.lane.b32.xlu0 %v4368, 32
  %v4379 = vpop.permute.xlu0 %4378
  %4380 = vrot.lane.b32.xlu0 %v4369, 32
  %v4381 = vpop.permute.xlu0 %4380
  %v4386 = vmul.f32 %v4311, %v4375
  %v4387 = vmul.f32 %v4313, %v4377
  %v4388 = vmul.f32 %v4315, %v4379
  %v4389 = vmul.f32 %v4317, %v4381
  %4392 = vrot.lane.b32.xlu0 %v4386, 64
  %v4393 = vpop.permute.xlu0 %4392
  %4394 = vrot.lane.b32.xlu0 %v4387, 64
  %v4395 = vpop.permute.xlu0 %4394
  %v4396 = vsel %vm902, %v4393, 0
  %v4398 = vsel %vm902, %v4395, 0
  %4400 = vmatprep.subr.mxu0 0.0
  %4401 = vmatpush1.msra.mxu0 %v4132
  %4402 = vmatprep.subr.mxu0 0.0
  %4403 = vmatpush1.msra.mxu0 %v4133
  %4404 = vmatprep.subr.mxu0 0.0
  %4405 = vmatpush1.msra.mxu0 %v4134
  %4406 = vmatprep.subr.mxu0 0.0
  %4407 = vmatpush1.msra.mxu0 %v4135
  %4408 = vmatprep.subr.mxu0 0.0
  %4409 = vmatpush1.msra.mxu0 0.0
  %4410 = vmatprep.subr.mxu0 0.0
  %4411 = vmatpush1.msra.mxu0 0.0
  %4412 = vmatprep.subr.mxu0 0.0
  %4413 = vmatpush1.msra.mxu0 0.0
  %4414 = vmatprep.subr.mxu0 0.0
  %4415 = vmatpush1.msra.mxu0 0.0
  %4416 = vmatprep.subr.mxu0 0.0
  %4417 = vmatpush1.msra.mxu0 0.0
  %4418 = vmatprep.subr.mxu0 0.0
  %4419 = vmatpush1.msra.mxu0 0.0
  %4420 = vmatprep.subr.mxu0 0.0
  %4421 = vmatpush1.msra.mxu0 0.0
  %4422 = vmatprep.subr.mxu0 0.0
  %4423 = vmatpush1.msra.mxu0 0.0
  %4424 = vmatprep.subr.mxu0 0.0
  %4425 = vmatpush1.msra.mxu0 0.0
  %4426 = vmatprep.subr.mxu0 0.0
  %4427 = vmatpush1.msra.mxu0 0.0
  %4428 = vmatprep.subr.mxu0 0.0
  %4429 = vmatpush1.msra.mxu0 0.0
  %4430 = vmatprep.subr.mxu0 0.0
  %4431 = vmatpush1.msra.mxu0 0.0
  %4432 = vmatprep.subr.mxu0 0.0
  %4433 = vmatpush1.msra.mxu0 0.0
  %4434 = vmatprep.subr.mxu0 0.0
  %4435 = vmatpush1.msra.mxu0 0.0
  %4436 = vmatprep.subr.mxu0 0.0
  %4437 = vmatpush1.msra.mxu0 0.0
  %4438 = vmatprep.subr.mxu0 0.0
  %4439 = vmatpush1.msra.mxu0 0.0
  %4440 = vmatprep.subr.mxu0 0.0
  %4441 = vmatpush1.msra.mxu0 0.0
  %4442 = vmatprep.subr.mxu0 0.0
  %4443 = vmatpush1.msra.mxu0 0.0
  %4444 = vmatprep.subr.mxu0 0.0
  %4445 = vmatpush1.msra.mxu0 0.0
  %4446 = vmatprep.subr.mxu0 0.0
  %4447 = vmatpush1.msra.mxu0 0.0
  %4448 = vmatprep.subr.mxu0 0.0
  %4449 = vmatpush1.msra.mxu0 0.0
  %4450 = vmatprep.subr.mxu0 0.0
  %4451 = vmatpush1.msra.mxu0 0.0
  %4452 = vmatprep.subr.mxu0 0.0
  %4453 = vmatpush1.msra.mxu0 0.0
  %4454 = vmatprep.subr.mxu0 0.0
  %4455 = vmatpush1.msra.mxu0 0.0
  %4456 = vmatprep.subr.mxu0 0.0
  %4457 = vmatpush1.msra.mxu0 0.0
  %4458 = vmatprep.subr.mxu0 0.0
  %4459 = vmatpush1.msra.mxu0 0.0
  %4460 = vmatprep.subr.mxu0 0.0
  %4461 = vmatpush1.msra.mxu0 0.0
  %4462 = vmatprep.subr.mxu0 0.0
  %4463 = vmatpush1.msra.mxu0 0.0
  %4464 = vmatprep.mubr.f32.mxu0 0.0
  %4465 = vmatmul.mubr.f32.gmra.mrb[0].mxu0 %v4396
  %v4466 = vpop.f32.mrb[0].mxu0
  %v4467 = vadd.f32 0.0, %v4466
  %v4468 = vpop.f32.mrb[0].mxu0
  %4469 = vmatprep.mubr.f32.mxu0 0.0
  %4470 = vmatmul.mubr.f32.gmra.mrb[0].mxu0 %v4398
  %v4471 = vpop.f32.mrb[0].mxu0
  %v4472 = vadd.f32 0.0, %v4471
  %v4473 = vpop.f32.mrb[0].mxu0
  %4474 = vdwg.mxu0
  %v4475 = vadd.f32 %v4006, %v4467
  %v4476 = vadd.f32 %v4011, %v4472
  %4479 = vrot.lane.b32.xlu0 %v4388, 64
  %v4480 = vpop.permute.xlu0 %4479
  %4481 = vrot.lane.b32.xlu0 %v4389, 64
  %v4482 = vpop.permute.xlu0 %4481
  %v4483 = vsel %vm902, %v4480, 0
  %v4485 = vsel %vm902, %v4482, 0
  %4487 = vmatprep.subr.mxu0 0.0
  %4488 = vmatpush1.msra.mxu0 %v4136
  %4489 = vmatprep.subr.mxu0 0.0
  %4490 = vmatpush1.msra.mxu0 %v4137
  %4491 = vmatprep.subr.mxu0 0.0
  %4492 = vmatpush1.msra.mxu0 %v4138
  %4493 = vmatprep.subr.mxu0 0.0
  %4494 = vmatpush1.msra.mxu0 %v4139
  %4495 = vmatprep.subr.mxu0 0.0
  %4496 = vmatpush1.msra.mxu0 0.0
  %4497 = vmatprep.subr.mxu0 0.0
  %4498 = vmatpush1.msra.mxu0 0.0
  %4499 = vmatprep.subr.mxu0 0.0
  %4500 = vmatpush1.msra.mxu0 0.0
  %4501 = vmatprep.subr.mxu0 0.0
  %4502 = vmatpush1.msra.mxu0 0.0
  %4503 = vmatprep.subr.mxu0 0.0
  %4504 = vmatpush1.msra.mxu0 0.0
  %4505 = vmatprep.subr.mxu0 0.0
  %4506 = vmatpush1.msra.mxu0 0.0
  %4507 = vmatprep.subr.mxu0 0.0
  %4508 = vmatpush1.msra.mxu0 0.0
  %4509 = vmatprep.subr.mxu0 0.0
  %4510 = vmatpush1.msra.mxu0 0.0
  %4511 = vmatprep.subr.mxu0 0.0
  %4512 = vmatpush1.msra.mxu0 0.0
  %4513 = vmatprep.subr.mxu0 0.0
  %4514 = vmatpush1.msra.mxu0 0.0
  %4515 = vmatprep.subr.mxu0 0.0
  %4516 = vmatpush1.msra.mxu0 0.0
  %4517 = vmatprep.subr.mxu0 0.0
  %4518 = vmatpush1.msra.mxu0 0.0
  %4519 = vmatprep.subr.mxu0 0.0
  %4520 = vmatpush1.msra.mxu0 0.0
  %4521 = vmatprep.subr.mxu0 0.0
  %4522 = vmatpush1.msra.mxu0 0.0
  %4523 = vmatprep.subr.mxu0 0.0
  %4524 = vmatpush1.msra.mxu0 0.0
  %4525 = vmatprep.subr.mxu0 0.0
  %4526 = vmatpush1.msra.mxu0 0.0
  %4527 = vmatprep.subr.mxu0 0.0
  %4528 = vmatpush1.msra.mxu0 0.0
  %4529 = vmatprep.subr.mxu0 0.0
  %4530 = vmatpush1.msra.mxu0 0.0
  %4531 = vmatprep.subr.mxu0 0.0
  %4532 = vmatpush1.msra.mxu0 0.0
  %4533 = vmatprep.subr.mxu0 0.0
  %4534 = vmatpush1.msra.mxu0 0.0
  %4535 = vmatprep.subr.mxu0 0.0
  %4536 = vmatpush1.msra.mxu0 0.0
  %4537 = vmatprep.subr.mxu0 0.0
  %4538 = vmatpush1.msra.mxu0 0.0
  %4539 = vmatprep.subr.mxu0 0.0
  %4540 = vmatpush1.msra.mxu0 0.0
  %4541 = vmatprep.subr.mxu0 0.0
  %4542 = vmatpush1.msra.mxu0 0.0
  %4543 = vmatprep.subr.mxu0 0.0
  %4544 = vmatpush1.msra.mxu0 0.0
  %4545 = vmatprep.subr.mxu0 0.0
  %4546 = vmatpush1.msra.mxu0 0.0
  %4547 = vmatprep.subr.mxu0 0.0
  %4548 = vmatpush1.msra.mxu0 0.0
  %4549 = vmatprep.subr.mxu0 0.0
  %4550 = vmatpush1.msra.mxu0 0.0
  %4551 = vmatprep.mubr.f32.mxu0 0.0
  %4552 = vmatmul.mubr.f32.gmra.mrb[0].mxu0 %v4483
  %v4553 = vpop.f32.mrb[0].mxu0
  %v4554 = vadd.f32 0.0, %v4553
  %v4555 = vpop.f32.mrb[0].mxu0
  %4556 = vmatprep.mubr.f32.mxu0 0.0
  %4557 = vmatmul.mubr.f32.gmra.mrb[0].mxu0 %v4485
  %v4558 = vpop.f32.mrb[0].mxu0
  %v4559 = vadd.f32 0.0, %v4558
  %v4560 = vpop.f32.mrb[0].mxu0
  %4561 = vdwg.mxu0
  %v4562 = vadd.f32 %v4114, %v4554
  %v4563 = vadd.f32 %v4119, %v4559
  %v4564 = vxor.u32 %v4475, 2147483648
  %v4565 = vxor.u32 %v4476, 2147483648
  %v4566 = vxor.u32 %v4562, 2147483648
  %v4567 = vxor.u32 %v4563, 2147483648
  %v4568 = vmul.f32 %v4564, 1.442695
  %v4569 = vpow.pop %v4568
  %v4570 = vmul.f32 %v4565, 1.442695
  %v4571 = vpow.pop %v4570
  %v4572 = vmul.f32 %v4566, 1.442695
  %v4573 = vpow.pop %v4572
  %v4574 = vmul.f32 %v4567, 1.442695
  %v4575 = vpow.pop %v4574
  %v4576 = vadd.f32 %v4569, 1.0
  %v4577 = vadd.f32 %v4571, 1.0
  %v4578 = vadd.f32 %v4573, 1.0
  %v4579 = vadd.f32 %v4575, 1.0
  %v4580 = vrcp.pop %v4576
  %v4581 = vmul.f32 1.0, %v4580
  %v4582 = vrcp.pop %v4577
  %v4583 = vmul.f32 1.0, %v4582
  %v4584 = vrcp.pop %v4578
  %v4585 = vmul.f32 1.0, %v4584
  %v4586 = vrcp.pop %v4579
  %v4587 = vmul.f32 1.0, %v4586
  %v4588 = vtanh.pop %v4475
  %v4589 = vtanh.pop %v4476
  %v4590 = vtanh.pop %v4562
  %v4591 = vtanh.pop %v4563
  %v4592 = vmul.f32 %v4581, %v4362
  %v4593 = vmul.f32 %v4583, %v4363
  %v4594 = vmul.f32 %v4585, %v4364
  %v4595 = vmul.f32 %v4587, %v4365
  %4600 = vrot.lane.b32.xlu0 %v4588, 32
  %v4601 = vpop.permute.xlu0 %4600
  %4602 = vrot.lane.b32.xlu0 %v4589, 32
  %v4603 = vpop.permute.xlu0 %4602
  %4604 = vrot.lane.b32.xlu0 %v4590, 32
  %v4605 = vpop.permute.xlu0 %4604
  %4606 = vrot.lane.b32.xlu0 %v4591, 32
  %v4607 = vpop.permute.xlu0 %4606
  %v4612 = vmul.f32 %v4581, %v4601
  %v4613 = vmul.f32 %v4583, %v4603
  %v4614 = vmul.f32 %v4585, %v4605
  %v4615 = vmul.f32 %v4587, %v4607
  %4620 = vrot.lane.b32.xlu0 %v4612, 32
  %v4621 = vpop.permute.xlu0 %4620
  %4622 = vrot.lane.b32.xlu0 %v4613, 32
  %v4623 = vpop.permute.xlu0 %4622
  %4624 = vrot.lane.b32.xlu0 %v4614, 32
  %v4625 = vpop.permute.xlu0 %4624
  %4626 = vrot.lane.b32.xlu0 %v4615, 32
  %v4627 = vpop.permute.xlu0 %4626
  %v4632 = vadd.f32 %v4592, %v4621
  %v4633 = vadd.f32 %v4593, %v4623
  %v4634 = vadd.f32 %v4594, %v4625
  %v4635 = vadd.f32 %v4595, %v4627
  %v4636 = vtanh.pop %v4632
  %v4637 = vtanh.pop %v4633
  %v4638 = vtanh.pop %v4634
  %v4639 = vtanh.pop %v4635
  %4644 = vrot.lane.b32.xlu0 %v4636, 32
  %v4645 = vpop.permute.xlu0 %4644
  %4646 = vrot.lane.b32.xlu0 %v4637, 32
  %v4647 = vpop.permute.xlu0 %4646
  %4648 = vrot.lane.b32.xlu0 %v4638, 32
  %v4649 = vpop.permute.xlu0 %4648
  %4650 = vrot.lane.b32.xlu0 %v4639, 32
  %v4651 = vpop.permute.xlu0 %4650
  %v4656 = vmul.f32 %v4581, %v4645
  %v4657 = vmul.f32 %v4583, %v4647
  %v4658 = vmul.f32 %v4585, %v4649
  %v4659 = vmul.f32 %v4587, %v4651
  %4662 = vrot.lane.b32.xlu0 %v4656, 64
  %v4663 = vpop.permute.xlu0 %4662
  %4664 = vrot.lane.b32.xlu0 %v4657, 64
  %v4665 = vpop.permute.xlu0 %4664
  %v4666 = vsel %vm902, %v4663, 0
  %v4668 = vsel %vm902, %v4665, 0
  %4670 = vmatprep.subr.mxu0 0.0
  %4671 = vmatpush1.msra.mxu0 %v4132
  %4672 = vmatprep.subr.mxu0 0.0
  %4673 = vmatpush1.msra.mxu0 %v4133
  %4674 = vmatprep.subr.mxu0 0.0
  %4675 = vmatpush1.msra.mxu0 %v4134
  %4676 = vmatprep.subr.mxu0 0.0
  %4677 = vmatpush1.msra.mxu0 %v4135
  %4678 = vmatprep.subr.mxu0 0.0
  %4679 = vmatpush1.msra.mxu0 0.0
  %4680 = vmatprep.subr.mxu0 0.0
  %4681 = vmatpush1.msra.mxu0 0.0
  %4682 = vmatprep.subr.mxu0 0.0
  %4683 = vmatpush1.msra.mxu0 0.0
  %4684 = vmatprep.subr.mxu0 0.0
  %4685 = vmatpush1.msra.mxu0 0.0
  %4686 = vmatprep.subr.mxu0 0.0
  %4687 = vmatpush1.msra.mxu0 0.0
  %4688 = vmatprep.subr.mxu0 0.0
  %4689 = vmatpush1.msra.mxu0 0.0
  %4690 = vmatprep.subr.mxu0 0.0
  %4691 = vmatpush1.msra.mxu0 0.0
  %4692 = vmatprep.subr.mxu0 0.0
  %4693 = vmatpush1.msra.mxu0 0.0
  %4694 = vmatprep.subr.mxu0 0.0
  %4695 = vmatpush1.msra.mxu0 0.0
  %4696 = vmatprep.subr.mxu0 0.0
  %4697 = vmatpush1.msra.mxu0 0.0
  %4698 = vmatprep.subr.mxu0 0.0
  %4699 = vmatpush1.msra.mxu0 0.0
  %4700 = vmatprep.subr.mxu0 0.0
  %4701 = vmatpush1.msra.mxu0 0.0
  %4702 = vmatprep.subr.mxu0 0.0
  %4703 = vmatpush1.msra.mxu0 0.0
  %4704 = vmatprep.subr.mxu0 0.0
  %4705 = vmatpush1.msra.mxu0 0.0
  %4706 = vmatprep.subr.mxu0 0.0
  %4707 = vmatpush1.msra.mxu0 0.0
  %4708 = vmatprep.subr.mxu0 0.0
  %4709 = vmatpush1.msra.mxu0 0.0
  %4710 = vmatprep.subr.mxu0 0.0
  %4711 = vmatpush1.msra.mxu0 0.0
  %4712 = vmatprep.subr.mxu0 0.0
  %4713 = vmatpush1.msra.mxu0 0.0
  %4714 = vmatprep.subr.mxu0 0.0
  %4715 = vmatpush1.msra.mxu0 0.0
  %4716 = vmatprep.subr.mxu0 0.0
  %4717 = vmatpush1.msra.mxu0 0.0
  %4718 = vmatprep.subr.mxu0 0.0
  %4719 = vmatpush1.msra.mxu0 0.0
  %4720 = vmatprep.subr.mxu0 0.0
  %4721 = vmatpush1.msra.mxu0 0.0
  %4722 = vmatprep.subr.mxu0 0.0
  %4723 = vmatpush1.msra.mxu0 0.0
  %4724 = vmatprep.subr.mxu0 0.0
  %4725 = vmatpush1.msra.mxu0 0.0
  %4726 = vmatprep.subr.mxu0 0.0
  %4727 = vmatpush1.msra.mxu0 0.0
  %4728 = vmatprep.subr.mxu0 0.0
  %4729 = vmatpush1.msra.mxu0 0.0
  %4730 = vmatprep.subr.mxu0 0.0
  %4731 = vmatpush1.msra.mxu0 0.0
  %4732 = vmatprep.subr.mxu0 0.0
  %4733 = vmatpush1.msra.mxu0 0.0
  %4734 = vmatprep.mubr.f32.mxu0 0.0
  %4735 = vmatmul.mubr.f32.gmra.mrb[0].mxu0 %v4666
  %v4736 = vpop.f32.mrb[0].mxu0
  %v4737 = vadd.f32 0.0, %v4736
  %v4738 = vpop.f32.mrb[0].mxu0
  %4739 = vmatprep.mubr.f32.mxu0 0.0
  %4740 = vmatmul.mubr.f32.gmra.mrb[0].mxu0 %v4668
  %v4741 = vpop.f32.mrb[0].mxu0
  %v4742 = vadd.f32 0.0, %v4741
  %v4743 = vpop.f32.mrb[0].mxu0
  %4744 = vdwg.mxu0
  %v4745 = vadd.f32 %v4016, %v4737
  %v4746 = vadd.f32 %v4021, %v4742
  %4749 = vrot.lane.b32.xlu0 %v4658, 64
  %v4750 = vpop.permute.xlu0 %4749
  %4751 = vrot.lane.b32.xlu0 %v4659, 64
  %v4752 = vpop.permute.xlu0 %4751
  %v4753 = vsel %vm902, %v4750, 0
  %v4755 = vsel %vm902, %v4752, 0
  %4757 = vmatprep.subr.mxu0 0.0
  %4758 = vmatpush1.msra.mxu0 %v4136
  %4759 = vmatprep.subr.mxu0 0.0
  %4760 = vmatpush1.msra.mxu0 %v4137
  %4761 = vmatprep.subr.mxu0 0.0
  %4762 = vmatpush1.msra.mxu0 %v4138
  %4763 = vmatprep.subr.mxu0 0.0
  %4764 = vmatpush1.msra.mxu0 %v4139
  %4765 = vmatprep.subr.mxu0 0.0
  %4766 = vmatpush1.msra.mxu0 0.0
  %4767 = vmatprep.subr.mxu0 0.0
  %4768 = vmatpush1.msra.mxu0 0.0
  %4769 = vmatprep.subr.mxu0 0.0
  %4770 = vmatpush1.msra.mxu0 0.0
  %4771 = vmatprep.subr.mxu0 0.0
  %4772 = vmatpush1.msra.mxu0 0.0
  %4773 = vmatprep.subr.mxu0 0.0
  %4774 = vmatpush1.msra.mxu0 0.0
  %4775 = vmatprep.subr.mxu0 0.0
  %4776 = vmatpush1.msra.mxu0 0.0
  %4777 = vmatprep.subr.mxu0 0.0
  %4778 = vmatpush1.msra.mxu0 0.0
  %4779 = vmatprep.subr.mxu0 0.0
  %4780 = vmatpush1.msra.mxu0 0.0
  %4781 = vmatprep.subr.mxu0 0.0
  %4782 = vmatpush1.msra.mxu0 0.0
  %4783 = vmatprep.subr.mxu0 0.0
  %4784 = vmatpush1.msra.mxu0 0.0
  %4785 = vmatprep.subr.mxu0 0.0
  %4786 = vmatpush1.msra.mxu0 0.0
  %4787 = vmatprep.subr.mxu0 0.0
  %4788 = vmatpush1.msra.mxu0 0.0
  %4789 = vmatprep.subr.mxu0 0.0
  %4790 = vmatpush1.msra.mxu0 0.0
  %4791 = vmatprep.subr.mxu0 0.0
  %4792 = vmatpush1.msra.mxu0 0.0
  %4793 = vmatprep.subr.mxu0 0.0
  %4794 = vmatpush1.msra.mxu0 0.0
  %4795 = vmatprep.subr.mxu0 0.0
  %4796 = vmatpush1.msra.mxu0 0.0
  %4797 = vmatprep.subr.mxu0 0.0
  %4798 = vmatpush1.msra.mxu0 0.0
  %4799 = vmatprep.subr.mxu0 0.0
  %4800 = vmatpush1.msra.mxu0 0.0
  %4801 = vmatprep.subr.mxu0 0.0
  %4802 = vmatpush1.msra.mxu0 0.0
  %4803 = vmatprep.subr.mxu0 0.0
  %4804 = vmatpush1.msra.mxu0 0.0
  %4805 = vmatprep.subr.mxu0 0.0
  %4806 = vmatpush1.msra.mxu0 0.0
  %4807 = vmatprep.subr.mxu0 0.0
  %4808 = vmatpush1.msra.mxu0 0.0
  %4809 = vmatprep.subr.mxu0 0.0
  %4810 = vmatpush1.msra.mxu0 0.0
  %4811 = vmatprep.subr.mxu0 0.0
  %4812 = vmatpush1.msra.mxu0 0.0
  %4813 = vmatprep.subr.mxu0 0.0
  %4814 = vmatpush1.msra.mxu0 0.0
  %4815 = vmatprep.subr.mxu0 0.0
  %4816 = vmatpush1.msra.mxu0 0.0
  %4817 = vmatprep.subr.mxu0 0.0
  %4818 = vmatpush1.msra.mxu0 0.0
  %4819 = vmatprep.subr.mxu0 0.0
  %4820 = vmatpush1.msra.mxu0 0.0
  %4821 = vmatprep.mubr.f32.mxu0 0.0
  %4822 = vmatmul.mubr.f32.gmra.mrb[0].mxu0 %v4753
  %v4823 = vpop.f32.mrb[0].mxu0
  %v4824 = vadd.f32 0.0, %v4823
  %v4825 = vpop.f32.mrb[0].mxu0
  %4826 = vmatprep.mubr.f32.mxu0 0.0
  %4827 = vmatmul.mubr.f32.gmra.mrb[0].mxu0 %v4755
  %v4828 = vpop.f32.mrb[0].mxu0
  %v4829 = vadd.f32 0.0, %v4828
  %v4830 = vpop.f32.mrb[0].mxu0
  %4831 = vdwg.mxu0
  %v4832 = vadd.f32 %v4104, %v4824
  %v4833 = vadd.f32 %v4109, %v4829
  %v4834 = vxor.u32 %v4745, 2147483648
  %v4835 = vxor.u32 %v4746, 2147483648
  %v4836 = vxor.u32 %v4832, 2147483648
  %v4837 = vxor.u32 %v4833, 2147483648
  %v4838 = vmul.f32 %v4834, 1.442695
  %v4839 = vpow.pop %v4838
  %v4840 = vmul.f32 %v4835, 1.442695
  %v4841 = vpow.pop %v4840
  %v4842 = vmul.f32 %v4836, 1.442695
  %v4843 = vpow.pop %v4842
  %v4844 = vmul.f32 %v4837, 1.442695
  %v4845 = vpow.pop %v4844
  %v4846 = vadd.f32 %v4839, 1.0
  %v4847 = vadd.f32 %v4841, 1.0
  %v4848 = vadd.f32 %v4843, 1.0
  %v4849 = vadd.f32 %v4845, 1.0
  %v4850 = vrcp.pop %v4846
  %v4851 = vmul.f32 1.0, %v4850
  %v4852 = vrcp.pop %v4847
  %v4853 = vmul.f32 1.0, %v4852
  %v4854 = vrcp.pop %v4848
  %v4855 = vmul.f32 1.0, %v4854
  %v4856 = vrcp.pop %v4849
  %v4857 = vmul.f32 1.0, %v4856
  %v4858 = vtanh.pop %v4745
  %v4859 = vtanh.pop %v4746
  %v4860 = vtanh.pop %v4832
  %v4861 = vtanh.pop %v4833
  %v4862 = vmul.f32 %v4851, %v4632
  %v4863 = vmul.f32 %v4853, %v4633
  %v4864 = vmul.f32 %v4855, %v4634
  %v4865 = vmul.f32 %v4857, %v4635
  %4870 = vrot.lane.b32.xlu0 %v4858, 32
  %v4871 = vpop.permute.xlu0 %4870
  %4872 = vrot.lane.b32.xlu0 %v4859, 32
  %v4873 = vpop.permute.xlu0 %4872
  %4874 = vrot.lane.b32.xlu0 %v4860, 32
  %v4875 = vpop.permute.xlu0 %4874
  %4876 = vrot.lane.b32.xlu0 %v4861, 32
  %v4877 = vpop.permute.xlu0 %4876
  %v4882 = vmul.f32 %v4851, %v4871
  %v4883 = vmul.f32 %v4853, %v4873
  %v4884 = vmul.f32 %v4855, %v4875
  %v4885 = vmul.f32 %v4857, %v4877
  %4890 = vrot.lane.b32.xlu0 %v4882, 32
  %v4891 = vpop.permute.xlu0 %4890
  %4892 = vrot.lane.b32.xlu0 %v4883, 32
  %v4893 = vpop.permute.xlu0 %4892
  %4894 = vrot.lane.b32.xlu0 %v4884, 32
  %v4895 = vpop.permute.xlu0 %4894
  %4896 = vrot.lane.b32.xlu0 %v4885, 32
  %v4897 = vpop.permute.xlu0 %4896
  %v4902 = vadd.f32 %v4862, %v4891
  %v4903 = vadd.f32 %v4863, %v4893
  %v4904 = vadd.f32 %v4864, %v4895
  %v4905 = vadd.f32 %v4865, %v4897
  %v4906 = vtanh.pop %v4902
  %v4907 = vtanh.pop %v4903
  %v4908 = vtanh.pop %v4904
  %v4909 = vtanh.pop %v4905
  %4914 = vrot.lane.b32.xlu0 %v4906, 32
  %v4915 = vpop.permute.xlu0 %4914
  %4916 = vrot.lane.b32.xlu0 %v4907, 32
  %v4917 = vpop.permute.xlu0 %4916
  %4918 = vrot.lane.b32.xlu0 %v4908, 32
  %v4919 = vpop.permute.xlu0 %4918
  %4920 = vrot.lane.b32.xlu0 %v4909, 32
  %v4921 = vpop.permute.xlu0 %4920
  %v4926 = vmul.f32 %v4851, %v4915
  %v4927 = vmul.f32 %v4853, %v4917
  %v4928 = vmul.f32 %v4855, %v4919
  %v4929 = vmul.f32 %v4857, %v4921
  %v4930 = vld [vmem:[%s1 + $0x3d8] sm:$0xff]
  %v4931 = vld [vmem:[%s1 + $0x3e0] sm:$0xff]
  %v4932 = vld [vmem:[%s1 + $0x3e8] sm:$0xff]
  %v4933 = vld [vmem:[%s1 + $0x3f0] sm:$0xff]
  %v4934 = vld [vmem:[%s1 + $0x3f8] sm:$0xff]
  %v4935 = vld [vmem:[%s1 + $0x400] sm:$0xff]
  %v4936 = vld [vmem:[%s1 + $0x408] sm:$0xff]
  %v4937 = vld [vmem:[%s1 + $0x410] sm:$0xff]
  %4940 = vrot.lane.b32.xlu0 %v4928, 64
  %v4941 = vpop.permute.xlu0 %4940
  %4942 = vrot.lane.b32.xlu0 %v4929, 64
  %v4943 = vpop.permute.xlu0 %4942
  %v4944 = vsel %vm902, %v4941, 0
  %v4946 = vsel %vm902, %v4943, 0
  %4948 = vmatprep.subr.mxu0 0.0
  %4949 = vmatpush1.msra.mxu0 %v4934
  %4950 = vmatprep.subr.mxu0 0.0
  %4951 = vmatpush1.msra.mxu0 %v4935
  %4952 = vmatprep.subr.mxu0 0.0
  %4953 = vmatpush1.msra.mxu0 %v4936
  %4954 = vmatprep.subr.mxu0 0.0
  %4955 = vmatpush1.msra.mxu0 %v4937
  %4956 = vmatprep.subr.mxu0 0.0
  %4957 = vmatpush1.msra.mxu0 0.0
  %4958 = vmatprep.subr.mxu0 0.0
  %4959 = vmatpush1.msra.mxu0 0.0
  %4960 = vmatprep.subr.mxu0 0.0
  %4961 = vmatpush1.msra.mxu0 0.0
  %4962 = vmatprep.subr.mxu0 0.0
  %4963 = vmatpush1.msra.mxu0 0.0
  %4964 = vmatprep.subr.mxu0 0.0
  %4965 = vmatpush1.msra.mxu0 0.0
  %4966 = vmatprep.subr.mxu0 0.0
  %4967 = vmatpush1.msra.mxu0 0.0
  %4968 = vmatprep.subr.mxu0 0.0
  %4969 = vmatpush1.msra.mxu0 0.0
  %4970 = vmatprep.subr.mxu0 0.0
  %4971 = vmatpush1.msra.mxu0 0.0
  %4972 = vmatprep.subr.mxu0 0.0
  %4973 = vmatpush1.msra.mxu0 0.0
  %4974 = vmatprep.subr.mxu0 0.0
  %4975 = vmatpush1.msra.mxu0 0.0
  %4976 = vmatprep.subr.mxu0 0.0
  %4977 = vmatpush1.msra.mxu0 0.0
  %4978 = vmatprep.subr.mxu0 0.0
  %4979 = vmatpush1.msra.mxu0 0.0
  %4980 = vmatprep.subr.mxu0 0.0
  %4981 = vmatpush1.msra.mxu0 0.0
  %4982 = vmatprep.subr.mxu0 0.0
  %4983 = vmatpush1.msra.mxu0 0.0
  %4984 = vmatprep.subr.mxu0 0.0
  %4985 = vmatpush1.msra.mxu0 0.0
  %4986 = vmatprep.subr.mxu0 0.0
  %4987 = vmatpush1.msra.mxu0 0.0
  %4988 = vmatprep.subr.mxu0 0.0
  %4989 = vmatpush1.msra.mxu0 0.0
  %4990 = vmatprep.subr.mxu0 0.0
  %4991 = vmatpush1.msra.mxu0 0.0
  %4992 = vmatprep.subr.mxu0 0.0
  %4993 = vmatpush1.msra.mxu0 0.0
  %4994 = vmatprep.subr.mxu0 0.0
  %4995 = vmatpush1.msra.mxu0 0.0
  %4996 = vmatprep.subr.mxu0 0.0
  %4997 = vmatpush1.msra.mxu0 0.0
  %4998 = vmatprep.subr.mxu0 0.0
  %4999 = vmatpush1.msra.mxu0 0.0
  %5000 = vmatprep.subr.mxu0 0.0
  %5001 = vmatpush1.msra.mxu0 0.0
  %5002 = vmatprep.subr.mxu0 0.0
  %5003 = vmatpush1.msra.mxu0 0.0
  %5004 = vmatprep.subr.mxu0 0.0
  %5005 = vmatpush1.msra.mxu0 0.0
  %5006 = vmatprep.subr.mxu0 0.0
  %5007 = vmatpush1.msra.mxu0 0.0
  %5008 = vmatprep.subr.mxu0 0.0
  %5009 = vmatpush1.msra.mxu0 0.0
  %5010 = vmatprep.subr.mxu0 0.0
  %5011 = vmatpush1.msra.mxu0 0.0
  %5012 = vmatprep.mubr.f32.mxu0 0.0
  %5013 = vmatmul.mubr.f32.gmra.mrb[0].mxu0 %v4944
  %v5014 = vpop.f32.mrb[0].mxu0
  %v5015 = vadd.f32 0.0, %v5014
  %v5016 = vpop.f32.mrb[0].mxu0
  %5017 = vmatprep.mubr.f32.mxu0 0.0
  %5018 = vmatmul.mubr.f32.gmra.mrb[0].mxu0 %v4946
  %v5019 = vpop.f32.mrb[0].mxu0
  %v5020 = vadd.f32 0.0, %v5019
  %v5021 = vpop.f32.mrb[0].mxu0
  %5022 = vmatprep.mubr.f32.mxu0 0.0
  %5023 = vmatmul.mubr.f32.gmra.mrb[0].mxu0 %v4753
  %v5024 = vpop.f32.mrb[0].mxu0
  %v5025 = vadd.f32 0.0, %v5024
  %v5026 = vpop.f32.mrb[0].mxu0
  %5027 = vmatprep.mubr.f32.mxu0 0.0
  %5028 = vmatmul.mubr.f32.gmra.mrb[0].mxu0 %v4755
  %v5029 = vpop.f32.mrb[0].mxu0
  %v5030 = vadd.f32 0.0, %v5029
  %v5031 = vpop.f32.mrb[0].mxu0
  %5032 = vmatprep.mubr.f32.mxu0 0.0
  %5033 = vmatmul.mubr.f32.gmra.mrb[0].mxu0 %v4483
  %v5034 = vpop.f32.mrb[0].mxu0
  %v5035 = vadd.f32 0.0, %v5034
  %v5036 = vpop.f32.mrb[0].mxu0
  %5037 = vmatprep.mubr.f32.mxu0 0.0
  %5038 = vmatmul.mubr.f32.gmra.mrb[0].mxu0 %v4485
  %v5039 = vpop.f32.mrb[0].mxu0
  %v5040 = vadd.f32 0.0, %v5039
  %v5041 = vpop.f32.mrb[0].mxu0
  %5042 = vdwg.mxu0
  %5045 = vrot.lane.b32.xlu0 %v4926, 64
  %v5046 = vpop.permute.xlu0 %5045
  %5047 = vrot.lane.b32.xlu0 %v4927, 64
  %v5048 = vpop.permute.xlu0 %5047
  %v5049 = vsel %vm902, %v5046, 0
  %v5051 = vsel %vm902, %v5048, 0
  %5053 = vmatprep.subr.mxu0 0.0
  %5054 = vmatpush1.msra.mxu0 %v4930
  %5055 = vmatprep.subr.mxu0 0.0
  %5056 = vmatpush1.msra.mxu0 %v4931
  %5057 = vmatprep.subr.mxu0 0.0
  %5058 = vmatpush1.msra.mxu0 %v4932
  %5059 = vmatprep.subr.mxu0 0.0
  %5060 = vmatpush1.msra.mxu0 %v4933
  %5061 = vmatprep.subr.mxu0 0.0
  %5062 = vmatpush1.msra.mxu0 0.0
  %5063 = vmatprep.subr.mxu0 0.0
  %5064 = vmatpush1.msra.mxu0 0.0
  %5065 = vmatprep.subr.mxu0 0.0
  %5066 = vmatpush1.msra.mxu0 0.0
  %5067 = vmatprep.subr.mxu0 0.0
  %5068 = vmatpush1.msra.mxu0 0.0
  %5069 = vmatprep.subr.mxu0 0.0
  %5070 = vmatpush1.msra.mxu0 0.0
  %5071 = vmatprep.subr.mxu0 0.0
  %5072 = vmatpush1.msra.mxu0 0.0
  %5073 = vmatprep.subr.mxu0 0.0
  %5074 = vmatpush1.msra.mxu0 0.0
  %5075 = vmatprep.subr.mxu0 0.0
  %5076 = vmatpush1.msra.mxu0 0.0
  %5077 = vmatprep.subr.mxu0 0.0
  %5078 = vmatpush1.msra.mxu0 0.0
  %5079 = vmatprep.subr.mxu0 0.0
  %5080 = vmatpush1.msra.mxu0 0.0
  %5081 = vmatprep.subr.mxu0 0.0
  %5082 = vmatpush1.msra.mxu0 0.0
  %5083 = vmatprep.subr.mxu0 0.0
  %5084 = vmatpush1.msra.mxu0 0.0
  %5085 = vmatprep.subr.mxu0 0.0
  %5086 = vmatpush1.msra.mxu0 0.0
  %5087 = vmatprep.subr.mxu0 0.0
  %5088 = vmatpush1.msra.mxu0 0.0
  %5089 = vmatprep.subr.mxu0 0.0
  %5090 = vmatpush1.msra.mxu0 0.0
  %5091 = vmatprep.subr.mxu0 0.0
  %5092 = vmatpush1.msra.mxu0 0.0
  %5093 = vmatprep.subr.mxu0 0.0
  %5094 = vmatpush1.msra.mxu0 0.0
  %5095 = vmatprep.subr.mxu0 0.0
  %5096 = vmatpush1.msra.mxu0 0.0
  %5097 = vmatprep.subr.mxu0 0.0
  %5098 = vmatpush1.msra.mxu0 0.0
  %5099 = vmatprep.subr.mxu0 0.0
  %5100 = vmatpush1.msra.mxu0 0.0
  %5101 = vmatprep.subr.mxu0 0.0
  %5102 = vmatpush1.msra.mxu0 0.0
  %5103 = vmatprep.subr.mxu0 0.0
  %5104 = vmatpush1.msra.mxu0 0.0
  %5105 = vmatprep.subr.mxu0 0.0
  %5106 = vmatpush1.msra.mxu0 0.0
  %5107 = vmatprep.subr.mxu0 0.0
  %5108 = vmatpush1.msra.mxu0 0.0
  %5109 = vmatprep.subr.mxu0 0.0
  %5110 = vmatpush1.msra.mxu0 0.0
  %5111 = vmatprep.subr.mxu0 0.0
  %5112 = vmatpush1.msra.mxu0 0.0
  %5113 = vmatprep.subr.mxu0 0.0
  %5114 = vmatpush1.msra.mxu0 0.0
  %5115 = vmatprep.subr.mxu0 0.0
  %5116 = vmatpush1.msra.mxu0 0.0
  %5117 = vmatprep.mubr.f32.mxu0 0.0
  %5118 = vmatmul.mubr.f32.gmra.mrb[0].mxu0 %v4396
  %v5119 = vpop.f32.mrb[0].mxu0
  %v5120 = vadd.f32 %v5015, %v5119
  %v5121 = vpop.f32.mrb[0].mxu0
  %5122 = vmatprep.mubr.f32.mxu0 0.0
  %5123 = vmatmul.mubr.f32.gmra.mrb[0].mxu0 %v4398
  %v5124 = vpop.f32.mrb[0].mxu0
  %v5125 = vadd.f32 %v5020, %v5124
  %v5126 = vpop.f32.mrb[0].mxu0
  %5127 = vmatprep.mubr.f32.mxu0 0.0
  %5128 = vmatmul.mubr.f32.gmra.mrb[0].mxu0 %v4666
  %v5129 = vpop.f32.mrb[0].mxu0
  %v5130 = vadd.f32 %v5025, %v5129
  %v5131 = vpop.f32.mrb[0].mxu0
  %5132 = vmatprep.mubr.f32.mxu0 0.0
  %5133 = vmatmul.mubr.f32.gmra.mrb[0].mxu0 %v4668
  %v5134 = vpop.f32.mrb[0].mxu0
  %v5135 = vadd.f32 %v5030, %v5134
  %v5136 = vpop.f32.mrb[0].mxu0
  %5137 = vmatprep.mubr.f32.mxu0 0.0
  %5138 = vmatmul.mubr.f32.gmra.mrb[0].mxu0 %v5049
  %v5139 = vpop.f32.mrb[0].mxu0
  %v5140 = vadd.f32 %v5035, %v5139
  %v5141 = vpop.f32.mrb[0].mxu0
  %5142 = vmatprep.mubr.f32.mxu0 0.0
  %5143 = vmatmul.mubr.f32.gmra.mrb[0].mxu0 %v5051
  %v5144 = vpop.f32.mrb[0].mxu0
  %v5145 = vadd.f32 %v5040, %v5144
  %v5146 = vpop.f32.mrb[0].mxu0
  %5147 = vdwg.mxu0
  %v5148 = vld [vmem:[%s1 + $0x418] sm:$0x1]
  %v5149 = vlaneseq
  %v5150 = vshrl.u32 %v5149, 7
  %v5151 = vsub.s32 0, %v5150
  %v5152 = vrot.slane %v5148, %v5151
  %v5153 = vadd.f32 %v5120, %v5152
  %v5154 = vadd.f32 %v5125, %v5152
  %v5155 = vadd.f32 %v5130, %v5152
  %v5156 = vadd.f32 %v5135, %v5152
  %v5157 = vadd.f32 %v5140, %v5152
  %v5158 = vadd.f32 %v5145, %v5152
  %v5159 = vmax.f32 %v5153, %v5155
  %v5160 = vmax.f32 %v5154, %v5156
  %v5161 = vmax.f32 %v5159, %v5157
  %v5162 = vmax.f32 %v5160, %v5158
  %v5163 = vsub.f32 %v5153, %v5161
  %v5164 = vsub.f32 %v5154, %v5162
  %v5165 = vmul.f32 %v5163, 1.442695
  %v5166 = vpow.pop %v5165
  %v5167 = vmul.f32 %v5164, 1.442695
  %v5168 = vpow.pop %v5167
  %v5169 = vsub.f32 %v5155, %v5161
  %v5170 = vsub.f32 %v5156, %v5162
  %v5171 = vmul.f32 %v5169, 1.442695
  %v5172 = vpow.pop %v5171
  %v5173 = vmul.f32 %v5170, 1.442695
  %v5174 = vpow.pop %v5173
  %v5175 = vsub.f32 %v5157, %v5161
  %v5176 = vsub.f32 %v5158, %v5162
  %v5177 = vmul.f32 %v5175, 1.442695
  %v5178 = vpow.pop %v5177
  %v5179 = vmul.f32 %v5176, 1.442695
  %v5180 = vpow.pop %v5179
  %5182 = vset.pattern.permute.xlu0 0
  %5183 = vperm.xlu0 %5182, %v5166
  %v5184 = vpop.permute.xlu0 %5183
  %5187 = vset.pattern.permute.xlu0 0
  %5188 = vperm.xlu0 %5187, %v5168
  %v5189 = vpop.permute.xlu0 %5188
  %v5191 = vmul.f32 %v5184, %v912
  %v5192 = vmul.f32 %v5189, %v913
  %5194 = vset.pattern.permute.xlu0 0
  %5195 = vperm.xlu0 %5194, %v5172
  %v5196 = vpop.permute.xlu0 %5195
  %5199 = vset.pattern.permute.xlu0 0
  %5200 = vperm.xlu0 %5199, %v5174
  %v5201 = vpop.permute.xlu0 %5200
  %v5203 = vmul.f32 %v5196, %v1339
  %v5204 = vmul.f32 %v5201, %v1340
  %v5205 = vadd.f32 %v5191, %v5203
  %v5206 = vadd.f32 %v5192, %v5204
  %5208 = vset.pattern.permute.xlu0 0
  %5209 = vperm.xlu0 %5208, %v5178
  %v5210 = vpop.permute.xlu0 %5209
  %5213 = vset.pattern.permute.xlu0 0
  %5214 = vperm.xlu0 %5213, %v5180
  %v5215 = vpop.permute.xlu0 %5214
  %v5217 = vmul.f32 %v5210, %v1765
  %v5218 = vmul.f32 %v5215, %v1766
  %v5219 = vadd.f32 %v5205, %v5217
  %v5220 = vadd.f32 %v5206, %v5218
  %v5221 = vadd.f32 %v5166, %v5172
  %v5222 = vadd.f32 %v5168, %v5174
  %v5223 = vadd.f32 %v5221, %v5178
  %v5224 = vadd.f32 %v5222, %v5180
  %5226 = vset.pattern.permute.xlu0 0
  %5227 = vperm.xlu0 %5226, %v5223
  %v5228 = vpop.permute.xlu0 %5227
  %5231 = vset.pattern.permute.xlu0 0
  %5232 = vperm.xlu0 %5231, %v5224
  %v5233 = vpop.permute.xlu0 %5232
  %v5235 = vrcp.pop %v5228
  %v5236 = vmul.f32 %v5219, %v5235
  %v5237 = vrcp.pop %v5233
  %v5238 = vmul.f32 %v5220, %v5237
  %v5239 = vld [vmem:[%s1 + $0x120] sm:$0xff]
  %v5240 = vld [vmem:[%s1 + $0x128] sm:$0xff]
  %v5241 = vld [vmem:[%s1 + $0x130] sm:$0xff]
  %v5242 = vld [vmem:[%s1 + $0x138] sm:$0xff]
  %v5243 = vld [vmem:[%s1 + $0x140] sm:$0xff]
  %v5244 = vld [vmem:[%s1 + $0x148] sm:$0xff]
  %v5245 = vld [vmem:[%s1 + $0x150] sm:$0xff]
  %v5246 = vld [vmem:[%s1 + $0x158] sm:$0xff]
  %v5248 = vsel %vm922, %v5236, 0
  %v5251 = vsel %vm922, %v5238, 0
  %5253 = vmatprep.subr.mxu0 0.0
  %5254 = vmatpush1.msra.mxu0 %v5239
  %5255 = vmatprep.subr.mxu0 0.0
  %5256 = vmatpush1.msra.mxu0 %v5240
  %5257 = vmatprep.subr.mxu0 0.0
  %5258 = vmatpush1.msra.mxu0 %v5241
  %5259 = vmatprep.subr.mxu0 0.0
  %5260 = vmatpush1.msra.mxu0 %v5242
  %5261 = vmatprep.subr.mxu0 0.0
  %5262 = vmatpush1.msra.mxu0 %v5243
  %5263 = vmatprep.subr.mxu0 0.0
  %5264 = vmatpush1.msra.mxu0 %v5244
  %5265 = vmatprep.subr.mxu0 0.0
  %5266 = vmatpush1.msra.mxu0 %v5245
  %5267 = vmatprep.subr.mxu0 0.0
  %5268 = vmatpush1.msra.mxu0 %v5246
  %5269 = vmatprep.subr.mxu0 0.0
  %5270 = vmatpush1.msra.mxu0 0.0
  %5271 = vmatprep.subr.mxu0 0.0
  %5272 = vmatpush1.msra.mxu0 0.0
  %5273 = vmatprep.subr.mxu0 0.0
  %5274 = vmatpush1.msra.mxu0 0.0
  %5275 = vmatprep.subr.mxu0 0.0
  %5276 = vmatpush1.msra.mxu0 0.0
  %5277 = vmatprep.subr.mxu0 0.0
  %5278 = vmatpush1.msra.mxu0 0.0
  %5279 = vmatprep.subr.mxu0 0.0
  %5280 = vmatpush1.msra.mxu0 0.0
  %5281 = vmatprep.subr.mxu0 0.0
  %5282 = vmatpush1.msra.mxu0 0.0
  %5283 = vmatprep.subr.mxu0 0.0
  %5284 = vmatpush1.msra.mxu0 0.0
  %5285 = vmatprep.subr.mxu0 0.0
  %5286 = vmatpush1.msra.mxu0 0.0
  %5287 = vmatprep.subr.mxu0 0.0
  %5288 = vmatpush1.msra.mxu0 0.0
  %5289 = vmatprep.subr.mxu0 0.0
  %5290 = vmatpush1.msra.mxu0 0.0
  %5291 = vmatprep.subr.mxu0 0.0
  %5292 = vmatpush1.msra.mxu0 0.0
  %5293 = vmatprep.subr.mxu0 0.0
  %5294 = vmatpush1.msra.mxu0 0.0
  %5295 = vmatprep.subr.mxu0 0.0
  %5296 = vmatpush1.msra.mxu0 0.0
  %5297 = vmatprep.subr.mxu0 0.0
  %5298 = vmatpush1.msra.mxu0 0.0
  %5299 = vmatprep.subr.mxu0 0.0
  %5300 = vmatpush1.msra.mxu0 0.0
  %5301 = vmatprep.subr.mxu0 0.0
  %5302 = vmatpush1.msra.mxu0 0.0
  %5303 = vmatprep.subr.mxu0 0.0
  %5304 = vmatpush1.msra.mxu0 0.0
  %5305 = vmatprep.subr.mxu0 0.0
  %5306 = vmatpush1.msra.mxu0 0.0
  %5307 = vmatprep.subr.mxu0 0.0
  %5308 = vmatpush1.msra.mxu0 0.0
  %5309 = vmatprep.subr.mxu0 0.0
  %5310 = vmatpush1.msra.mxu0 0.0
  %5311 = vmatprep.subr.mxu0 0.0
  %5312 = vmatpush1.msra.mxu0 0.0
  %5313 = vmatprep.subr.mxu0 0.0
  %5314 = vmatpush1.msra.mxu0 0.0
  %5315 = vmatprep.subr.mxu0 0.0
  %5316 = vmatpush1.msra.mxu0 0.0
  %5317 = vmatprep.mubr.f32.mxu0 0.0
  %5318 = vmatmul.mubr.f32.gmra.mrb[0].mxu0 %v5248
  %v5319 = vpop.f32.mrb[0].mxu0
  %v5320 = vadd.f32 0.0, %v5319
  %v5321 = vpop.f32.mrb[0].mxu0
  %5322 = vmatprep.mubr.f32.mxu0 0.0
  %5323 = vmatmul.mubr.f32.gmra.mrb[0].mxu0 %v5251
  %v5324 = vpop.f32.mrb[0].mxu0
  %v5325 = vadd.f32 0.0, %v5324
  %v5326 = vpop.f32.mrb[0].mxu0
  %5327 = vdwg.mxu0
  %5329 = vset.pattern.permute.xlu0 41
  %5330 = vperm.xlu0 %5329, %v5320
  %v5331 = vpop.permute.xlu0 %5330
  %5334 = vset.pattern.permute.xlu0 41
  %5335 = vperm.xlu0 %5334, %v5325
  %v5336 = vpop.permute.xlu0 %5335
  %5338 = vset.pattern.permute.xlu0 40
  %5339 = vperm.xlu0 %5338, %v5320
  %v5340 = vpop.permute.xlu0 %5339
  %5341 = vset.pattern.permute.xlu0 40
  %5342 = vperm.xlu0 %5341, %v5325
  %v5343 = vpop.permute.xlu0 %5342
  %v5344 = vlaneseq
  %v5345 = vshrl.u32 %v5344, 7
  %v5346 = vsub.s32 %v565, %v5345
  %v5347 = vrot.slane %v5340, %v5346
  %v5348 = vadd.s32 %v565, 4294967288
  %v5349 = vlaneseq
  %v5350 = vshrl.u32 %v5349, 7
  %v5351 = vsub.s32 %v5348, %v5350
  %v5352 = vrot.slane %v5343, %v5351
  %vm5353 = vcmask 130112
  %v5354 = vsel %vm5353, %v5352, %v5347
  %v5355 = vsel %vm578, %v5354, %v5354
  %v5356 = vsel %vm580, %v5354, %v5355
  %v5357 = vsel %vm582, %v5354, %v5356
  %v5358 = vsel %vm584, %v5354, %v5357
  %v5359 = vsel %vm586, %v5354, %v5358
  %v5360 = vsel %vm588, %v5354, %v5359
  %v5362 = vadd.f32 %v5331, %v5360
  %v5363 = vadd.f32 %v5336, %v5360
  %v5364 = vmul.f32 %v5362, 0.2
  %v5365 = vmul.f32 %v5363, 0.2
  %v5366 = vmax.f32 %v5362, %v5364
  %v5367 = vmax.f32 %v5363, %v5365
  %v5368 = vadd.f32 %v5366, %v18
  %v5369 = vadd.f32 %v5367, %v19
  %v5370 = vsel %vm27, %v5368, -inf
  %5371 = vmax.xlane.f32.xlu0 %v5370
  %v5372 = vpop.xlane.xlu0 %5371
  %v5373 = vsel %vm27, %v5369, -inf
  %5374 = vmax.xlane.f32.xlu0 %v5373
  %v5375 = vpop.xlane.xlu0 %5374
  %v5376 = vsub.f32 %v5368, %v5372
  %v5377 = vsub.f32 %v5369, %v5375
  %v5378 = vmul.f32 %v5376, 1.442695
  %v5379 = vpow.pop %v5378
  %v5380 = vmul.f32 %v5377, 1.442695
  %v5381 = vpow.pop %v5380
  %v5382 = vsel %vm27, %v5379, 0.0
  %5383 = vadd.xlane.f32.xlu0 %v5382
  %v5384 = vpop.xlane.xlu0 %5383
  %v5385 = vsel %vm27, %v5381, 0.0
  %5386 = vadd.xlane.f32.xlu0 %v5385
  %v5387 = vpop.xlane.xlu0 %5386
  %v5388 = vrcp.pop %v5384
  %v5389 = vmul.f32 %v5379, %v5388
  %v5390 = vrcp.pop %v5387
  %v5391 = vmul.f32 %v5381, %v5390
  %v5392 = vld [vmem:[%s1 + $0x160] sm:$0x1]
  %v5393 = vlaneseq
  %v5394 = vshrl.u32 %v5393, 7
  %v5395 = vsub.s32 0, %v5394
  %v5396 = vrot.slane %v5392, %v5395
  %v5398 = vsel %vm27, %v5389, 0
  %v5401 = vsel %vm27, %v5391, 0
  %5403 = vmatprep.subr.mxu0 0.0
  %5404 = vmatpush1.msra.mxu0 %v5320
  %5405 = vmatprep.subr.mxu0 0.0
  %5406 = vmatpush1.msra.mxu0 %v5325
  %5407 = vmatprep.subr.mxu0 0.0
  %5408 = vmatpush1.msra.mxu0 0.0
  %5409 = vmatprep.subr.mxu0 0.0
  %5410 = vmatpush1.msra.mxu0 0.0
  %5411 = vmatprep.subr.mxu0 0.0
  %5412 = vmatpush1.msra.mxu0 0.0
  %5413 = vmatprep.subr.mxu0 0.0
  %5414 = vmatpush1.msra.mxu0 0.0
  %5415 = vmatprep.subr.mxu0 0.0
  %5416 = vmatpush1.msra.mxu0 0.0
  %5417 = vmatprep.subr.mxu0 0.0
  %5418 = vmatpush1.msra.mxu0 0.0
  %5419 = vmatprep.subr.mxu0 0.0
  %5420 = vmatpush1.msra.mxu0 0.0
  %5421 = vmatprep.subr.mxu0 0.0
  %5422 = vmatpush1.msra.mxu0 0.0
  %5423 = vmatprep.subr.mxu0 0.0
  %5424 = vmatpush1.msra.mxu0 0.0
  %5425 = vmatprep.subr.mxu0 0.0
  %5426 = vmatpush1.msra.mxu0 0.0
  %5427 = vmatprep.subr.mxu0 0.0
  %5428 = vmatpush1.msra.mxu0 0.0
  %5429 = vmatprep.subr.mxu0 0.0
  %5430 = vmatpush1.msra.mxu0 0.0
  %5431 = vmatprep.subr.mxu0 0.0
  %5432 = vmatpush1.msra.mxu0 0.0
  %5433 = vmatprep.subr.mxu0 0.0
  %5434 = vmatpush1.msra.mxu0 0.0
  %5435 = vmatprep.subr.mxu0 0.0
  %5436 = vmatpush1.msra.mxu0 0.0
  %5437 = vmatprep.subr.mxu0 0.0
  %5438 = vmatpush1.msra.mxu0 0.0
  %5439 = vmatprep.subr.mxu0 0.0
  %5440 = vmatpush1.msra.mxu0 0.0
  %5441 = vmatprep.subr.mxu0 0.0
  %5442 = vmatpush1.msra.mxu0 0.0
  %5443 = vmatprep.subr.mxu0 0.0
  %5444 = vmatpush1.msra.mxu0 0.0
  %5445 = vmatprep.subr.mxu0 0.0
  %5446 = vmatpush1.msra.mxu0 0.0
  %5447 = vmatprep.subr.mxu0 0.0
  %5448 = vmatpush1.msra.mxu0 0.0
  %5449 = vmatprep.subr.mxu0 0.0
  %5450 = vmatpush1.msra.mxu0 0.0
  %5451 = vmatprep.subr.mxu0 0.0
  %5452 = vmatpush1.msra.mxu0 0.0
  %5453 = vmatprep.subr.mxu0 0.0
  %5454 = vmatpush1.msra.mxu0 0.0
  %5455 = vmatprep.subr.mxu0 0.0
  %5456 = vmatpush1.msra.mxu0 0.0
  %5457 = vmatprep.subr.mxu0 0.0
  %5458 = vmatpush1.msra.mxu0 0.0
  %5459 = vmatprep.subr.mxu0 0.0
  %5460 = vmatpush1.msra.mxu0 0.0
  %5461 = vmatprep.subr.mxu0 0.0
  %5462 = vmatpush1.msra.mxu0 0.0
  %5463 = vmatprep.subr.mxu0 0.0
  %5464 = vmatpush1.msra.mxu0 0.0
  %5465 = vmatprep.subr.mxu0 0.0
  %5466 = vmatpush1.msra.mxu0 0.0
  %5467 = vmatprep.mubr.f32.mxu0 0.0
  %5468 = vmatmul.mubr.f32.gmra.mrb[0].mxu0 %v5398
  %v5469 = vpop.f32.mrb[0].mxu0
  %v5470 = vadd.f32 %v5396, %v5469
  %v5471 = vpop.f32.mrb[0].mxu0
  %5472 = vmatprep.mubr.f32.mxu0 0.0
  %5473 = vmatmul.mubr.f32.gmra.mrb[0].mxu0 %v5401
  %v5474 = vpop.f32.mrb[0].mxu0
  %v5475 = vadd.f32 %v5396, %v5474
  %v5476 = vpop.f32.mrb[0].mxu0
  %5477 = vdwg.mxu0
  %v5479 = vsel %vm27, %v15, 0
  %5481 = vmatprep.subr.mxu0 0.0
  %5482 = vmatpush1.msra.mxu0 %v5470
  %5483 = vmatprep.subr.mxu0 0.0
  %5484 = vmatpush1.msra.mxu0 %v5475
  %5485 = vmatprep.subr.mxu0 0.0
  %5486 = vmatpush1.msra.mxu0 0.0
  %5487 = vmatprep.subr.mxu0 0.0
  %5488 = vmatpush1.msra.mxu0 0.0
  %5489 = vmatprep.subr.mxu0 0.0
  %5490 = vmatpush1.msra.mxu0 0.0
  %5491 = vmatprep.subr.mxu0 0.0
  %5492 = vmatpush1.msra.mxu0 0.0
  %5493 = vmatprep.subr.mxu0 0.0
  %5494 = vmatpush1.msra.mxu0 0.0
  %5495 = vmatprep.subr.mxu0 0.0
  %5496 = vmatpush1.msra.mxu0 0.0
  %5497 = vmatprep.subr.mxu0 0.0
  %5498 = vmatpush1.msra.mxu0 0.0
  %5499 = vmatprep.subr.mxu0 0.0
  %5500 = vmatpush1.msra.mxu0 0.0
  %5501 = vmatprep.subr.mxu0 0.0
  %5502 = vmatpush1.msra.mxu0 0.0
  %5503 = vmatprep.subr.mxu0 0.0
  %5504 = vmatpush1.msra.mxu0 0.0
  %5505 = vmatprep.subr.mxu0 0.0
  %5506 = vmatpush1.msra.mxu0 0.0
  %5507 = vmatprep.subr.mxu0 0.0
  %5508 = vmatpush1.msra.mxu0 0.0
  %5509 = vmatprep.subr.mxu0 0.0
  %5510 = vmatpush1.msra.mxu0 0.0
  %5511 = vmatprep.subr.mxu0 0.0
  %5512 = vmatpush1.msra.mxu0 0.0
  %5513 = vmatprep.subr.mxu0 0.0
  %5514 = vmatpush1.msra.mxu0 0.0
  %5515 = vmatprep.subr.mxu0 0.0
  %5516 = vmatpush1.msra.mxu0 0.0
  %5517 = vmatprep.subr.mxu0 0.0
  %5518 = vmatpush1.msra.mxu0 0.0
  %5519 = vmatprep.subr.mxu0 0.0
  %5520 = vmatpush1.msra.mxu0 0.0
  %5521 = vmatprep.subr.mxu0 0.0
  %5522 = vmatpush1.msra.mxu0 0.0
  %5523 = vmatprep.subr.mxu0 0.0
  %5524 = vmatpush1.msra.mxu0 0.0
  %5525 = vmatprep.subr.mxu0 0.0
  %5526 = vmatpush1.msra.mxu0 0.0
  %5527 = vmatprep.subr.mxu0 0.0
  %5528 = vmatpush1.msra.mxu0 0.0
  %5529 = vmatprep.subr.mxu0 0.0
  %5530 = vmatpush1.msra.mxu0 0.0
  %5531 = vmatprep.subr.mxu0 0.0
  %5532 = vmatpush1.msra.mxu0 0.0
  %5533 = vmatprep.subr.mxu0 0.0
  %5534 = vmatpush1.msra.mxu0 0.0
  %5535 = vmatprep.subr.mxu0 0.0
  %5536 = vmatpush1.msra.mxu0 0.0
  %5537 = vmatprep.subr.mxu0 0.0
  %5538 = vmatpush1.msra.mxu0 0.0
  %5539 = vmatprep.subr.mxu0 0.0
  %5540 = vmatpush1.msra.mxu0 0.0
  %5541 = vmatprep.subr.mxu0 0.0
  %5542 = vmatpush1.msra.mxu0 0.0
  %5543 = vmatprep.subr.mxu0 0.0
  %5544 = vmatpush1.msra.mxu0 0.0
  %5545 = vmatprep.mubr.f32.mxu0 0.0
  %5546 = vmatmul.mubr.f32.gmra.mrb[0].mxu0 %v5479
  %v5547 = vpop.f32.mrb[0].mxu0
  %v5548 = vadd.f32 0.0, %v5547
  %v5549 = vpop.f32.mrb[0].mxu0
  %5550 = vdwg.mxu0
  %v5551 = vld [vmem:[%s1 + $0x420] sm:$0xff]
  %v5552 = vld [vmem:[%s1 + $0x428] sm:$0xff]
  %v5553 = vld [vmem:[%s1 + $0x430] sm:$0xff]
  %v5554 = vld [vmem:[%s1 + $0x438] sm:$0xff]
  %v5555 = vld [vmem:[%s1 + $0x440] sm:$0xff]
  %v5556 = vld [vmem:[%s1 + $0x448] sm:$0x1]
  %v5557 = vlaneseq
  %v5558 = vshrl.u32 %v5557, 7
  %v5559 = vsub.s32 0, %v5558
  %v5560 = vrot.slane %v5556, %v5559
  %vm5561 = vcmask 326656
  %v5563 = vsel %vm5561, %v5548, 0
  %5565 = vmatprep.subr.mxu0 0.0
  %5566 = vmatpush1.msra.mxu0 %v5551
  %5567 = vmatprep.subr.mxu0 0.0
  %5568 = vmatpush1.msra.mxu0 %v5552
  %5569 = vmatprep.subr.mxu0 0.0
  %5570 = vmatpush1.msra.mxu0 %v5553
  %5571 = vmatprep.subr.mxu0 0.0
  %5572 = vmatpush1.msra.mxu0 %v5554
  %5573 = vmatprep.subr.mxu0 0.0
  %5574 = vmatpush1.msra.mxu0 %v5555
  %5575 = vmatprep.subr.mxu0 0.0
  %5576 = vmatpush1.msra.mxu0 0.0
  %5577 = vmatprep.subr.mxu0 0.0
  %5578 = vmatpush1.msra.mxu0 0.0
  %5579 = vmatprep.subr.mxu0 0.0
  %5580 = vmatpush1.msra.mxu0 0.0
  %5581 = vmatprep.subr.mxu0 0.0
  %5582 = vmatpush1.msra.mxu0 0.0
  %5583 = vmatprep.subr.mxu0 0.0
  %5584 = vmatpush1.msra.mxu0 0.0
  %5585 = vmatprep.subr.mxu0 0.0
  %5586 = vmatpush1.msra.mxu0 0.0
  %5587 = vmatprep.subr.mxu0 0.0
  %5588 = vmatpush1.msra.mxu0 0.0
  %5589 = vmatprep.subr.mxu0 0.0
  %5590 = vmatpush1.msra.mxu0 0.0
  %5591 = vmatprep.subr.mxu0 0.0
  %5592 = vmatpush1.msra.mxu0 0.0
  %5593 = vmatprep.subr.mxu0 0.0
  %5594 = vmatpush1.msra.mxu0 0.0
  %5595 = vmatprep.subr.mxu0 0.0
  %5596 = vmatpush1.msra.mxu0 0.0
  %5597 = vmatprep.subr.mxu0 0.0
  %5598 = vmatpush1.msra.mxu0 0.0
  %5599 = vmatprep.subr.mxu0 0.0
  %5600 = vmatpush1.msra.mxu0 0.0
  %5601 = vmatprep.subr.mxu0 0.0
  %5602 = vmatpush1.msra.mxu0 0.0
  %5603 = vmatprep.subr.mxu0 0.0
  %5604 = vmatpush1.msra.mxu0 0.0
  %5605 = vmatprep.subr.mxu0 0.0
  %5606 = vmatpush1.msra.mxu0 0.0
  %5607 = vmatprep.subr.mxu0 0.0
  %5608 = vmatpush1.msra.mxu0 0.0
  %5609 = vmatprep.subr.mxu0 0.0
  %5610 = vmatpush1.msra.mxu0 0.0
  %5611 = vmatprep.subr.mxu0 0.0
  %5612 = vmatpush1.msra.mxu0 0.0
  %5613 = vmatprep.subr.mxu0 0.0
  %5614 = vmatpush1.msra.mxu0 0.0
  %5615 = vmatprep.subr.mxu0 0.0
  %5616 = vmatpush1.msra.mxu0 0.0
  %5617 = vmatprep.subr.mxu0 0.0
  %5618 = vmatpush1.msra.mxu0 0.0
  %5619 = vmatprep.subr.mxu0 0.0
  %5620 = vmatpush1.msra.mxu0 0.0
  %5621 = vmatprep.subr.mxu0 0.0
  %5622 = vmatpush1.msra.mxu0 0.0
  %5623 = vmatprep.subr.mxu0 0.0
  %5624 = vmatpush1.msra.mxu0 0.0
  %5625 = vmatprep.subr.mxu0 0.0
  %5626 = vmatpush1.msra.mxu0 0.0
  %5627 = vmatprep.subr.mxu0 0.0
  %5628 = vmatpush1.msra.mxu0 0.0
  %5629 = vmatprep.mubr.f32.mxu0 0.0
  %5630 = vmatmul.mubr.f32.gmra.mrb[0].mxu0 %v5563
  %v5631 = vpop.f32.mrb[0].mxu0
  %v5632 = vadd.f32 %v5560, %v5631
  %v5633 = vpop.f32.mrb[0].mxu0
  %5634 = vdwg.mxu0
  %5635 = vst [vmem:[%s2] sm:$0xff] %v5632
  // Predicated region
  $region10: #{xasnet_gat_forward.1} parent=0 // pred_check
    _
  $region11: #{xasnet_gat_forward.1} parent=0 // pred_check_branch
    %5637 = sbr.rel (0) target = $region13
  $region12: #{xasnet_gat_forward.1} parent=0 // pred_region
    _
  $region13: #{xasnet_gat_forward.1} parent=0 // pred_fallthru
    _
  // Predicated region
  $region14: #{xasnet_gat_forward.1} parent=0 // pred_check
    _
  $region15: #{xasnet_gat_forward.1} parent=0 // pred_check_branch
    %5639 = sbr.rel (0) target = $region17
  $region16: #{xasnet_gat_forward.1} parent=0 // pred_region
    _
  $region17: #{xasnet_gat_forward.1} parent=0 // pred_fallthru
    _

</llo_original>
